<compile_context>
chip_gen: v7x
topology: tpu7x:2x2x1
jax: 0.10.0
libtpu: 0.0.40
codegen_flags: <defaults>
</compile_context>

<pallas_src>
import jax
import jax.numpy as jnp
from jax.experimental import pallas as pl
from jax.experimental.pallas import tpu as pltpu
import numpy as np

HPAD = 128          # per-gate lane padding (one full vreg per gate)
NGATES = 4          # PyTorch gate order (i, f, g, o)


# ----------------------------------------------------------------------------
# Fused kernel factory: layer-0 input projection + wavefront-scheduled LSTM.
# ----------------------------------------------------------------------------
def make_state_lstm_kernel(num_layers, seq_len):
    L, S = num_layers, seq_len
    Gp = NGATES * HPAD      # padded gate width per layer

    def kernel(x_ref, wfu_ref, wrec_ref, gbias_ref, hc0_ref,
               out_ref, hn_ref, cn_ref):
        # ---- layer-0 input projection for the whole sequence (encoder folded
        # in, bias folded in): (S, F) @ (F, Gp) -> (S, Gp), lane-dense.
        gx0 = (
            jnp.dot(x_ref[...], wfu_ref[...], preferred_element_type=jnp.float32)
            + gbias_ref[0:1, :]
        )

        wrec = wrec_ref[...]                                   # (L*HPAD, L*Gp)

        # padded per-layer states (real values in lanes [0:H], zeros elsewhere)
        h = [hc0_ref[l:l + 1, :] for l in range(L)]            # each (1, HPAD)
        c = [hc0_ref[L + l:L + l + 1, :] for l in range(L)]

        # ---- wavefront loop: at wavefront w, layer l processes step t = w - l.
        # Fully unrolled at trace time (S, L static & small).
        for w in range(S + L - 1):
            lhs = jnp.concatenate(h, axis=1)                   # (1, L*HPAD), vreg-aligned
            gall = jnp.dot(lhs, wrec, preferred_element_type=jnp.float32)  # (1, L*Gp)

            new_h = list(h)
            new_c = list(c)
            for l in range(L):
                t = w - l
                if 0 <= t < S:
                    g_l = gall[:, l * Gp:(l + 1) * Gp]          # vreg-aligned 4-vreg slice
                    if l == 0:
                        g_l = g_l + gx0[t:t + 1, :]             # includes layer-0 bias
                    else:
                        g_l = g_l + gbias_ref[l:l + 1, :]
                    # one nonlinearity per full-vreg gate block (i, f, g, o)
                    i_g = jax.nn.sigmoid(g_l[:, 0 * HPAD:1 * HPAD])
                    f_g = jax.nn.sigmoid(g_l[:, 1 * HPAD:2 * HPAD])
                    g_g = jnp.tanh(g_l[:, 2 * HPAD:3 * HPAD])
                    o_g = jax.nn.sigmoid(g_l[:, 3 * HPAD:4 * HPAD])
                    cn = f_g * c[l] + i_g * g_g                 # full-vreg VPU math
                    hn = o_g * jnp.tanh(cn)
                    new_c[l] = cn
                    new_h[l] = hn
                    if l == L - 1:
                        out_ref[t:t + 1, :] = hn                # lane-dense row store
            h, c = new_h, new_c

        for l in range(L):
            hn_ref[l:l + 1, :] = h[l]
            cn_ref[l:l + 1, :] = c[l]

    return kernel


# ----------------------------------------------------------------------------
# One-time parameter preparation: fold encoder, pack & pad weights.
# ----------------------------------------------------------------------------
def prepare_fused_params(params):
    L = params["num_layers"]
    H = params["hidden_size"]
    assert H <= HPAD, "gate padding scheme assumes hidden_size <= 128"
    Gp = NGATES * HPAD

    def pad_gate_cols(w):
        # (..., 4H) -> (..., Gp): gate g goes to lanes [g*HPAD : g*HPAD + H]
        out = jnp.zeros(w.shape[:-1] + (Gp,), jnp.float32)
        for g in range(NGATES):
            out = out.at[..., g * HPAD:g * HPAD + H].set(w[..., g * H:(g + 1) * H])
        return out

    # --- encoder folded into layer-0 input projection
    # TODO(synk): the PyTorch `encoder` is an arbitrary frozen module; modeled
    # here as a single frozen linear projection and folded into W_ih0.
    w_fused = params["w_enc"] @ params["wihT"][0]                        # (F, 4H)
    b_fused = params["b_enc"] @ params["wihT"][0] + params["bias"][0]    # (1, 4H)
    w_fused_p = pad_gate_cols(w_fused)                                   # (F, Gp)

    gbias = jnp.zeros((L, Gp), jnp.float32)
    gbias = gbias.at[0:1, :].set(pad_gate_cols(b_fused))
    for l in range(1, L):
        gbias = gbias.at[l:l + 1, :].set(pad_gate_cols(params["bias"][l]))

    # --- fused block-bidiagonal recurrent weight, padded:
    # row block l (= h_l) feeds layer-l gates via Whh_l and layer-(l+1) gates
    # via Wih_{l+1}.  Padded rows/cols are zero.
    w_rec = jnp.zeros((L * HPAD, L * Gp), jnp.float32)
    for l in range(L):
        whhT_p = pad_gate_cols(params["whhT"][l])                        # (H, Gp)
        w_rec = w_rec.at[l * HPAD:l * HPAD + H, l * Gp:(l + 1) * Gp].set(whhT_p)
        if l + 1 < L:
            wihT_p = pad_gate_cols(params["wihT"][l + 1])                # (H, Gp)
            w_rec = w_rec.at[l * HPAD:l * HPAD + H,
                             (l + 1) * Gp:(l + 2) * Gp].set(wihT_p)

    return {"w_fused": w_fused_p, "w_rec": w_rec, "gbias": gbias,
            "num_layers": L, "hidden_size": H}


# ----------------------------------------------------------------------------
# Full StateLSTM forward: one pallas_call
# ----------------------------------------------------------------------------
def state_lstm_forward(image, fused, h0, c0):
    S = image.shape[0]                                   # LSTM seq length (batch=1)
    L = fused["num_layers"]
    H = fused["hidden_size"]
    x_flat = image.reshape(S, -1).astype(jnp.float32)    # glue: flatten NCHW per image

    hc0 = jnp.zeros((2 * L, HPAD), jnp.float32)
    hc0 = hc0.at[0:L, 0:H].set(h0.reshape(L, H))
    hc0 = hc0.at[L:2 * L, 0:H].set(c0.reshape(L, H))

    vmem = pl.BlockSpec(memory_space=pltpu.MemorySpace.VMEM)
    kernel = make_state_lstm_kernel(L, S)

    out_p, hn_p, cn_p = pl.pallas_call(
        kernel,
        out_shape=(
            jax.ShapeDtypeStruct((S, HPAD), jnp.float32),
            jax.ShapeDtypeStruct((L, HPAD), jnp.float32),
            jax.ShapeDtypeStruct((L, HPAD), jnp.float32),
        ),
        in_specs=[vmem] * 5,
        out_specs=(vmem, vmem, vmem),
    )(x_flat, fused["w_fused"], fused["w_rec"], fused["gbias"], hc0)

    outs = out_p[None, :, :H]                            # (1, seq, hidden)
    return outs, hn_p[:, None, :H], cn_p[:, None, :H]


# ----------------------------------------------------------------------------
# Pure-JAX reference (original, unfused math) for correctness checking
# ----------------------------------------------------------------------------
def reference_forward(image, params, h0, c0):
    S = image.shape[0]
    H = params["hidden_size"]
    x_flat = image.reshape(S, -1).astype(jnp.float32)
    z = x_flat @ params["w_enc"] + params["b_enc"]
    x_seq = z
    h_list, c_list = [], []
    for l in range(params["num_layers"]):
        h = h0[l]
        c = c0[l]
        outs = []
        for t in range(S):
            gates = (x_seq[t:t + 1] @ params["wihT"][l]
                     + h @ params["whhT"][l] + params["bias"][l])
            i_g = jax.nn.sigmoid(gates[:, 0:H])
            f_g = jax.nn.sigmoid(gates[:, H:2 * H])
            g_g = jnp.tanh(gates[:, 2 * H:3 * H])
            o_g = jax.nn.sigmoid(gates[:, 3 * H:4 * H])
            c = f_g * c + i_g * g_g
            h = o_g * jnp.tanh(c)
            outs.append(h)
        x_seq = jnp.concatenate(outs, axis=0)
        h_list.append(h)
        c_list.append(c)
    return x_seq[None, :, :], jnp.stack(h_list, axis=0), jnp.stack(c_list, axis=0)


# ----------------------------------------------------------------------------
# Deterministic parameter init (synthetic; shapes from module __init__)
# ----------------------------------------------------------------------------
def make_params(key, in_features, latent_size, hidden_size, num_layers):
    ks = jax.random.split(key, 2 + 4 * num_layers)
    k = 1.0 / np.sqrt(hidden_size)
    params = {
        "latent_size": latent_size,
        "hidden_size": hidden_size,
        "num_layers": num_layers,
        "w_enc": jax.random.normal(ks[0], (in_features, latent_size), jnp.float32)
        / np.sqrt(in_features),
        "b_enc": jax.random.normal(ks[1], (1, latent_size), jnp.float32) * 0.01,
        "wihT": [],
        "whhT": [],
        "bias": [],
    }
    for l in range(num_layers):
        in_dim = latent_size if l == 0 else hidden_size
        kk = ks[2 + 4 * l: 2 + 4 * (l + 1)]
        w_ih = jax.random.uniform(kk[0], (4 * hidden_size, in_dim), jnp.float32, -k, k)
        w_hh = jax.random.uniform(kk[1], (4 * hidden_size, hidden_size), jnp.float32, -k, k)
        b_ih = jax.random.uniform(kk[2], (4 * hidden_size,), jnp.float32, -k, k)
        b_hh = jax.random.uniform(kk[3], (4 * hidden_size,), jnp.float32, -k, k)
        params["wihT"].append(w_ih.T)                      # (in_dim, 4H)
        params["whhT"].append(w_hh.T)                      # (H, 4H)
        params["bias"].append((b_ih + b_hh)[None, :])      # (1, 4H)
    return params


if __name__ == "__main__":
    # Small shapes consistent with the module
    B, C, Hh, Ww = 8, 4, 16, 16        # B images -> LSTM seq length = 8
    latent_size = 16
    hidden_size = 32
    num_layers = 2

    key = jax.random.PRNGKey(0)
    k_img, k_par, k_h, k_c = jax.random.split(key, 4)

    image = jax.random.normal(k_img, (B, C, Hh, Ww), jnp.float32)   # NCHW
    params = make_params(k_par, C * Hh * Ww, latent_size, hidden_size, num_layers)
    fused = prepare_fused_params(params)   # one-time weight fusion / packing

    # init_hs: randn hidden / cell states, shape (num_layers, batch=1, hidden)
    h0 = jax.random.normal(k_h, (num_layers, 1, hidden_size), jnp.float32)
    c0 = jax.random.normal(k_c, (num_layers, 1, hidden_size), jnp.float32)

    outs, h_n, c_n = state_lstm_forward(image, fused, h0, c0)
    outs = jax.block_until_ready(outs)

    ref_outs, ref_h, ref_c = reference_forward(image, params, h0, c0)
    assert outs.shape == (1, B, hidden_size), outs.shape
    assert h_n.shape == (num_layers, 1, hidden_size), h_n.shape
    assert c_n.shape == (num_layers, 1, hidden_size), c_n.shape
    np.testing.assert_allclose(np.asarray(outs), np.asarray(ref_outs), rtol=1e-3, atol=1e-3)
    np.testing.assert_allclose(np.asarray(h_n), np.asarray(ref_h), rtol=1e-3, atol=1e-3)
    np.testing.assert_allclose(np.asarray(c_n), np.asarray(ref_c), rtol=1e-3, atol=1e-3)

    print("KERNEL_OK")
</pallas_src>

<mosaic_0001>
module attributes {stable_mosaic.version = 11 : i64} {
  func.func @kernel(%arg0: memref<8x1024xf32, #tpu.memory_space<vmem>>, %arg1: memref<1024x512xf32, #tpu.memory_space<vmem>>, %arg2: memref<256x1024xf32, #tpu.memory_space<vmem>>, %arg3: memref<2x512xf32, #tpu.memory_space<vmem>>, %arg4: memref<4x128xf32, #tpu.memory_space<vmem>>, %arg5: memref<8x128xf32, #tpu.memory_space<vmem>>, %arg6: memref<2x128xf32, #tpu.memory_space<vmem>>, %arg7: memref<2x128xf32, #tpu.memory_space<vmem>>) attributes {dimension_semantics = [], scalar_prefetch = 0 : i64, scratch_operands = 0 : i64, tpu.core_type = #tpu.core_type<tc>} {
    %c0 = arith.constant 0 : index
    %c0_0 = arith.constant 0 : index
    %0 = vector.load %arg0[%c0, %c0_0] : memref<8x1024xf32, #tpu.memory_space<vmem>>, vector<8x1024xf32>
    %c0_1 = arith.constant 0 : index
    %c0_2 = arith.constant 0 : index
    %1 = vector.load %arg1[%c0_1, %c0_2] : memref<1024x512xf32, #tpu.memory_space<vmem>>, vector<1024x512xf32>
    %cst = arith.constant dense<0.000000e+00> : vector<8x512xf32>
    %2 = tpu.matmul %0, %1, %cst {dimension_numbers = #tpu.dot_dimension_numbers<[1], [0], [0], [1], [0, 0, 1, 1], [], []>} : vector<8x1024xf32>, vector<1024x512xf32>, vector<8x512xf32> -> vector<8x512xf32>
    %c0_3 = arith.constant 0 : index
    %c0_4 = arith.constant 0 : index
    %3 = vector.load %arg3[%c0_3, %c0_4] : memref<2x512xf32, #tpu.memory_space<vmem>>, vector<1x512xf32>
    %4 = vector.broadcast %3 : vector<1x512xf32> to vector<8x512xf32>
    %5 = arith.addf %2, %4 : vector<8x512xf32>
    %c0_5 = arith.constant 0 : index
    %c0_6 = arith.constant 0 : index
    %6 = vector.load %arg2[%c0_5, %c0_6] : memref<256x1024xf32, #tpu.memory_space<vmem>>, vector<256x1024xf32>
    %c0_7 = arith.constant 0 : index
    %c0_8 = arith.constant 0 : index
    %7 = vector.load %arg4[%c0_7, %c0_8] : memref<4x128xf32, #tpu.memory_space<vmem>>, vector<1x128xf32>
    %c1 = arith.constant 1 : index
    %c0_9 = arith.constant 0 : index
    %8 = vector.load %arg4[%c1, %c0_9] : memref<4x128xf32, #tpu.memory_space<vmem>>, vector<1x128xf32>
    %c2 = arith.constant 2 : index
    %c0_10 = arith.constant 0 : index
    %9 = vector.load %arg4[%c2, %c0_10] : memref<4x128xf32, #tpu.memory_space<vmem>>, vector<1x128xf32>
    %c3 = arith.constant 3 : index
    %c0_11 = arith.constant 0 : index
    %10 = vector.load %arg4[%c3, %c0_11] : memref<4x128xf32, #tpu.memory_space<vmem>>, vector<1x128xf32>
    %11 = tpu.concatenate %7, %8 in 1 : vector<1x128xf32>, vector<1x128xf32> -> vector<1x256xf32>
    %cst_12 = arith.constant dense<0.000000e+00> : vector<1x1024xf32>
    %12 = tpu.matmul %11, %6, %cst_12 {dimension_numbers = #tpu.dot_dimension_numbers<[1], [0], [0], [1], [0, 0, 1, 1], [], []>} : vector<1x256xf32>, vector<256x1024xf32>, vector<1x1024xf32> -> vector<1x1024xf32>
    %13 = vector.extract_strided_slice %12 {offsets = [0, 0], sizes = [1, 512], strides = [1, 1]} : vector<1x1024xf32> to vector<1x512xf32>
    %14 = vector.extract_strided_slice %5 {offsets = [0, 0], sizes = [1, 512], strides = [1, 1]} : vector<8x512xf32> to vector<1x512xf32>
    %15 = arith.addf %13, %14 : vector<1x512xf32>
    %16 = vector.extract_strided_slice %15 {offsets = [0, 0], sizes = [1, 128], strides = [1, 1]} : vector<1x512xf32> to vector<1x128xf32>
    %17 = arith.negf %16 : vector<1x128xf32>
    %18 = math.exp %17 : vector<1x128xf32>
    %cst_13 = arith.constant 1.000000e+00 : f32
    %19 = vector.broadcast %cst_13 : f32 to vector<1x128xf32>
    %20 = arith.addf %19, %18 : vector<1x128xf32>
    %21 = arith.divf %19, %20 : vector<1x128xf32>
    %22 = vector.extract_strided_slice %15 {offsets = [0, 128], sizes = [1, 128], strides = [1, 1]} : vector<1x512xf32> to vector<1x128xf32>
    %23 = arith.negf %22 : vector<1x128xf32>
    %24 = math.exp %23 : vector<1x128xf32>
    %cst_14 = arith.constant 1.000000e+00 : f32
    %25 = vector.broadcast %cst_14 : f32 to vector<1x128xf32>
    %26 = arith.addf %25, %24 : vector<1x128xf32>
    %27 = arith.divf %25, %26 : vector<1x128xf32>
    %28 = vector.extract_strided_slice %15 {offsets = [0, 256], sizes = [1, 128], strides = [1, 1]} : vector<1x512xf32> to vector<1x128xf32>
    %29 = math.tanh %28 : vector<1x128xf32>
    %30 = vector.extract_strided_slice %15 {offsets = [0, 384], sizes = [1, 128], strides = [1, 1]} : vector<1x512xf32> to vector<1x128xf32>
    %31 = arith.negf %30 : vector<1x128xf32>
    %32 = math.exp %31 : vector<1x128xf32>
    %cst_15 = arith.constant 1.000000e+00 : f32
    %33 = vector.broadcast %cst_15 : f32 to vector<1x128xf32>
    %34 = arith.addf %33, %32 : vector<1x128xf32>
    %35 = arith.divf %33, %34 : vector<1x128xf32>
    %36 = arith.mulf %27, %9 : vector<1x128xf32>
    %37 = arith.mulf %21, %29 : vector<1x128xf32>
    %38 = arith.addf %36, %37 : vector<1x128xf32>
    %39 = math.tanh %38 : vector<1x128xf32>
    %40 = arith.mulf %35, %39 : vector<1x128xf32>
    %41 = tpu.concatenate %40, %8 in 1 : vector<1x128xf32>, vector<1x128xf32> -> vector<1x256xf32>
    %cst_16 = arith.constant dense<0.000000e+00> : vector<1x1024xf32>
    %42 = tpu.matmul %41, %6, %cst_16 {dimension_numbers = #tpu.dot_dimension_numbers<[1], [0], [0], [1], [0, 0, 1, 1], [], []>} : vector<1x256xf32>, vector<256x1024xf32>, vector<1x1024xf32> -> vector<1x1024xf32>
    %43 = vector.extract_strided_slice %42 {offsets = [0, 0], sizes = [1, 512], strides = [1, 1]} : vector<1x1024xf32> to vector<1x512xf32>
    %44 = vector.extract_strided_slice %5 {offsets = [1, 0], sizes = [1, 512], strides = [1, 1]} : vector<8x512xf32> to vector<1x512xf32>
    %45 = arith.addf %43, %44 : vector<1x512xf32>
    %46 = vector.extract_strided_slice %45 {offsets = [0, 0], sizes = [1, 128], strides = [1, 1]} : vector<1x512xf32> to vector<1x128xf32>
    %47 = arith.negf %46 : vector<1x128xf32>
    %48 = math.exp %47 : vector<1x128xf32>
    %cst_17 = arith.constant 1.000000e+00 : f32
    %49 = vector.broadcast %cst_17 : f32 to vector<1x128xf32>
    %50 = arith.addf %49, %48 : vector<1x128xf32>
    %51 = arith.divf %49, %50 : vector<1x128xf32>
    %52 = vector.extract_strided_slice %45 {offsets = [0, 128], sizes = [1, 128], strides = [1, 1]} : vector<1x512xf32> to vector<1x128xf32>
    %53 = arith.negf %52 : vector<1x128xf32>
    %54 = math.exp %53 : vector<1x128xf32>
    %cst_18 = arith.constant 1.000000e+00 : f32
    %55 = vector.broadcast %cst_18 : f32 to vector<1x128xf32>
    %56 = arith.addf %55, %54 : vector<1x128xf32>
    %57 = arith.divf %55, %56 : vector<1x128xf32>
    %58 = vector.extract_strided_slice %45 {offsets = [0, 256], sizes = [1, 128], strides = [1, 1]} : vector<1x512xf32> to vector<1x128xf32>
    %59 = math.tanh %58 : vector<1x128xf32>
    %60 = vector.extract_strided_slice %45 {offsets = [0, 384], sizes = [1, 128], strides = [1, 1]} : vector<1x512xf32> to vector<1x128xf32>
    %61 = arith.negf %60 : vector<1x128xf32>
    %62 = math.exp %61 : vector<1x128xf32>
    %cst_19 = arith.constant 1.000000e+00 : f32
    %63 = vector.broadcast %cst_19 : f32 to vector<1x128xf32>
    %64 = arith.addf %63, %62 : vector<1x128xf32>
    %65 = arith.divf %63, %64 : vector<1x128xf32>
    %66 = arith.mulf %57, %38 : vector<1x128xf32>
    %67 = arith.mulf %51, %59 : vector<1x128xf32>
    %68 = arith.addf %66, %67 : vector<1x128xf32>
    %69 = math.tanh %68 : vector<1x128xf32>
    %70 = arith.mulf %65, %69 : vector<1x128xf32>
    %71 = vector.extract_strided_slice %42 {offsets = [0, 512], sizes = [1, 512], strides = [1, 1]} : vector<1x1024xf32> to vector<1x512xf32>
    %c1_20 = arith.constant 1 : index
    %c0_21 = arith.constant 0 : index
    %72 = vector.load %arg3[%c1_20, %c0_21] : memref<2x512xf32, #tpu.memory_space<vmem>>, vector<1x512xf32>
    %73 = arith.addf %71, %72 : vector<1x512xf32>
    %74 = vector.extract_strided_slice %73 {offsets = [0, 0], sizes = [1, 128], strides = [1, 1]} : vector<1x512xf32> to vector<1x128xf32>
    %75 = arith.negf %74 : vector<1x128xf32>
    %76 = math.exp %75 : vector<1x128xf32>
    %cst_22 = arith.constant 1.000000e+00 : f32
    %77 = vector.broadcast %cst_22 : f32 to vector<1x128xf32>
    %78 = arith.addf %77, %76 : vector<1x128xf32>
    %79 = arith.divf %77, %78 : vector<1x128xf32>
    %80 = vector.extract_strided_slice %73 {offsets = [0, 128], sizes = [1, 128], strides = [1, 1]} : vector<1x512xf32> to vector<1x128xf32>
    %81 = arith.negf %80 : vector<1x128xf32>
    %82 = math.exp %81 : vector<1x128xf32>
    %cst_23 = arith.constant 1.000000e+00 : f32
    %83 = vector.broadcast %cst_23 : f32 to vector<1x128xf32>
    %84 = arith.addf %83, %82 : vector<1x128xf32>
    %85 = arith.divf %83, %84 : vector<1x128xf32>
    %86 = vector.extract_strided_slice %73 {offsets = [0, 256], sizes = [1, 128], strides = [1, 1]} : vector<1x512xf32> to vector<1x128xf32>
    %87 = math.tanh %86 : vector<1x128xf32>
    %88 = vector.extract_strided_slice %73 {offsets = [0, 384], sizes = [1, 128], strides = [1, 1]} : vector<1x512xf32> to vector<1x128xf32>
    %89 = arith.negf %88 : vector<1x128xf32>
    %90 = math.exp %89 : vector<1x128xf32>
    %cst_24 = arith.constant 1.000000e+00 : f32
    %91 = vector.broadcast %cst_24 : f32 to vector<1x128xf32>
    %92 = arith.addf %91, %90 : vector<1x128xf32>
    %93 = arith.divf %91, %92 : vector<1x128xf32>
    %94 = arith.mulf %85, %10 : vector<1x128xf32>
    %95 = arith.mulf %79, %87 : vector<1x128xf32>
    %96 = arith.addf %94, %95 : vector<1x128xf32>
    %97 = math.tanh %96 : vector<1x128xf32>
    %98 = arith.mulf %93, %97 : vector<1x128xf32>
    %c0_25 = arith.constant 0 : index
    %c0_26 = arith.constant 0 : index
    %99 = vector.load %arg5[%c0_25, %c0_26] : memref<8x128xf32, #tpu.memory_space<vmem>>, vector<1x128xf32>
    tpu.vector_store %arg5[%c0_25, %c0_26], %98 {strides = array<i32>} : memref<8x128xf32, #tpu.memory_space<vmem>>, vector<1x128xf32>,
    %100 = tpu.concatenate %70, %98 in 1 : vector<1x128xf32>, vector<1x128xf32> -> vector<1x256xf32>
    %cst_27 = arith.constant dense<0.000000e+00> : vector<1x1024xf32>
    %101 = tpu.matmul %100, %6, %cst_27 {dimension_numbers = #tpu.dot_dimension_numbers<[1], [0], [0], [1], [0, 0, 1, 1], [], []>} : vector<1x256xf32>, vector<256x1024xf32>, vector<1x1024xf32> -> vector<1x1024xf32>
    %102 = vector.extract_strided_slice %101 {offsets = [0, 0], sizes = [1, 512], strides = [1, 1]} : vector<1x1024xf32> to vector<1x512xf32>
    %103 = vector.extract_strided_slice %5 {offsets = [2, 0], sizes = [1, 512], strides = [1, 1]} : vector<8x512xf32> to vector<1x512xf32>
    %104 = arith.addf %102, %103 : vector<1x512xf32>
    %105 = vector.extract_strided_slice %104 {offsets = [0, 0], sizes = [1, 128], strides = [1, 1]} : vector<1x512xf32> to vector<1x128xf32>
    %106 = arith.negf %105 : vector<1x128xf32>
    %107 = math.exp %106 : vector<1x128xf32>
    %cst_28 = arith.constant 1.000000e+00 : f32
    %108 = vector.broadcast %cst_28 : f32 to vector<1x128xf32>
    %109 = arith.addf %108, %107 : vector<1x128xf32>
    %110 = arith.divf %108, %109 : vector<1x128xf32>
    %111 = vector.extract_strided_slice %104 {offsets = [0, 128], sizes = [1, 128], strides = [1, 1]} : vector<1x512xf32> to vector<1x128xf32>
    %112 = arith.negf %111 : vector<1x128xf32>
    %113 = math.exp %112 : vector<1x128xf32>
    %cst_29 = arith.constant 1.000000e+00 : f32
    %114 = vector.broadcast %cst_29 : f32 to vector<1x128xf32>
    %115 = arith.addf %114, %113 : vector<1x128xf32>
    %116 = arith.divf %114, %115 : vector<1x128xf32>
    %117 = vector.extract_strided_slice %104 {offsets = [0, 256], sizes = [1, 128], strides = [1, 1]} : vector<1x512xf32> to vector<1x128xf32>
    %118 = math.tanh %117 : vector<1x128xf32>
    %119 = vector.extract_strided_slice %104 {offsets = [0, 384], sizes = [1, 128], strides = [1, 1]} : vector<1x512xf32> to vector<1x128xf32>
    %120 = arith.negf %119 : vector<1x128xf32>
    %121 = math.exp %120 : vector<1x128xf32>
    %cst_30 = arith.constant 1.000000e+00 : f32
    %122 = vector.broadcast %cst_30 : f32 to vector<1x128xf32>
    %123 = arith.addf %122, %121 : vector<1x128xf32>
    %124 = arith.divf %122, %123 : vector<1x128xf32>
    %125 = arith.mulf %116, %68 : vector<1x128xf32>
    %126 = arith.mulf %110, %118 : vector<1x128xf32>
    %127 = arith.addf %125, %126 : vector<1x128xf32>
    %128 = math.tanh %127 : vector<1x128xf32>
    %129 = arith.mulf %124, %128 : vector<1x128xf32>
    %130 = vector.extract_strided_slice %101 {offsets = [0, 512], sizes = [1, 512], strides = [1, 1]} : vector<1x1024xf32> to vector<1x512xf32>
    %c1_31 = arith.constant 1 : index
    %c0_32 = arith.constant 0 : index
    %131 = vector.load %arg3[%c1_31, %c0_32] : memref<2x512xf32, #tpu.memory_space<vmem>>, vector<1x512xf32>
    %132 = arith.addf %130, %131 : vector<1x512xf32>
    %133 = vector.extract_strided_slice %132 {offsets = [0, 0], sizes = [1, 128], strides = [1, 1]} : vector<1x512xf32> to vector<1x128xf32>
    %134 = arith.negf %133 : vector<1x128xf32>
    %135 = math.exp %134 : vector<1x128xf32>
    %cst_33 = arith.constant 1.000000e+00 : f32
    %136 = vector.broadcast %cst_33 : f32 to vector<1x128xf32>
    %137 = arith.addf %136, %135 : vector<1x128xf32>
    %138 = arith.divf %136, %137 : vector<1x128xf32>
    %139 = vector.extract_strided_slice %132 {offsets = [0, 128], sizes = [1, 128], strides = [1, 1]} : vector<1x512xf32> to vector<1x128xf32>
    %140 = arith.negf %139 : vector<1x128xf32>
    %141 = math.exp %140 : vector<1x128xf32>
    %cst_34 = arith.constant 1.000000e+00 : f32
    %142 = vector.broadcast %cst_34 : f32 to vector<1x128xf32>
    %143 = arith.addf %142, %141 : vector<1x128xf32>
    %144 = arith.divf %142, %143 : vector<1x128xf32>
    %145 = vector.extract_strided_slice %132 {offsets = [0, 256], sizes = [1, 128], strides = [1, 1]} : vector<1x512xf32> to vector<1x128xf32>
    %146 = math.tanh %145 : vector<1x128xf32>
    %147 = vector.extract_strided_slice %132 {offsets = [0, 384], sizes = [1, 128], strides = [1, 1]} : vector<1x512xf32> to vector<1x128xf32>
    %148 = arith.negf %147 : vector<1x128xf32>
    %149 = math.exp %148 : vector<1x128xf32>
    %cst_35 = arith.constant 1.000000e+00 : f32
    %150 = vector.broadcast %cst_35 : f32 to vector<1x128xf32>
    %151 = arith.addf %150, %149 : vector<1x128xf32>
    %152 = arith.divf %150, %151 : vector<1x128xf32>
    %153 = arith.mulf %144, %96 : vector<1x128xf32>
    %154 = arith.mulf %138, %146 : vector<1x128xf32>
    %155 = arith.addf %153, %154 : vector<1x128xf32>
    %156 = math.tanh %155 : vector<1x128xf32>
    %157 = arith.mulf %152, %156 : vector<1x128xf32>
    %c1_36 = arith.constant 1 : index
    %c0_37 = arith.constant 0 : index
    %158 = vector.load %arg5[%c1_36, %c0_37] : memref<8x128xf32, #tpu.memory_space<vmem>>, vector<1x128xf32>
    tpu.vector_store %arg5[%c1_36, %c0_37], %157 {strides = array<i32>} : memref<8x128xf32, #tpu.memory_space<vmem>>, vector<1x128xf32>,
    %159 = tpu.concatenate %129, %157 in 1 : vector<1x128xf32>, vector<1x128xf32> -> vector<1x256xf32>
    %cst_38 = arith.constant dense<0.000000e+00> : vector<1x1024xf32>
    %160 = tpu.matmul %159, %6, %cst_38 {dimension_numbers = #tpu.dot_dimension_numbers<[1], [0], [0], [1], [0, 0, 1, 1], [], []>} : vector<1x256xf32>, vector<256x1024xf32>, vector<1x1024xf32> -> vector<1x1024xf32>
    %161 = vector.extract_strided_slice %160 {offsets = [0, 0], sizes = [1, 512], strides = [1, 1]} : vector<1x1024xf32> to vector<1x512xf32>
    %162 = vector.extract_strided_slice %5 {offsets = [3, 0], sizes = [1, 512], strides = [1, 1]} : vector<8x512xf32> to vector<1x512xf32>
    %163 = arith.addf %161, %162 : vector<1x512xf32>
    %164 = vector.extract_strided_slice %163 {offsets = [0, 0], sizes = [1, 128], strides = [1, 1]} : vector<1x512xf32> to vector<1x128xf32>
    %165 = arith.negf %164 : vector<1x128xf32>
    %166 = math.exp %165 : vector<1x128xf32>
    %cst_39 = arith.constant 1.000000e+00 : f32
    %167 = vector.broadcast %cst_39 : f32 to vector<1x128xf32>
    %168 = arith.addf %167, %166 : vector<1x128xf32>
    %169 = arith.divf %167, %168 : vector<1x128xf32>
    %170 = vector.extract_strided_slice %163 {offsets = [0, 128], sizes = [1, 128], strides = [1, 1]} : vector<1x512xf32> to vector<1x128xf32>
    %171 = arith.negf %170 : vector<1x128xf32>
    %172 = math.exp %171 : vector<1x128xf32>
    %cst_40 = arith.constant 1.000000e+00 : f32
    %173 = vector.broadcast %cst_40 : f32 to vector<1x128xf32>
    %174 = arith.addf %173, %172 : vector<1x128xf32>
    %175 = arith.divf %173, %174 : vector<1x128xf32>
    %176 = vector.extract_strided_slice %163 {offsets = [0, 256], sizes = [1, 128], strides = [1, 1]} : vector<1x512xf32> to vector<1x128xf32>
    %177 = math.tanh %176 : vector<1x128xf32>
    %178 = vector.extract_strided_slice %163 {offsets = [0, 384], sizes = [1, 128], strides = [1, 1]} : vector<1x512xf32> to vector<1x128xf32>
    %179 = arith.negf %178 : vector<1x128xf32>
    %180 = math.exp %179 : vector<1x128xf32>
    %cst_41 = arith.constant 1.000000e+00 : f32
    %181 = vector.broadcast %cst_41 : f32 to vector<1x128xf32>
    %182 = arith.addf %181, %180 : vector<1x128xf32>
    %183 = arith.divf %181, %182 : vector<1x128xf32>
    %184 = arith.mulf %175, %127 : vector<1x128xf32>
    %185 = arith.mulf %169, %177 : vector<1x128xf32>
    %186 = arith.addf %184, %185 : vector<1x128xf32>
    %187 = math.tanh %186 : vector<1x128xf32>
    %188 = arith.mulf %183, %187 : vector<1x128xf32>
    %189 = vector.extract_strided_slice %160 {offsets = [0, 512], sizes = [1, 512], strides = [1, 1]} : vector<1x1024xf32> to vector<1x512xf32>
    %c1_42 = arith.constant 1 : index
    %c0_43 = arith.constant 0 : index
    %190 = vector.load %arg3[%c1_42, %c0_43] : memref<2x512xf32, #tpu.memory_space<vmem>>, vector<1x512xf32>
    %191 = arith.addf %189, %190 : vector<1x512xf32>
    %192 = vector.extract_strided_slice %191 {offsets = [0, 0], sizes = [1, 128], strides = [1, 1]} : vector<1x512xf32> to vector<1x128xf32>
    %193 = arith.negf %192 : vector<1x128xf32>
    %194 = math.exp %193 : vector<1x128xf32>
    %cst_44 = arith.constant 1.000000e+00 : f32
    %195 = vector.broadcast %cst_44 : f32 to vector<1x128xf32>
    %196 = arith.addf %195, %194 : vector<1x128xf32>
    %197 = arith.divf %195, %196 : vector<1x128xf32>
    %198 = vector.extract_strided_slice %191 {offsets = [0, 128], sizes = [1, 128], strides = [1, 1]} : vector<1x512xf32> to vector<1x128xf32>
    %199 = arith.negf %198 : vector<1x128xf32>
    %200 = math.exp %199 : vector<1x128xf32>
    %cst_45 = arith.constant 1.000000e+00 : f32
    %201 = vector.broadcast %cst_45 : f32 to vector<1x128xf32>
    %202 = arith.addf %201, %200 : vector<1x128xf32>
    %203 = arith.divf %201, %202 : vector<1x128xf32>
    %204 = vector.extract_strided_slice %191 {offsets = [0, 256], sizes = [1, 128], strides = [1, 1]} : vector<1x512xf32> to vector<1x128xf32>
    %205 = math.tanh %204 : vector<1x128xf32>
    %206 = vector.extract_strided_slice %191 {offsets = [0, 384], sizes = [1, 128], strides = [1, 1]} : vector<1x512xf32> to vector<1x128xf32>
    %207 = arith.negf %206 : vector<1x128xf32>
    %208 = math.exp %207 : vector<1x128xf32>
    %cst_46 = arith.constant 1.000000e+00 : f32
    %209 = vector.broadcast %cst_46 : f32 to vector<1x128xf32>
    %210 = arith.addf %209, %208 : vector<1x128xf32>
    %211 = arith.divf %209, %210 : vector<1x128xf32>
    %212 = arith.mulf %203, %155 : vector<1x128xf32>
    %213 = arith.mulf %197, %205 : vector<1x128xf32>
    %214 = arith.addf %212, %213 : vector<1x128xf32>
    %215 = math.tanh %214 : vector<1x128xf32>
    %216 = arith.mulf %211, %215 : vector<1x128xf32>
    %c2_47 = arith.constant 2 : index
    %c0_48 = arith.constant 0 : index
    %217 = vector.load %arg5[%c2_47, %c0_48] : memref<8x128xf32, #tpu.memory_space<vmem>>, vector<1x128xf32>
    tpu.vector_store %arg5[%c2_47, %c0_48], %216 {strides = array<i32>} : memref<8x128xf32, #tpu.memory_space<vmem>>, vector<1x128xf32>,
    %218 = tpu.concatenate %188, %216 in 1 : vector<1x128xf32>, vector<1x128xf32> -> vector<1x256xf32>
    %cst_49 = arith.constant dense<0.000000e+00> : vector<1x1024xf32>
    %219 = tpu.matmul %218, %6, %cst_49 {dimension_numbers = #tpu.dot_dimension_numbers<[1], [0], [0], [1], [0, 0, 1, 1], [], []>} : vector<1x256xf32>, vector<256x1024xf32>, vector<1x1024xf32> -> vector<1x1024xf32>
    %220 = vector.extract_strided_slice %219 {offsets = [0, 0], sizes = [1, 512], strides = [1, 1]} : vector<1x1024xf32> to vector<1x512xf32>
    %221 = vector.extract_strided_slice %5 {offsets = [4, 0], sizes = [1, 512], strides = [1, 1]} : vector<8x512xf32> to vector<1x512xf32>
    %222 = arith.addf %220, %221 : vector<1x512xf32>
    %223 = vector.extract_strided_slice %222 {offsets = [0, 0], sizes = [1, 128], strides = [1, 1]} : vector<1x512xf32> to vector<1x128xf32>
    %224 = arith.negf %223 : vector<1x128xf32>
    %225 = math.exp %224 : vector<1x128xf32>
    %cst_50 = arith.constant 1.000000e+00 : f32
    %226 = vector.broadcast %cst_50 : f32 to vector<1x128xf32>
    %227 = arith.addf %226, %225 : vector<1x128xf32>
    %228 = arith.divf %226, %227 : vector<1x128xf32>
    %229 = vector.extract_strided_slice %222 {offsets = [0, 128], sizes = [1, 128], strides = [1, 1]} : vector<1x512xf32> to vector<1x128xf32>
    %230 = arith.negf %229 : vector<1x128xf32>
    %231 = math.exp %230 : vector<1x128xf32>
    %cst_51 = arith.constant 1.000000e+00 : f32
    %232 = vector.broadcast %cst_51 : f32 to vector<1x128xf32>
    %233 = arith.addf %232, %231 : vector<1x128xf32>
    %234 = arith.divf %232, %233 : vector<1x128xf32>
    %235 = vector.extract_strided_slice %222 {offsets = [0, 256], sizes = [1, 128], strides = [1, 1]} : vector<1x512xf32> to vector<1x128xf32>
    %236 = math.tanh %235 : vector<1x128xf32>
    %237 = vector.extract_strided_slice %222 {offsets = [0, 384], sizes = [1, 128], strides = [1, 1]} : vector<1x512xf32> to vector<1x128xf32>
    %238 = arith.negf %237 : vector<1x128xf32>
    %239 = math.exp %238 : vector<1x128xf32>
    %cst_52 = arith.constant 1.000000e+00 : f32
    %240 = vector.broadcast %cst_52 : f32 to vector<1x128xf32>
    %241 = arith.addf %240, %239 : vector<1x128xf32>
    %242 = arith.divf %240, %241 : vector<1x128xf32>
    %243 = arith.mulf %234, %186 : vector<1x128xf32>
    %244 = arith.mulf %228, %236 : vector<1x128xf32>
    %245 = arith.addf %243, %244 : vector<1x128xf32>
    %246 = math.tanh %245 : vector<1x128xf32>
    %247 = arith.mulf %242, %246 : vector<1x128xf32>
    %248 = vector.extract_strided_slice %219 {offsets = [0, 512], sizes = [1, 512], strides = [1, 1]} : vector<1x1024xf32> to vector<1x512xf32>
    %c1_53 = arith.constant 1 : index
    %c0_54 = arith.constant 0 : index
    %249 = vector.load %arg3[%c1_53, %c0_54] : memref<2x512xf32, #tpu.memory_space<vmem>>, vector<1x512xf32>
    %250 = arith.addf %248, %249 : vector<1x512xf32>
    %251 = vector.extract_strided_slice %250 {offsets = [0, 0], sizes = [1, 128], strides = [1, 1]} : vector<1x512xf32> to vector<1x128xf32>
    %252 = arith.negf %251 : vector<1x128xf32>
    %253 = math.exp %252 : vector<1x128xf32>
    %cst_55 = arith.constant 1.000000e+00 : f32
    %254 = vector.broadcast %cst_55 : f32 to vector<1x128xf32>
    %255 = arith.addf %254, %253 : vector<1x128xf32>
    %256 = arith.divf %254, %255 : vector<1x128xf32>
    %257 = vector.extract_strided_slice %250 {offsets = [0, 128], sizes = [1, 128], strides = [1, 1]} : vector<1x512xf32> to vector<1x128xf32>
    %258 = arith.negf %257 : vector<1x128xf32>
    %259 = math.exp %258 : vector<1x128xf32>
    %cst_56 = arith.constant 1.000000e+00 : f32
    %260 = vector.broadcast %cst_56 : f32 to vector<1x128xf32>
    %261 = arith.addf %260, %259 : vector<1x128xf32>
    %262 = arith.divf %260, %261 : vector<1x128xf32>
    %263 = vector.extract_strided_slice %250 {offsets = [0, 256], sizes = [1, 128], strides = [1, 1]} : vector<1x512xf32> to vector<1x128xf32>
    %264 = math.tanh %263 : vector<1x128xf32>
    %265 = vector.extract_strided_slice %250 {offsets = [0, 384], sizes = [1, 128], strides = [1, 1]} : vector<1x512xf32> to vector<1x128xf32>
    %266 = arith.negf %265 : vector<1x128xf32>
    %267 = math.exp %266 : vector<1x128xf32>
    %cst_57 = arith.constant 1.000000e+00 : f32
    %268 = vector.broadcast %cst_57 : f32 to vector<1x128xf32>
    %269 = arith.addf %268, %267 : vector<1x128xf32>
    %270 = arith.divf %268, %269 : vector<1x128xf32>
    %271 = arith.mulf %262, %214 : vector<1x128xf32>
    %272 = arith.mulf %256, %264 : vector<1x128xf32>
    %273 = arith.addf %271, %272 : vector<1x128xf32>
    %274 = math.tanh %273 : vector<1x128xf32>
    %275 = arith.mulf %270, %274 : vector<1x128xf32>
    %c3_58 = arith.constant 3 : index
    %c0_59 = arith.constant 0 : index
    %276 = vector.load %arg5[%c3_58, %c0_59] : memref<8x128xf32, #tpu.memory_space<vmem>>, vector<1x128xf32>
    tpu.vector_store %arg5[%c3_58, %c0_59], %275 {strides = array<i32>} : memref<8x128xf32, #tpu.memory_space<vmem>>, vector<1x128xf32>,
    %277 = tpu.concatenate %247, %275 in 1 : vector<1x128xf32>, vector<1x128xf32> -> vector<1x256xf32>
    %cst_60 = arith.constant dense<0.000000e+00> : vector<1x1024xf32>
    %278 = tpu.matmul %277, %6, %cst_60 {dimension_numbers = #tpu.dot_dimension_numbers<[1], [0], [0], [1], [0, 0, 1, 1], [], []>} : vector<1x256xf32>, vector<256x1024xf32>, vector<1x1024xf32> -> vector<1x1024xf32>
    %279 = vector.extract_strided_slice %278 {offsets = [0, 0], sizes = [1, 512], strides = [1, 1]} : vector<1x1024xf32> to vector<1x512xf32>
    %280 = vector.extract_strided_slice %5 {offsets = [5, 0], sizes = [1, 512], strides = [1, 1]} : vector<8x512xf32> to vector<1x512xf32>
    %281 = arith.addf %279, %280 : vector<1x512xf32>
    %282 = vector.extract_strided_slice %281 {offsets = [0, 0], sizes = [1, 128], strides = [1, 1]} : vector<1x512xf32> to vector<1x128xf32>
    %283 = arith.negf %282 : vector<1x128xf32>
    %284 = math.exp %283 : vector<1x128xf32>
    %cst_61 = arith.constant 1.000000e+00 : f32
    %285 = vector.broadcast %cst_61 : f32 to vector<1x128xf32>
    %286 = arith.addf %285, %284 : vector<1x128xf32>
    %287 = arith.divf %285, %286 : vector<1x128xf32>
    %288 = vector.extract_strided_slice %281 {offsets = [0, 128], sizes = [1, 128], strides = [1, 1]} : vector<1x512xf32> to vector<1x128xf32>
    %289 = arith.negf %288 : vector<1x128xf32>
    %290 = math.exp %289 : vector<1x128xf32>
    %cst_62 = arith.constant 1.000000e+00 : f32
    %291 = vector.broadcast %cst_62 : f32 to vector<1x128xf32>
    %292 = arith.addf %291, %290 : vector<1x128xf32>
    %293 = arith.divf %291, %292 : vector<1x128xf32>
    %294 = vector.extract_strided_slice %281 {offsets = [0, 256], sizes = [1, 128], strides = [1, 1]} : vector<1x512xf32> to vector<1x128xf32>
    %295 = math.tanh %294 : vector<1x128xf32>
    %296 = vector.extract_strided_slice %281 {offsets = [0, 384], sizes = [1, 128], strides = [1, 1]} : vector<1x512xf32> to vector<1x128xf32>
    %297 = arith.negf %296 : vector<1x128xf32>
    %298 = math.exp %297 : vector<1x128xf32>
    %cst_63 = arith.constant 1.000000e+00 : f32
    %299 = vector.broadcast %cst_63 : f32 to vector<1x128xf32>
    %300 = arith.addf %299, %298 : vector<1x128xf32>
    %301 = arith.divf %299, %300 : vector<1x128xf32>
    %302 = arith.mulf %293, %245 : vector<1x128xf32>
    %303 = arith.mulf %287, %295 : vector<1x128xf32>
    %304 = arith.addf %302, %303 : vector<1x128xf32>
    %305 = math.tanh %304 : vector<1x128xf32>
    %306 = arith.mulf %301, %305 : vector<1x128xf32>
    %307 = vector.extract_strided_slice %278 {offsets = [0, 512], sizes = [1, 512], strides = [1, 1]} : vector<1x1024xf32> to vector<1x512xf32>
    %c1_64 = arith.constant 1 : index
    %c0_65 = arith.constant 0 : index
    %308 = vector.load %arg3[%c1_64, %c0_65] : memref<2x512xf32, #tpu.memory_space<vmem>>, vector<1x512xf32>
    %309 = arith.addf %307, %308 : vector<1x512xf32>
    %310 = vector.extract_strided_slice %309 {offsets = [0, 0], sizes = [1, 128], strides = [1, 1]} : vector<1x512xf32> to vector<1x128xf32>
    %311 = arith.negf %310 : vector<1x128xf32>
    %312 = math.exp %311 : vector<1x128xf32>
    %cst_66 = arith.constant 1.000000e+00 : f32
    %313 = vector.broadcast %cst_66 : f32 to vector<1x128xf32>
    %314 = arith.addf %313, %312 : vector<1x128xf32>
    %315 = arith.divf %313, %314 : vector<1x128xf32>
    %316 = vector.extract_strided_slice %309 {offsets = [0, 128], sizes = [1, 128], strides = [1, 1]} : vector<1x512xf32> to vector<1x128xf32>
    %317 = arith.negf %316 : vector<1x128xf32>
    %318 = math.exp %317 : vector<1x128xf32>
    %cst_67 = arith.constant 1.000000e+00 : f32
    %319 = vector.broadcast %cst_67 : f32 to vector<1x128xf32>
    %320 = arith.addf %319, %318 : vector<1x128xf32>
    %321 = arith.divf %319, %320 : vector<1x128xf32>
    %322 = vector.extract_strided_slice %309 {offsets = [0, 256], sizes = [1, 128], strides = [1, 1]} : vector<1x512xf32> to vector<1x128xf32>
    %323 = math.tanh %322 : vector<1x128xf32>
    %324 = vector.extract_strided_slice %309 {offsets = [0, 384], sizes = [1, 128], strides = [1, 1]} : vector<1x512xf32> to vector<1x128xf32>
    %325 = arith.negf %324 : vector<1x128xf32>
    %326 = math.exp %325 : vector<1x128xf32>
    %cst_68 = arith.constant 1.000000e+00 : f32
    %327 = vector.broadcast %cst_68 : f32 to vector<1x128xf32>
    %328 = arith.addf %327, %326 : vector<1x128xf32>
    %329 = arith.divf %327, %328 : vector<1x128xf32>
    %330 = arith.mulf %321, %273 : vector<1x128xf32>
    %331 = arith.mulf %315, %323 : vector<1x128xf32>
    %332 = arith.addf %330, %331 : vector<1x128xf32>
    %333 = math.tanh %332 : vector<1x128xf32>
    %334 = arith.mulf %329, %333 : vector<1x128xf32>
    %c4 = arith.constant 4 : index
    %c0_69 = arith.constant 0 : index
    %335 = vector.load %arg5[%c4, %c0_69] : memref<8x128xf32, #tpu.memory_space<vmem>>, vector<1x128xf32>
    tpu.vector_store %arg5[%c4, %c0_69], %334 {strides = array<i32>} : memref<8x128xf32, #tpu.memory_space<vmem>>, vector<1x128xf32>,
    %336 = tpu.concatenate %306, %334 in 1 : vector<1x128xf32>, vector<1x128xf32> -> vector<1x256xf32>
    %cst_70 = arith.constant dense<0.000000e+00> : vector<1x1024xf32>
    %337 = tpu.matmul %336, %6, %cst_70 {dimension_numbers = #tpu.dot_dimension_numbers<[1], [0], [0], [1], [0, 0, 1, 1], [], []>} : vector<1x256xf32>, vector<256x1024xf32>, vector<1x1024xf32> -> vector<1x1024xf32>
    %338 = vector.extract_strided_slice %337 {offsets = [0, 0], sizes = [1, 512], strides = [1, 1]} : vector<1x1024xf32> to vector<1x512xf32>
    %339 = vector.extract_strided_slice %5 {offsets = [6, 0], sizes = [1, 512], strides = [1, 1]} : vector<8x512xf32> to vector<1x512xf32>
    %340 = arith.addf %338, %339 : vector<1x512xf32>
    %341 = vector.extract_strided_slice %340 {offsets = [0, 0], sizes = [1, 128], strides = [1, 1]} : vector<1x512xf32> to vector<1x128xf32>
    %342 = arith.negf %341 : vector<1x128xf32>
    %343 = math.exp %342 : vector<1x128xf32>
    %cst_71 = arith.constant 1.000000e+00 : f32
    %344 = vector.broadcast %cst_71 : f32 to vector<1x128xf32>
    %345 = arith.addf %344, %343 : vector<1x128xf32>
    %346 = arith.divf %344, %345 : vector<1x128xf32>
    %347 = vector.extract_strided_slice %340 {offsets = [0, 128], sizes = [1, 128], strides = [1, 1]} : vector<1x512xf32> to vector<1x128xf32>
    %348 = arith.negf %347 : vector<1x128xf32>
    %349 = math.exp %348 : vector<1x128xf32>
    %cst_72 = arith.constant 1.000000e+00 : f32
    %350 = vector.broadcast %cst_72 : f32 to vector<1x128xf32>
    %351 = arith.addf %350, %349 : vector<1x128xf32>
    %352 = arith.divf %350, %351 : vector<1x128xf32>
    %353 = vector.extract_strided_slice %340 {offsets = [0, 256], sizes = [1, 128], strides = [1, 1]} : vector<1x512xf32> to vector<1x128xf32>
    %354 = math.tanh %353 : vector<1x128xf32>
    %355 = vector.extract_strided_slice %340 {offsets = [0, 384], sizes = [1, 128], strides = [1, 1]} : vector<1x512xf32> to vector<1x128xf32>
    %356 = arith.negf %355 : vector<1x128xf32>
    %357 = math.exp %356 : vector<1x128xf32>
    %cst_73 = arith.constant 1.000000e+00 : f32
    %358 = vector.broadcast %cst_73 : f32 to vector<1x128xf32>
    %359 = arith.addf %358, %357 : vector<1x128xf32>
    %360 = arith.divf %358, %359 : vector<1x128xf32>
    %361 = arith.mulf %352, %304 : vector<1x128xf32>
    %362 = arith.mulf %346, %354 : vector<1x128xf32>
    %363 = arith.addf %361, %362 : vector<1x128xf32>
    %364 = math.tanh %363 : vector<1x128xf32>
    %365 = arith.mulf %360, %364 : vector<1x128xf32>
    %366 = vector.extract_strided_slice %337 {offsets = [0, 512], sizes = [1, 512], strides = [1, 1]} : vector<1x1024xf32> to vector<1x512xf32>
    %c1_74 = arith.constant 1 : index
    %c0_75 = arith.constant 0 : index
    %367 = vector.load %arg3[%c1_74, %c0_75] : memref<2x512xf32, #tpu.memory_space<vmem>>, vector<1x512xf32>
    %368 = arith.addf %366, %367 : vector<1x512xf32>
    %369 = vector.extract_strided_slice %368 {offsets = [0, 0], sizes = [1, 128], strides = [1, 1]} : vector<1x512xf32> to vector<1x128xf32>
    %370 = arith.negf %369 : vector<1x128xf32>
    %371 = math.exp %370 : vector<1x128xf32>
    %cst_76 = arith.constant 1.000000e+00 : f32
    %372 = vector.broadcast %cst_76 : f32 to vector<1x128xf32>
    %373 = arith.addf %372, %371 : vector<1x128xf32>
    %374 = arith.divf %372, %373 : vector<1x128xf32>
    %375 = vector.extract_strided_slice %368 {offsets = [0, 128], sizes = [1, 128], strides = [1, 1]} : vector<1x512xf32> to vector<1x128xf32>
    %376 = arith.negf %375 : vector<1x128xf32>
    %377 = math.exp %376 : vector<1x128xf32>
    %cst_77 = arith.constant 1.000000e+00 : f32
    %378 = vector.broadcast %cst_77 : f32 to vector<1x128xf32>
    %379 = arith.addf %378, %377 : vector<1x128xf32>
    %380 = arith.divf %378, %379 : vector<1x128xf32>
    %381 = vector.extract_strided_slice %368 {offsets = [0, 256], sizes = [1, 128], strides = [1, 1]} : vector<1x512xf32> to vector<1x128xf32>
    %382 = math.tanh %381 : vector<1x128xf32>
    %383 = vector.extract_strided_slice %368 {offsets = [0, 384], sizes = [1, 128], strides = [1, 1]} : vector<1x512xf32> to vector<1x128xf32>
    %384 = arith.negf %383 : vector<1x128xf32>
    %385 = math.exp %384 : vector<1x128xf32>
    %cst_78 = arith.constant 1.000000e+00 : f32
    %386 = vector.broadcast %cst_78 : f32 to vector<1x128xf32>
    %387 = arith.addf %386, %385 : vector<1x128xf32>
    %388 = arith.divf %386, %387 : vector<1x128xf32>
    %389 = arith.mulf %380, %332 : vector<1x128xf32>
    %390 = arith.mulf %374, %382 : vector<1x128xf32>
    %391 = arith.addf %389, %390 : vector<1x128xf32>
    %392 = math.tanh %391 : vector<1x128xf32>
    %393 = arith.mulf %388, %392 : vector<1x128xf32>
    %c5 = arith.constant 5 : index
    %c0_79 = arith.constant 0 : index
    %394 = vector.load %arg5[%c5, %c0_79] : memref<8x128xf32, #tpu.memory_space<vmem>>, vector<1x128xf32>
    tpu.vector_store %arg5[%c5, %c0_79], %393 {strides = array<i32>} : memref<8x128xf32, #tpu.memory_space<vmem>>, vector<1x128xf32>,
    %395 = tpu.concatenate %365, %393 in 1 : vector<1x128xf32>, vector<1x128xf32> -> vector<1x256xf32>
    %cst_80 = arith.constant dense<0.000000e+00> : vector<1x1024xf32>
    %396 = tpu.matmul %395, %6, %cst_80 {dimension_numbers = #tpu.dot_dimension_numbers<[1], [0], [0], [1], [0, 0, 1, 1], [], []>} : vector<1x256xf32>, vector<256x1024xf32>, vector<1x1024xf32> -> vector<1x1024xf32>
    %397 = vector.extract_strided_slice %396 {offsets = [0, 0], sizes = [1, 512], strides = [1, 1]} : vector<1x1024xf32> to vector<1x512xf32>
    %398 = vector.extract_strided_slice %5 {offsets = [7, 0], sizes = [1, 512], strides = [1, 1]} : vector<8x512xf32> to vector<1x512xf32>
    %399 = arith.addf %397, %398 : vector<1x512xf32>
    %400 = vector.extract_strided_slice %399 {offsets = [0, 0], sizes = [1, 128], strides = [1, 1]} : vector<1x512xf32> to vector<1x128xf32>
    %401 = arith.negf %400 : vector<1x128xf32>
    %402 = math.exp %401 : vector<1x128xf32>
    %cst_81 = arith.constant 1.000000e+00 : f32
    %403 = vector.broadcast %cst_81 : f32 to vector<1x128xf32>
    %404 = arith.addf %403, %402 : vector<1x128xf32>
    %405 = arith.divf %403, %404 : vector<1x128xf32>
    %406 = vector.extract_strided_slice %399 {offsets = [0, 128], sizes = [1, 128], strides = [1, 1]} : vector<1x512xf32> to vector<1x128xf32>
    %407 = arith.negf %406 : vector<1x128xf32>
    %408 = math.exp %407 : vector<1x128xf32>
    %cst_82 = arith.constant 1.000000e+00 : f32
    %409 = vector.broadcast %cst_82 : f32 to vector<1x128xf32>
    %410 = arith.addf %409, %408 : vector<1x128xf32>
    %411 = arith.divf %409, %410 : vector<1x128xf32>
    %412 = vector.extract_strided_slice %399 {offsets = [0, 256], sizes = [1, 128], strides = [1, 1]} : vector<1x512xf32> to vector<1x128xf32>
    %413 = math.tanh %412 : vector<1x128xf32>
    %414 = vector.extract_strided_slice %399 {offsets = [0, 384], sizes = [1, 128], strides = [1, 1]} : vector<1x512xf32> to vector<1x128xf32>
    %415 = arith.negf %414 : vector<1x128xf32>
    %416 = math.exp %415 : vector<1x128xf32>
    %cst_83 = arith.constant 1.000000e+00 : f32
    %417 = vector.broadcast %cst_83 : f32 to vector<1x128xf32>
    %418 = arith.addf %417, %416 : vector<1x128xf32>
    %419 = arith.divf %417, %418 : vector<1x128xf32>
    %420 = arith.mulf %411, %363 : vector<1x128xf32>
    %421 = arith.mulf %405, %413 : vector<1x128xf32>
    %422 = arith.addf %420, %421 : vector<1x128xf32>
    %423 = math.tanh %422 : vector<1x128xf32>
    %424 = arith.mulf %419, %423 : vector<1x128xf32>
    %425 = vector.extract_strided_slice %396 {offsets = [0, 512], sizes = [1, 512], strides = [1, 1]} : vector<1x1024xf32> to vector<1x512xf32>
    %c1_84 = arith.constant 1 : index
    %c0_85 = arith.constant 0 : index
    %426 = vector.load %arg3[%c1_84, %c0_85] : memref<2x512xf32, #tpu.memory_space<vmem>>, vector<1x512xf32>
    %427 = arith.addf %425, %426 : vector<1x512xf32>
    %428 = vector.extract_strided_slice %427 {offsets = [0, 0], sizes = [1, 128], strides = [1, 1]} : vector<1x512xf32> to vector<1x128xf32>
    %429 = arith.negf %428 : vector<1x128xf32>
    %430 = math.exp %429 : vector<1x128xf32>
    %cst_86 = arith.constant 1.000000e+00 : f32
    %431 = vector.broadcast %cst_86 : f32 to vector<1x128xf32>
    %432 = arith.addf %431, %430 : vector<1x128xf32>
    %433 = arith.divf %431, %432 : vector<1x128xf32>
    %434 = vector.extract_strided_slice %427 {offsets = [0, 128], sizes = [1, 128], strides = [1, 1]} : vector<1x512xf32> to vector<1x128xf32>
    %435 = arith.negf %434 : vector<1x128xf32>
    %436 = math.exp %435 : vector<1x128xf32>
    %cst_87 = arith.constant 1.000000e+00 : f32
    %437 = vector.broadcast %cst_87 : f32 to vector<1x128xf32>
    %438 = arith.addf %437, %436 : vector<1x128xf32>
    %439 = arith.divf %437, %438 : vector<1x128xf32>
    %440 = vector.extract_strided_slice %427 {offsets = [0, 256], sizes = [1, 128], strides = [1, 1]} : vector<1x512xf32> to vector<1x128xf32>
    %441 = math.tanh %440 : vector<1x128xf32>
    %442 = vector.extract_strided_slice %427 {offsets = [0, 384], sizes = [1, 128], strides = [1, 1]} : vector<1x512xf32> to vector<1x128xf32>
    %443 = arith.negf %442 : vector<1x128xf32>
    %444 = math.exp %443 : vector<1x128xf32>
    %cst_88 = arith.constant 1.000000e+00 : f32
    %445 = vector.broadcast %cst_88 : f32 to vector<1x128xf32>
    %446 = arith.addf %445, %444 : vector<1x128xf32>
    %447 = arith.divf %445, %446 : vector<1x128xf32>
    %448 = arith.mulf %439, %391 : vector<1x128xf32>
    %449 = arith.mulf %433, %441 : vector<1x128xf32>
    %450 = arith.addf %448, %449 : vector<1x128xf32>
    %451 = math.tanh %450 : vector<1x128xf32>
    %452 = arith.mulf %447, %451 : vector<1x128xf32>
    %c6 = arith.constant 6 : index
    %c0_89 = arith.constant 0 : index
    %453 = vector.load %arg5[%c6, %c0_89] : memref<8x128xf32, #tpu.memory_space<vmem>>, vector<1x128xf32>
    tpu.vector_store %arg5[%c6, %c0_89], %452 {strides = array<i32>} : memref<8x128xf32, #tpu.memory_space<vmem>>, vector<1x128xf32>,
    %454 = tpu.concatenate %424, %452 in 1 : vector<1x128xf32>, vector<1x128xf32> -> vector<1x256xf32>
    %cst_90 = arith.constant dense<0.000000e+00> : vector<1x1024xf32>
    %455 = tpu.matmul %454, %6, %cst_90 {dimension_numbers = #tpu.dot_dimension_numbers<[1], [0], [0], [1], [0, 0, 1, 1], [], []>} : vector<1x256xf32>, vector<256x1024xf32>, vector<1x1024xf32> -> vector<1x1024xf32>
    %456 = vector.extract_strided_slice %455 {offsets = [0, 512], sizes = [1, 512], strides = [1, 1]} : vector<1x1024xf32> to vector<1x512xf32>
    %c1_91 = arith.constant 1 : index
    %c0_92 = arith.constant 0 : index
    %457 = vector.load %arg3[%c1_91, %c0_92] : memref<2x512xf32, #tpu.memory_space<vmem>>, vector<1x512xf32>
    %458 = arith.addf %456, %457 : vector<1x512xf32>
    %459 = vector.extract_strided_slice %458 {offsets = [0, 0], sizes = [1, 128], strides = [1, 1]} : vector<1x512xf32> to vector<1x128xf32>
    %460 = arith.negf %459 : vector<1x128xf32>
    %461 = math.exp %460 : vector<1x128xf32>
    %cst_93 = arith.constant 1.000000e+00 : f32
    %462 = vector.broadcast %cst_93 : f32 to vector<1x128xf32>
    %463 = arith.addf %462, %461 : vector<1x128xf32>
    %464 = arith.divf %462, %463 : vector<1x128xf32>
    %465 = vector.extract_strided_slice %458 {offsets = [0, 128], sizes = [1, 128], strides = [1, 1]} : vector<1x512xf32> to vector<1x128xf32>
    %466 = arith.negf %465 : vector<1x128xf32>
    %467 = math.exp %466 : vector<1x128xf32>
    %cst_94 = arith.constant 1.000000e+00 : f32
    %468 = vector.broadcast %cst_94 : f32 to vector<1x128xf32>
    %469 = arith.addf %468, %467 : vector<1x128xf32>
    %470 = arith.divf %468, %469 : vector<1x128xf32>
    %471 = vector.extract_strided_slice %458 {offsets = [0, 256], sizes = [1, 128], strides = [1, 1]} : vector<1x512xf32> to vector<1x128xf32>
    %472 = math.tanh %471 : vector<1x128xf32>
    %473 = vector.extract_strided_slice %458 {offsets = [0, 384], sizes = [1, 128], strides = [1, 1]} : vector<1x512xf32> to vector<1x128xf32>
    %474 = arith.negf %473 : vector<1x128xf32>
    %475 = math.exp %474 : vector<1x128xf32>
    %cst_95 = arith.constant 1.000000e+00 : f32
    %476 = vector.broadcast %cst_95 : f32 to vector<1x128xf32>
    %477 = arith.addf %476, %475 : vector<1x128xf32>
    %478 = arith.divf %476, %477 : vector<1x128xf32>
    %479 = arith.mulf %470, %450 : vector<1x128xf32>
    %480 = arith.mulf %464, %472 : vector<1x128xf32>
    %481 = arith.addf %479, %480 : vector<1x128xf32>
    %482 = math.tanh %481 : vector<1x128xf32>
    %483 = arith.mulf %478, %482 : vector<1x128xf32>
    %c7 = arith.constant 7 : index
    %c0_96 = arith.constant 0 : index
    %484 = vector.load %arg5[%c7, %c0_96] : memref<8x128xf32, #tpu.memory_space<vmem>>, vector<1x128xf32>
    tpu.vector_store %arg5[%c7, %c0_96], %483 {strides = array<i32>} : memref<8x128xf32, #tpu.memory_space<vmem>>, vector<1x128xf32>,
    %c0_97 = arith.constant 0 : index
    %c0_98 = arith.constant 0 : index
    %485 = vector.load %arg6[%c0_97, %c0_98] : memref<2x128xf32, #tpu.memory_space<vmem>>, vector<1x128xf32>
    tpu.vector_store %arg6[%c0_97, %c0_98], %424 {strides = array<i32>} : memref<2x128xf32, #tpu.memory_space<vmem>>, vector<1x128xf32>,
    %c0_99 = arith.constant 0 : index
    %c0_100 = arith.constant 0 : index
    %486 = vector.load %arg7[%c0_99, %c0_100] : memref<2x128xf32, #tpu.memory_space<vmem>>, vector<1x128xf32>
    tpu.vector_store %arg7[%c0_99, %c0_100], %422 {strides = array<i32>} : memref<2x128xf32, #tpu.memory_space<vmem>>, vector<1x128xf32>,
    %c1_101 = arith.constant 1 : index
    %c0_102 = arith.constant 0 : index
    %487 = vector.load %arg6[%c1_101, %c0_102] : memref<2x128xf32, #tpu.memory_space<vmem>>, vector<1x128xf32>
    tpu.vector_store %arg6[%c1_101, %c0_102], %483 {strides = array<i32>} : memref<2x128xf32, #tpu.memory_space<vmem>>, vector<1x128xf32>,
    %c1_103 = arith.constant 1 : index
    %c0_104 = arith.constant 0 : index
    %488 = vector.load %arg7[%c1_103, %c0_104] : memref<2x128xf32, #tpu.memory_space<vmem>>, vector<1x128xf32>
    tpu.vector_store %arg7[%c1_103, %c0_104], %481 {strides = array<i32>} : memref<2x128xf32, #tpu.memory_space<vmem>>, vector<1x128xf32>,
    return
  }
}

</mosaic_0001>

<llo_original>
// kernel: tpu_custom_call.1
$region0: #{tpu_custom_call.1}
  #allocation0 [shape = 'u32[]', space=smem, size = 0x4, offset = 0x4, fixed_abs, tag = 'smem constant byte address 0x4 - core index']
  #allocation1 [shape = 'u32[144,128]{1,0:T(1,128)}', space=vmem, size = 0x12000, scoped, tag = 'internal scratch']
  %s0 = inlined_call_operand.hbm [shape: f32[8,1024], index: 0, kind: input, shape index: {}]
  %s1 = inlined_call_operand.hbm [shape: f32[1024,512], index: 1, kind: input, shape index: {}]
  %s2 = inlined_call_operand.hbm [shape: f32[256,1024], index: 2, kind: input, shape index: {}]
  %s3 = inlined_call_operand.hbm [shape: f32[2,512], index: 3, kind: input, shape index: {}]
  %s4 = inlined_call_operand.hbm [shape: f32[4,128], index: 4, kind: input, shape index: {}]
  %s5 = inlined_call_operand.hbm [shape: f32[8,128], index: 5, kind: output, shape index: {0}]
  %s6 = inlined_call_operand.hbm [shape: f32[2,128], index: 6, kind: output, shape index: {1}]
  %s7 = inlined_call_operand.hbm [shape: f32[2,128], index: 7, kind: output, shape index: {2}]
  %8 = xla_tuple %s5, %s6, %s7
  %s9 = sld [smem:[#allocation0]]
  $region66: #{tpu_custom_call.1} parent=0
    _
  %s11 = ssub.s32 1, %s9
  %s12 = scalar_select 0, %s11, %s9
  $region1: #{tpu_custom_call.1} parent=0
    #allocation2 [shape = 'u8[32768]{0}', space=vmem, size = 0x8000, scoped, tag = 'input window, operand 0, single buffered']
    #allocation3 [shape = 's32[1]{0}', space=sflag, size = 0x4, scoped, tag = 'scoped memory for tpu_custom_call.1']
    #allocation4 [shape = 's32[1]{0}', space=sflag, size = 0x4, scoped, tag = 'scoped memory for tpu_custom_call.1']
    #allocation5 [shape = 'u8[2097152]{0}', space=vmem, size = 0x200000, scoped, tag = 'input window, operand 1, single buffered']
    #allocation6 [shape = 's32[1]{0}', space=sflag, size = 0x4, scoped, tag = 'scoped memory for tpu_custom_call.1']
    #allocation7 [shape = 'u8[1048576]{0}', space=vmem, size = 0x100000, scoped, tag = 'input window, operand 2, single buffered']
    #allocation8 [shape = 'u8[4096]{0}', space=vmem, size = 0x1000, scoped, tag = 'input window, operand 3, single buffered']
    #allocation9 [shape = 's32[1]{0}', space=sflag, size = 0x4, scoped, tag = 'scoped memory for tpu_custom_call.1']
    #allocation10 [shape = 'u8[2048]{0}', space=vmem, size = 0x800, scoped, tag = 'input window, operand 4, single buffered']
    #allocation11 [shape = 'u8[4096]{0}', space=vmem, size = 0x1000, scoped, tag = 'output window, operand 0, single buffered']
    #allocation12 [shape = 'u8[1024]{0}', space=vmem, size = 0x400, scoped, tag = 'output window, operand 1, single buffered']
    #allocation13 [shape = 's32[1]{0}', space=sflag, size = 0x4, scoped, tag = 'scoped memory for tpu_custom_call.1']
    #allocation14 [shape = 'u8[1024]{0}', space=vmem, size = 0x400, scoped, tag = 'output window, operand 2, single buffered']
    %13 = vsyncpa [#allocation3], 0
    %14 = vsyncpa [#allocation6], 0
    %15 = vsyncpa [#allocation9], 0
    %16 = vsyncpa [#allocation4], 0
    %17 = vsyncpa [#allocation13], 0
    // Predicated region
    $region2: #{tpu_custom_call.1} parent=1 // pred_check
      _
    $region3: #{tpu_custom_call.1} parent=1 // pred_check_branch
      %19 = sbr.rel (0) target = $region5
    $region4: #{tpu_custom_call.1} parent=1 // pred_region
      %s21 = ssub.s32 1024, 1024
      %22 = vsyncadd [#allocation3], %s21
      %s24 = sshll.u32 [#allocation2], 4
      %s25 = int_to_ptr.vmem [resolvable:$true] %s24
      %27 = dma.hbm_to_vmem [thread:$0]  %s0, 1024, %s25, [#allocation3]
    $region5: #{tpu_custom_call.1} parent=1 // pred_fallthru
      _
    // Predicated region
    $region6: #{tpu_custom_call.1} parent=1 // pred_check
      _
    $region7: #{tpu_custom_call.1} parent=1 // pred_check_branch
      %29 = sbr.rel (0) target = $region9
    $region8: #{tpu_custom_call.1} parent=1 // pred_region
      %s31 = ssub.s32 65536, 65536
      %32 = vsyncadd [#allocation6], %s31
      %s33 = sshll.u32 [#allocation5], 4
      %s34 = int_to_ptr.vmem [resolvable:$true] %s33
      %39 = dma.hbm_to_vmem [thread:$0]  %s1, 65536, %s34, [#allocation6], 512, 512, 32
    $region9: #{tpu_custom_call.1} parent=1 // pred_fallthru
      _
    // Predicated region
    $region10: #{tpu_custom_call.1} parent=1 // pred_check
      _
    $region11: #{tpu_custom_call.1} parent=1 // pred_check_branch
      %41 = sbr.rel (0) target = $region13
    $region12: #{tpu_custom_call.1} parent=1 // pred_region
      %s43 = ssub.s32 32768, 32768
      %44 = vsyncadd [#allocation6], %s43
      %s45 = sshll.u32 [#allocation7], 4
      %s46 = int_to_ptr.vmem [resolvable:$true] %s45
      %51 = dma.hbm_to_vmem [thread:$0]  %s2, 32768, %s46, [#allocation6], 1024, 1024, 64
    $region13: #{tpu_custom_call.1} parent=1 // pred_fallthru
      _
    // Predicated region
    $region14: #{tpu_custom_call.1} parent=1 // pred_check
      _
    $region15: #{tpu_custom_call.1} parent=1 // pred_check_branch
      %53 = sbr.rel (0) target = $region17
    $region16: #{tpu_custom_call.1} parent=1 // pred_region
      %s55 = ssub.s32 128, 128
      %56 = vsyncadd [#allocation9], %s55
      %s58 = sshll.u32 [#allocation8], 4
      %s59 = int_to_ptr.vmem [resolvable:$true] %s58
      %61 = dma.hbm_to_vmem [thread:$0]  %s3, 128, %s59, [#allocation9]
    $region17: #{tpu_custom_call.1} parent=1 // pred_fallthru
      _
    // Predicated region
    $region18: #{tpu_custom_call.1} parent=1 // pred_check
      _
    $region19: #{tpu_custom_call.1} parent=1 // pred_check_branch
      %63 = sbr.rel (0) target = $region21
    $region20: #{tpu_custom_call.1} parent=1 // pred_region
      %s65 = ssub.s32 64, 64
      %66 = vsyncadd [#allocation9], %s65
      %s68 = sshll.u32 [#allocation10], 4
      %s69 = int_to_ptr.vmem [resolvable:$true] %s68
      %71 = dma.hbm_to_vmem [thread:$0]  %s4, 64, %s69, [#allocation9]
    $region21: #{tpu_custom_call.1} parent=1 // pred_fallthru
      _
    // Predicated region
    $region22: #{tpu_custom_call.1} parent=1 // pred_check
      _
    $region23: #{tpu_custom_call.1} parent=1 // pred_check_branch
      %73 = sbr.rel (0) target = $region25
    $region24: #{tpu_custom_call.1} parent=1 // pred_region
      %74 = dma.done [#allocation3], 1024
    $region25: #{tpu_custom_call.1} parent=1 // pred_fallthru
      _
    // Predicated region
    $region26: #{tpu_custom_call.1} parent=1 // pred_check
      _
    $region27: #{tpu_custom_call.1} parent=1 // pred_check_branch
      %76 = sbr.rel (0) target = $region29
    $region28: #{tpu_custom_call.1} parent=1 // pred_region
      %77 = dma.done [#allocation6], 65536
    $region29: #{tpu_custom_call.1} parent=1 // pred_fallthru
      _
    // Predicated region
    $region30: #{tpu_custom_call.1} parent=1 // pred_check
      _
    $region31: #{tpu_custom_call.1} parent=1 // pred_check_branch
      %79 = sbr.rel (0) target = $region33
    $region32: #{tpu_custom_call.1} parent=1 // pred_region
      %80 = dma.done [#allocation6], 32768
    $region33: #{tpu_custom_call.1} parent=1 // pred_fallthru
      _
    // Predicated region
    $region34: #{tpu_custom_call.1} parent=1 // pred_check
      _
    $region35: #{tpu_custom_call.1} parent=1 // pred_check_branch
      %82 = sbr.rel (0) target = $region37
    $region36: #{tpu_custom_call.1} parent=1 // pred_region
      %83 = dma.done [#allocation9], 128
    $region37: #{tpu_custom_call.1} parent=1 // pred_fallthru
      _
    // Predicated region
    $region38: #{tpu_custom_call.1} parent=1 // pred_check
      _
    $region39: #{tpu_custom_call.1} parent=1 // pred_check_branch
      %85 = sbr.rel (0) target = $region41
    $region40: #{tpu_custom_call.1} parent=1 // pred_region
      %86 = dma.done [#allocation9], 64
    $region41: #{tpu_custom_call.1} parent=1 // pred_fallthru
      _
    %v87 = vld [vmem:[#allocation2] sm:$0xff]
    %v88 = vld [vmem:[#allocation2 + $0x8] sm:$0xff]
    %v89 = vld [vmem:[#allocation2 + $0x10] sm:$0xff]
    %v90 = vld [vmem:[#allocation2 + $0x18] sm:$0xff]
    %v91 = vld [vmem:[#allocation2 + $0x20] sm:$0xff]
    %v92 = vld [vmem:[#allocation2 + $0x28] sm:$0xff]
    %v93 = vld [vmem:[#allocation2 + $0x30] sm:$0xff]
    %v94 = vld [vmem:[#allocation2 + $0x38] sm:$0xff]
    %v95 = vld [vmem:[#allocation5] sm:$0xff]
    %v96 = vld [vmem:[#allocation5 + $0x8] sm:$0xff]
    %v97 = vld [vmem:[#allocation5 + $0x10] sm:$0xff]
    %v98 = vld [vmem:[#allocation5 + $0x18] sm:$0xff]
    %v99 = vld [vmem:[#allocation5 + $0x20] sm:$0xff]
    %v100 = vld [vmem:[#allocation5 + $0x28] sm:$0xff]
    %v101 = vld [vmem:[#allocation5 + $0x30] sm:$0xff]
    %v102 = vld [vmem:[#allocation5 + $0x38] sm:$0xff]
    %v103 = vld [vmem:[#allocation5 + $0x40] sm:$0xff]
    %v104 = vld [vmem:[#allocation5 + $0x48] sm:$0xff]
    %v105 = vld [vmem:[#allocation5 + $0x50] sm:$0xff]
    %v106 = vld [vmem:[#allocation5 + $0x58] sm:$0xff]
    %v107 = vld [vmem:[#allocation5 + $0x60] sm:$0xff]
    %v108 = vld [vmem:[#allocation5 + $0x68] sm:$0xff]
    %v109 = vld [vmem:[#allocation5 + $0x70] sm:$0xff]
    %v110 = vld [vmem:[#allocation5 + $0x78] sm:$0xff]
    %v111 = vld [vmem:[#allocation5 + $0x80] sm:$0xff]
    %v112 = vld [vmem:[#allocation5 + $0x88] sm:$0xff]
    %v113 = vld [vmem:[#allocation5 + $0x90] sm:$0xff]
    %v114 = vld [vmem:[#allocation5 + $0x98] sm:$0xff]
    %v115 = vld [vmem:[#allocation5 + $0xa0] sm:$0xff]
    %v116 = vld [vmem:[#allocation5 + $0xa8] sm:$0xff]
    %v117 = vld [vmem:[#allocation5 + $0xb0] sm:$0xff]
    %v118 = vld [vmem:[#allocation5 + $0xb8] sm:$0xff]
    %v119 = vld [vmem:[#allocation5 + $0xc0] sm:$0xff]
    %v120 = vld [vmem:[#allocation5 + $0xc8] sm:$0xff]
    %v121 = vld [vmem:[#allocation5 + $0xd0] sm:$0xff]
    %v122 = vld [vmem:[#allocation5 + $0xd8] sm:$0xff]
    %v123 = vld [vmem:[#allocation5 + $0xe0] sm:$0xff]
    %v124 = vld [vmem:[#allocation5 + $0xe8] sm:$0xff]
    %v125 = vld [vmem:[#allocation5 + $0xf0] sm:$0xff]
    %v126 = vld [vmem:[#allocation5 + $0xf8] sm:$0xff]
    %v127 = vld [vmem:[#allocation5 + $0x100] sm:$0xff]
    %v128 = vld [vmem:[#allocation5 + $0x108] sm:$0xff]
    %v129 = vld [vmem:[#allocation5 + $0x110] sm:$0xff]
    %v130 = vld [vmem:[#allocation5 + $0x118] sm:$0xff]
    %v131 = vld [vmem:[#allocation5 + $0x120] sm:$0xff]
    %v132 = vld [vmem:[#allocation5 + $0x128] sm:$0xff]
    %v133 = vld [vmem:[#allocation5 + $0x130] sm:$0xff]
    %v134 = vld [vmem:[#allocation5 + $0x138] sm:$0xff]
    %v135 = vld [vmem:[#allocation5 + $0x140] sm:$0xff]
    %v136 = vld [vmem:[#allocation5 + $0x148] sm:$0xff]
    %v137 = vld [vmem:[#allocation5 + $0x150] sm:$0xff]
    %v138 = vld [vmem:[#allocation5 + $0x158] sm:$0xff]
    %v139 = vld [vmem:[#allocation5 + $0x160] sm:$0xff]
    %v140 = vld [vmem:[#allocation5 + $0x168] sm:$0xff]
    %v141 = vld [vmem:[#allocation5 + $0x170] sm:$0xff]
    %v142 = vld [vmem:[#allocation5 + $0x178] sm:$0xff]
    %v143 = vld [vmem:[#allocation5 + $0x180] sm:$0xff]
    %v144 = vld [vmem:[#allocation5 + $0x188] sm:$0xff]
    %v145 = vld [vmem:[#allocation5 + $0x190] sm:$0xff]
    %v146 = vld [vmem:[#allocation5 + $0x198] sm:$0xff]
    %v147 = vld [vmem:[#allocation5 + $0x1a0] sm:$0xff]
    %v148 = vld [vmem:[#allocation5 + $0x1a8] sm:$0xff]
    %v149 = vld [vmem:[#allocation5 + $0x1b0] sm:$0xff]
    %v150 = vld [vmem:[#allocation5 + $0x1b8] sm:$0xff]
    %v151 = vld [vmem:[#allocation5 + $0x1c0] sm:$0xff]
    %v152 = vld [vmem:[#allocation5 + $0x1c8] sm:$0xff]
    %v153 = vld [vmem:[#allocation5 + $0x1d0] sm:$0xff]
    %v154 = vld [vmem:[#allocation5 + $0x1d8] sm:$0xff]
    %v155 = vld [vmem:[#allocation5 + $0x1e0] sm:$0xff]
    %v156 = vld [vmem:[#allocation5 + $0x1e8] sm:$0xff]
    %v157 = vld [vmem:[#allocation5 + $0x1f0] sm:$0xff]
    %v158 = vld [vmem:[#allocation5 + $0x1f8] sm:$0xff]
    %v159 = vld [vmem:[#allocation5 + $0x200] sm:$0xff]
    %v160 = vld [vmem:[#allocation5 + $0x208] sm:$0xff]
    %v161 = vld [vmem:[#allocation5 + $0x210] sm:$0xff]
    %v162 = vld [vmem:[#allocation5 + $0x218] sm:$0xff]
    %v163 = vld [vmem:[#allocation5 + $0x220] sm:$0xff]
    %v164 = vld [vmem:[#allocation5 + $0x228] sm:$0xff]
    %v165 = vld [vmem:[#allocation5 + $0x230] sm:$0xff]
    %v166 = vld [vmem:[#allocation5 + $0x238] sm:$0xff]
    %v167 = vld [vmem:[#allocation5 + $0x240] sm:$0xff]
    %v168 = vld [vmem:[#allocation5 + $0x248] sm:$0xff]
    %v169 = vld [vmem:[#allocation5 + $0x250] sm:$0xff]
    %v170 = vld [vmem:[#allocation5 + $0x258] sm:$0xff]
    %v171 = vld [vmem:[#allocation5 + $0x260] sm:$0xff]
    %v172 = vld [vmem:[#allocation5 + $0x268] sm:$0xff]
    %v173 = vld [vmem:[#allocation5 + $0x270] sm:$0xff]
    %v174 = vld [vmem:[#allocation5 + $0x278] sm:$0xff]
    %v175 = vld [vmem:[#allocation5 + $0x280] sm:$0xff]
    %v176 = vld [vmem:[#allocation5 + $0x288] sm:$0xff]
    %v177 = vld [vmem:[#allocation5 + $0x290] sm:$0xff]
    %v178 = vld [vmem:[#allocation5 + $0x298] sm:$0xff]
    %v179 = vld [vmem:[#allocation5 + $0x2a0] sm:$0xff]
    %v180 = vld [vmem:[#allocation5 + $0x2a8] sm:$0xff]
    %v181 = vld [vmem:[#allocation5 + $0x2b0] sm:$0xff]
    %v182 = vld [vmem:[#allocation5 + $0x2b8] sm:$0xff]
    %v183 = vld [vmem:[#allocation5 + $0x2c0] sm:$0xff]
    %v184 = vld [vmem:[#allocation5 + $0x2c8] sm:$0xff]
    %v185 = vld [vmem:[#allocation5 + $0x2d0] sm:$0xff]
    %v186 = vld [vmem:[#allocation5 + $0x2d8] sm:$0xff]
    %v187 = vld [vmem:[#allocation5 + $0x2e0] sm:$0xff]
    %v188 = vld [vmem:[#allocation5 + $0x2e8] sm:$0xff]
    %v189 = vld [vmem:[#allocation5 + $0x2f0] sm:$0xff]
    %v190 = vld [vmem:[#allocation5 + $0x2f8] sm:$0xff]
    %v191 = vld [vmem:[#allocation5 + $0x300] sm:$0xff]
    %v192 = vld [vmem:[#allocation5 + $0x308] sm:$0xff]
    %v193 = vld [vmem:[#allocation5 + $0x310] sm:$0xff]
    %v194 = vld [vmem:[#allocation5 + $0x318] sm:$0xff]
    %v195 = vld [vmem:[#allocation5 + $0x320] sm:$0xff]
    %v196 = vld [vmem:[#allocation5 + $0x328] sm:$0xff]
    %v197 = vld [vmem:[#allocation5 + $0x330] sm:$0xff]
    %v198 = vld [vmem:[#allocation5 + $0x338] sm:$0xff]
    %v199 = vld [vmem:[#allocation5 + $0x340] sm:$0xff]
    %v200 = vld [vmem:[#allocation5 + $0x348] sm:$0xff]
    %v201 = vld [vmem:[#allocation5 + $0x350] sm:$0xff]
    %v202 = vld [vmem:[#allocation5 + $0x358] sm:$0xff]
    %v203 = vld [vmem:[#allocation5 + $0x360] sm:$0xff]
    %v204 = vld [vmem:[#allocation5 + $0x368] sm:$0xff]
    %v205 = vld [vmem:[#allocation5 + $0x370] sm:$0xff]
    %v206 = vld [vmem:[#allocation5 + $0x378] sm:$0xff]
    %v207 = vld [vmem:[#allocation5 + $0x380] sm:$0xff]
    %v208 = vld [vmem:[#allocation5 + $0x388] sm:$0xff]
    %v209 = vld [vmem:[#allocation5 + $0x390] sm:$0xff]
    %v210 = vld [vmem:[#allocation5 + $0x398] sm:$0xff]
    %v211 = vld [vmem:[#allocation5 + $0x3a0] sm:$0xff]
    %v212 = vld [vmem:[#allocation5 + $0x3a8] sm:$0xff]
    %v213 = vld [vmem:[#allocation5 + $0x3b0] sm:$0xff]
    %v214 = vld [vmem:[#allocation5 + $0x3b8] sm:$0xff]
    %v215 = vld [vmem:[#allocation5 + $0x3c0] sm:$0xff]
    %v216 = vld [vmem:[#allocation5 + $0x3c8] sm:$0xff]
    %v217 = vld [vmem:[#allocation5 + $0x3d0] sm:$0xff]
    %v218 = vld [vmem:[#allocation5 + $0x3d8] sm:$0xff]
    %v219 = vld [vmem:[#allocation5 + $0x3e0] sm:$0xff]
    %v220 = vld [vmem:[#allocation5 + $0x3e8] sm:$0xff]
    %v221 = vld [vmem:[#allocation5 + $0x3f0] sm:$0xff]
    %v222 = vld [vmem:[#allocation5 + $0x3f8] sm:$0xff]
    %v223 = vld [vmem:[#allocation5 + $0x400] sm:$0xff]
    %v224 = vld [vmem:[#allocation5 + $0x408] sm:$0xff]
    %v225 = vld [vmem:[#allocation5 + $0x410] sm:$0xff]
    %v226 = vld [vmem:[#allocation5 + $0x418] sm:$0xff]
    %v227 = vld [vmem:[#allocation5 + $0x420] sm:$0xff]
    %v228 = vld [vmem:[#allocation5 + $0x428] sm:$0xff]
    %v229 = vld [vmem:[#allocation5 + $0x430] sm:$0xff]
    %v230 = vld [vmem:[#allocation5 + $0x438] sm:$0xff]
    %v231 = vld [vmem:[#allocation5 + $0x440] sm:$0xff]
    %v232 = vld [vmem:[#allocation5 + $0x448] sm:$0xff]
    %v233 = vld [vmem:[#allocation5 + $0x450] sm:$0xff]
    %v234 = vld [vmem:[#allocation5 + $0x458] sm:$0xff]
    %v235 = vld [vmem:[#allocation5 + $0x460] sm:$0xff]
    %v236 = vld [vmem:[#allocation5 + $0x468] sm:$0xff]
    %v237 = vld [vmem:[#allocation5 + $0x470] sm:$0xff]
    %v238 = vld [vmem:[#allocation5 + $0x478] sm:$0xff]
    %v239 = vld [vmem:[#allocation5 + $0x480] sm:$0xff]
    %v240 = vld [vmem:[#allocation5 + $0x488] sm:$0xff]
    %v241 = vld [vmem:[#allocation5 + $0x490] sm:$0xff]
    %v242 = vld [vmem:[#allocation5 + $0x498] sm:$0xff]
    %v243 = vld [vmem:[#allocation5 + $0x4a0] sm:$0xff]
    %v244 = vld [vmem:[#allocation5 + $0x4a8] sm:$0xff]
    %v245 = vld [vmem:[#allocation5 + $0x4b0] sm:$0xff]
    %v246 = vld [vmem:[#allocation5 + $0x4b8] sm:$0xff]
    %v247 = vld [vmem:[#allocation5 + $0x4c0] sm:$0xff]
    %v248 = vld [vmem:[#allocation5 + $0x4c8] sm:$0xff]
    %v249 = vld [vmem:[#allocation5 + $0x4d0] sm:$0xff]
    %v250 = vld [vmem:[#allocation5 + $0x4d8] sm:$0xff]
    %v251 = vld [vmem:[#allocation5 + $0x4e0] sm:$0xff]
    %v252 = vld [vmem:[#allocation5 + $0x4e8] sm:$0xff]
    %v253 = vld [vmem:[#allocation5 + $0x4f0] sm:$0xff]
    %v254 = vld [vmem:[#allocation5 + $0x4f8] sm:$0xff]
    %v255 = vld [vmem:[#allocation5 + $0x500] sm:$0xff]
    %v256 = vld [vmem:[#allocation5 + $0x508] sm:$0xff]
    %v257 = vld [vmem:[#allocation5 + $0x510] sm:$0xff]
    %v258 = vld [vmem:[#allocation5 + $0x518] sm:$0xff]
    %v259 = vld [vmem:[#allocation5 + $0x520] sm:$0xff]
    %v260 = vld [vmem:[#allocation5 + $0x528] sm:$0xff]
    %v261 = vld [vmem:[#allocation5 + $0x530] sm:$0xff]
    %v262 = vld [vmem:[#allocation5 + $0x538] sm:$0xff]
    %v263 = vld [vmem:[#allocation5 + $0x540] sm:$0xff]
    %v264 = vld [vmem:[#allocation5 + $0x548] sm:$0xff]
    %v265 = vld [vmem:[#allocation5 + $0x550] sm:$0xff]
    %v266 = vld [vmem:[#allocation5 + $0x558] sm:$0xff]
    %v267 = vld [vmem:[#allocation5 + $0x560] sm:$0xff]
    %v268 = vld [vmem:[#allocation5 + $0x568] sm:$0xff]
    %v269 = vld [vmem:[#allocation5 + $0x570] sm:$0xff]
    %v270 = vld [vmem:[#allocation5 + $0x578] sm:$0xff]
    %v271 = vld [vmem:[#allocation5 + $0x580] sm:$0xff]
    %v272 = vld [vmem:[#allocation5 + $0x588] sm:$0xff]
    %v273 = vld [vmem:[#allocation5 + $0x590] sm:$0xff]
    %v274 = vld [vmem:[#allocation5 + $0x598] sm:$0xff]
    %v275 = vld [vmem:[#allocation5 + $0x5a0] sm:$0xff]
    %v276 = vld [vmem:[#allocation5 + $0x5a8] sm:$0xff]
    %v277 = vld [vmem:[#allocation5 + $0x5b0] sm:$0xff]
    %v278 = vld [vmem:[#allocation5 + $0x5b8] sm:$0xff]
    %v279 = vld [vmem:[#allocation5 + $0x5c0] sm:$0xff]
    %v280 = vld [vmem:[#allocation5 + $0x5c8] sm:$0xff]
    %v281 = vld [vmem:[#allocation5 + $0x5d0] sm:$0xff]
    %v282 = vld [vmem:[#allocation5 + $0x5d8] sm:$0xff]
    %v283 = vld [vmem:[#allocation5 + $0x5e0] sm:$0xff]
    %v284 = vld [vmem:[#allocation5 + $0x5e8] sm:$0xff]
    %v285 = vld [vmem:[#allocation5 + $0x5f0] sm:$0xff]
    %v286 = vld [vmem:[#allocation5 + $0x5f8] sm:$0xff]
    %v287 = vld [vmem:[#allocation5 + $0x600] sm:$0xff]
    %v288 = vld [vmem:[#allocation5 + $0x608] sm:$0xff]
    %v289 = vld [vmem:[#allocation5 + $0x610] sm:$0xff]
    %v290 = vld [vmem:[#allocation5 + $0x618] sm:$0xff]
    %v291 = vld [vmem:[#allocation5 + $0x620] sm:$0xff]
    %v292 = vld [vmem:[#allocation5 + $0x628] sm:$0xff]
    %v293 = vld [vmem:[#allocation5 + $0x630] sm:$0xff]
    %v294 = vld [vmem:[#allocation5 + $0x638] sm:$0xff]
    %v295 = vld [vmem:[#allocation5 + $0x640] sm:$0xff]
    %v296 = vld [vmem:[#allocation5 + $0x648] sm:$0xff]
    %v297 = vld [vmem:[#allocation5 + $0x650] sm:$0xff]
    %v298 = vld [vmem:[#allocation5 + $0x658] sm:$0xff]
    %v299 = vld [vmem:[#allocation5 + $0x660] sm:$0xff]
    %v300 = vld [vmem:[#allocation5 + $0x668] sm:$0xff]
    %v301 = vld [vmem:[#allocation5 + $0x670] sm:$0xff]
    %v302 = vld [vmem:[#allocation5 + $0x678] sm:$0xff]
    %v303 = vld [vmem:[#allocation5 + $0x680] sm:$0xff]
    %v304 = vld [vmem:[#allocation5 + $0x688] sm:$0xff]
    %v305 = vld [vmem:[#allocation5 + $0x690] sm:$0xff]
    %v306 = vld [vmem:[#allocation5 + $0x698] sm:$0xff]
    %v307 = vld [vmem:[#allocation5 + $0x6a0] sm:$0xff]
    %v308 = vld [vmem:[#allocation5 + $0x6a8] sm:$0xff]
    %v309 = vld [vmem:[#allocation5 + $0x6b0] sm:$0xff]
    %v310 = vld [vmem:[#allocation5 + $0x6b8] sm:$0xff]
    %v311 = vld [vmem:[#allocation5 + $0x6c0] sm:$0xff]
    %v312 = vld [vmem:[#allocation5 + $0x6c8] sm:$0xff]
    %v313 = vld [vmem:[#allocation5 + $0x6d0] sm:$0xff]
    %v314 = vld [vmem:[#allocation5 + $0x6d8] sm:$0xff]
    %v315 = vld [vmem:[#allocation5 + $0x6e0] sm:$0xff]
    %v316 = vld [vmem:[#allocation5 + $0x6e8] sm:$0xff]
    %v317 = vld [vmem:[#allocation5 + $0x6f0] sm:$0xff]
    %v318 = vld [vmem:[#allocation5 + $0x6f8] sm:$0xff]
    %v319 = vld [vmem:[#allocation5 + $0x700] sm:$0xff]
    %v320 = vld [vmem:[#allocation5 + $0x708] sm:$0xff]
    %v321 = vld [vmem:[#allocation5 + $0x710] sm:$0xff]
    %v322 = vld [vmem:[#allocation5 + $0x718] sm:$0xff]
    %v323 = vld [vmem:[#allocation5 + $0x720] sm:$0xff]
    %v324 = vld [vmem:[#allocation5 + $0x728] sm:$0xff]
    %v325 = vld [vmem:[#allocation5 + $0x730] sm:$0xff]
    %v326 = vld [vmem:[#allocation5 + $0x738] sm:$0xff]
    %v327 = vld [vmem:[#allocation5 + $0x740] sm:$0xff]
    %v328 = vld [vmem:[#allocation5 + $0x748] sm:$0xff]
    %v329 = vld [vmem:[#allocation5 + $0x750] sm:$0xff]
    %v330 = vld [vmem:[#allocation5 + $0x758] sm:$0xff]
    %v331 = vld [vmem:[#allocation5 + $0x760] sm:$0xff]
    %v332 = vld [vmem:[#allocation5 + $0x768] sm:$0xff]
    %v333 = vld [vmem:[#allocation5 + $0x770] sm:$0xff]
    %v334 = vld [vmem:[#allocation5 + $0x778] sm:$0xff]
    %v335 = vld [vmem:[#allocation5 + $0x780] sm:$0xff]
    %v336 = vld [vmem:[#allocation5 + $0x788] sm:$0xff]
    %v337 = vld [vmem:[#allocation5 + $0x790] sm:$0xff]
    %v338 = vld [vmem:[#allocation5 + $0x798] sm:$0xff]
    %v339 = vld [vmem:[#allocation5 + $0x7a0] sm:$0xff]
    %v340 = vld [vmem:[#allocation5 + $0x7a8] sm:$0xff]
    %v341 = vld [vmem:[#allocation5 + $0x7b0] sm:$0xff]
    %v342 = vld [vmem:[#allocation5 + $0x7b8] sm:$0xff]
    %v343 = vld [vmem:[#allocation5 + $0x7c0] sm:$0xff]
    %v344 = vld [vmem:[#allocation5 + $0x7c8] sm:$0xff]
    %v345 = vld [vmem:[#allocation5 + $0x7d0] sm:$0xff]
    %v346 = vld [vmem:[#allocation5 + $0x7d8] sm:$0xff]
    %v347 = vld [vmem:[#allocation5 + $0x7e0] sm:$0xff]
    %v348 = vld [vmem:[#allocation5 + $0x7e8] sm:$0xff]
    %v349 = vld [vmem:[#allocation5 + $0x7f0] sm:$0xff]
    %v350 = vld [vmem:[#allocation5 + $0x7f8] sm:$0xff]
    %v351 = vld [vmem:[#allocation5 + $0x800] sm:$0xff]
    %v352 = vld [vmem:[#allocation5 + $0x808] sm:$0xff]
    %v353 = vld [vmem:[#allocation5 + $0x810] sm:$0xff]
    %v354 = vld [vmem:[#allocation5 + $0x818] sm:$0xff]
    %v355 = vld [vmem:[#allocation5 + $0x820] sm:$0xff]
    %v356 = vld [vmem:[#allocation5 + $0x828] sm:$0xff]
    %v357 = vld [vmem:[#allocation5 + $0x830] sm:$0xff]
    %v358 = vld [vmem:[#allocation5 + $0x838] sm:$0xff]
    %v359 = vld [vmem:[#allocation5 + $0x840] sm:$0xff]
    %v360 = vld [vmem:[#allocation5 + $0x848] sm:$0xff]
    %v361 = vld [vmem:[#allocation5 + $0x850] sm:$0xff]
    %v362 = vld [vmem:[#allocation5 + $0x858] sm:$0xff]
    %v363 = vld [vmem:[#allocation5 + $0x860] sm:$0xff]
    %v364 = vld [vmem:[#allocation5 + $0x868] sm:$0xff]
    %v365 = vld [vmem:[#allocation5 + $0x870] sm:$0xff]
    %v366 = vld [vmem:[#allocation5 + $0x878] sm:$0xff]
    %v367 = vld [vmem:[#allocation5 + $0x880] sm:$0xff]
    %v368 = vld [vmem:[#allocation5 + $0x888] sm:$0xff]
    %v369 = vld [vmem:[#allocation5 + $0x890] sm:$0xff]
    %v370 = vld [vmem:[#allocation5 + $0x898] sm:$0xff]
    %v371 = vld [vmem:[#allocation5 + $0x8a0] sm:$0xff]
    %v372 = vld [vmem:[#allocation5 + $0x8a8] sm:$0xff]
    %v373 = vld [vmem:[#allocation5 + $0x8b0] sm:$0xff]
    %v374 = vld [vmem:[#allocation5 + $0x8b8] sm:$0xff]
    %v375 = vld [vmem:[#allocation5 + $0x8c0] sm:$0xff]
    %v376 = vld [vmem:[#allocation5 + $0x8c8] sm:$0xff]
    %v377 = vld [vmem:[#allocation5 + $0x8d0] sm:$0xff]
    %v378 = vld [vmem:[#allocation5 + $0x8d8] sm:$0xff]
    %v379 = vld [vmem:[#allocation5 + $0x8e0] sm:$0xff]
    %v380 = vld [vmem:[#allocation5 + $0x8e8] sm:$0xff]
    %v381 = vld [vmem:[#allocation5 + $0x8f0] sm:$0xff]
    %v382 = vld [vmem:[#allocation5 + $0x8f8] sm:$0xff]
    %v383 = vld [vmem:[#allocation5 + $0x900] sm:$0xff]
    %v384 = vld [vmem:[#allocation5 + $0x908] sm:$0xff]
    %v385 = vld [vmem:[#allocation5 + $0x910] sm:$0xff]
    %v386 = vld [vmem:[#allocation5 + $0x918] sm:$0xff]
    %v387 = vld [vmem:[#allocation5 + $0x920] sm:$0xff]
    %v388 = vld [vmem:[#allocation5 + $0x928] sm:$0xff]
    %v389 = vld [vmem:[#allocation5 + $0x930] sm:$0xff]
    %v390 = vld [vmem:[#allocation5 + $0x938] sm:$0xff]
    %v391 = vld [vmem:[#allocation5 + $0x940] sm:$0xff]
    %v392 = vld [vmem:[#allocation5 + $0x948] sm:$0xff]
    %v393 = vld [vmem:[#allocation5 + $0x950] sm:$0xff]
    %v394 = vld [vmem:[#allocation5 + $0x958] sm:$0xff]
    %v395 = vld [vmem:[#allocation5 + $0x960] sm:$0xff]
    %v396 = vld [vmem:[#allocation5 + $0x968] sm:$0xff]
    %v397 = vld [vmem:[#allocation5 + $0x970] sm:$0xff]
    %v398 = vld [vmem:[#allocation5 + $0x978] sm:$0xff]
    %v399 = vld [vmem:[#allocation5 + $0x980] sm:$0xff]
    %v400 = vld [vmem:[#allocation5 + $0x988] sm:$0xff]
    %v401 = vld [vmem:[#allocation5 + $0x990] sm:$0xff]
    %v402 = vld [vmem:[#allocation5 + $0x998] sm:$0xff]
    %v403 = vld [vmem:[#allocation5 + $0x9a0] sm:$0xff]
    %v404 = vld [vmem:[#allocation5 + $0x9a8] sm:$0xff]
    %v405 = vld [vmem:[#allocation5 + $0x9b0] sm:$0xff]
    %v406 = vld [vmem:[#allocation5 + $0x9b8] sm:$0xff]
    %v407 = vld [vmem:[#allocation5 + $0x9c0] sm:$0xff]
    %v408 = vld [vmem:[#allocation5 + $0x9c8] sm:$0xff]
    %v409 = vld [vmem:[#allocation5 + $0x9d0] sm:$0xff]
    %v410 = vld [vmem:[#allocation5 + $0x9d8] sm:$0xff]
    %v411 = vld [vmem:[#allocation5 + $0x9e0] sm:$0xff]
    %v412 = vld [vmem:[#allocation5 + $0x9e8] sm:$0xff]
    %v413 = vld [vmem:[#allocation5 + $0x9f0] sm:$0xff]
    %v414 = vld [vmem:[#allocation5 + $0x9f8] sm:$0xff]
    %v415 = vld [vmem:[#allocation5 + $0xa00] sm:$0xff]
    %v416 = vld [vmem:[#allocation5 + $0xa08] sm:$0xff]
    %v417 = vld [vmem:[#allocation5 + $0xa10] sm:$0xff]
    %v418 = vld [vmem:[#allocation5 + $0xa18] sm:$0xff]
    %v419 = vld [vmem:[#allocation5 + $0xa20] sm:$0xff]
    %v420 = vld [vmem:[#allocation5 + $0xa28] sm:$0xff]
    %v421 = vld [vmem:[#allocation5 + $0xa30] sm:$0xff]
    %v422 = vld [vmem:[#allocation5 + $0xa38] sm:$0xff]
    %v423 = vld [vmem:[#allocation5 + $0xa40] sm:$0xff]
    %v424 = vld [vmem:[#allocation5 + $0xa48] sm:$0xff]
    %v425 = vld [vmem:[#allocation5 + $0xa50] sm:$0xff]
    %v426 = vld [vmem:[#allocation5 + $0xa58] sm:$0xff]
    %v427 = vld [vmem:[#allocation5 + $0xa60] sm:$0xff]
    %v428 = vld [vmem:[#allocation5 + $0xa68] sm:$0xff]
    %v429 = vld [vmem:[#allocation5 + $0xa70] sm:$0xff]
    %v430 = vld [vmem:[#allocation5 + $0xa78] sm:$0xff]
    %v431 = vld [vmem:[#allocation5 + $0xa80] sm:$0xff]
    %v432 = vld [vmem:[#allocation5 + $0xa88] sm:$0xff]
    %v433 = vld [vmem:[#allocation5 + $0xa90] sm:$0xff]
    %v434 = vld [vmem:[#allocation5 + $0xa98] sm:$0xff]
    %v435 = vld [vmem:[#allocation5 + $0xaa0] sm:$0xff]
    %v436 = vld [vmem:[#allocation5 + $0xaa8] sm:$0xff]
    %v437 = vld [vmem:[#allocation5 + $0xab0] sm:$0xff]
    %v438 = vld [vmem:[#allocation5 + $0xab8] sm:$0xff]
    %v439 = vld [vmem:[#allocation5 + $0xac0] sm:$0xff]
    %v440 = vld [vmem:[#allocation5 + $0xac8] sm:$0xff]
    %v441 = vld [vmem:[#allocation5 + $0xad0] sm:$0xff]
    %v442 = vld [vmem:[#allocation5 + $0xad8] sm:$0xff]
    %v443 = vld [vmem:[#allocation5 + $0xae0] sm:$0xff]
    %v444 = vld [vmem:[#allocation5 + $0xae8] sm:$0xff]
    %v445 = vld [vmem:[#allocation5 + $0xaf0] sm:$0xff]
    %v446 = vld [vmem:[#allocation5 + $0xaf8] sm:$0xff]
    %v447 = vld [vmem:[#allocation5 + $0xb00] sm:$0xff]
    %v448 = vld [vmem:[#allocation5 + $0xb08] sm:$0xff]
    %v449 = vld [vmem:[#allocation5 + $0xb10] sm:$0xff]
    %v450 = vld [vmem:[#allocation5 + $0xb18] sm:$0xff]
    %v451 = vld [vmem:[#allocation5 + $0xb20] sm:$0xff]
    %v452 = vld [vmem:[#allocation5 + $0xb28] sm:$0xff]
    %v453 = vld [vmem:[#allocation5 + $0xb30] sm:$0xff]
    %v454 = vld [vmem:[#allocation5 + $0xb38] sm:$0xff]
    %v455 = vld [vmem:[#allocation5 + $0xb40] sm:$0xff]
    %v456 = vld [vmem:[#allocation5 + $0xb48] sm:$0xff]
    %v457 = vld [vmem:[#allocation5 + $0xb50] sm:$0xff]
    %v458 = vld [vmem:[#allocation5 + $0xb58] sm:$0xff]
    %v459 = vld [vmem:[#allocation5 + $0xb60] sm:$0xff]
    %v460 = vld [vmem:[#allocation5 + $0xb68] sm:$0xff]
    %v461 = vld [vmem:[#allocation5 + $0xb70] sm:$0xff]
    %v462 = vld [vmem:[#allocation5 + $0xb78] sm:$0xff]
    %v463 = vld [vmem:[#allocation5 + $0xb80] sm:$0xff]
    %v464 = vld [vmem:[#allocation5 + $0xb88] sm:$0xff]
    %v465 = vld [vmem:[#allocation5 + $0xb90] sm:$0xff]
    %v466 = vld [vmem:[#allocation5 + $0xb98] sm:$0xff]
    %v467 = vld [vmem:[#allocation5 + $0xba0] sm:$0xff]
    %v468 = vld [vmem:[#allocation5 + $0xba8] sm:$0xff]
    %v469 = vld [vmem:[#allocation5 + $0xbb0] sm:$0xff]
    %v470 = vld [vmem:[#allocation5 + $0xbb8] sm:$0xff]
    %v471 = vld [vmem:[#allocation5 + $0xbc0] sm:$0xff]
    %v472 = vld [vmem:[#allocation5 + $0xbc8] sm:$0xff]
    %v473 = vld [vmem:[#allocation5 + $0xbd0] sm:$0xff]
    %v474 = vld [vmem:[#allocation5 + $0xbd8] sm:$0xff]
    %v475 = vld [vmem:[#allocation5 + $0xbe0] sm:$0xff]
    %v476 = vld [vmem:[#allocation5 + $0xbe8] sm:$0xff]
    %v477 = vld [vmem:[#allocation5 + $0xbf0] sm:$0xff]
    %v478 = vld [vmem:[#allocation5 + $0xbf8] sm:$0xff]
    %v479 = vld [vmem:[#allocation5 + $0xc00] sm:$0xff]
    %v480 = vld [vmem:[#allocation5 + $0xc08] sm:$0xff]
    %v481 = vld [vmem:[#allocation5 + $0xc10] sm:$0xff]
    %v482 = vld [vmem:[#allocation5 + $0xc18] sm:$0xff]
    %v483 = vld [vmem:[#allocation5 + $0xc20] sm:$0xff]
    %v484 = vld [vmem:[#allocation5 + $0xc28] sm:$0xff]
    %v485 = vld [vmem:[#allocation5 + $0xc30] sm:$0xff]
    %v486 = vld [vmem:[#allocation5 + $0xc38] sm:$0xff]
    %v487 = vld [vmem:[#allocation5 + $0xc40] sm:$0xff]
    %v488 = vld [vmem:[#allocation5 + $0xc48] sm:$0xff]
    %v489 = vld [vmem:[#allocation5 + $0xc50] sm:$0xff]
    %v490 = vld [vmem:[#allocation5 + $0xc58] sm:$0xff]
    %v491 = vld [vmem:[#allocation5 + $0xc60] sm:$0xff]
    %v492 = vld [vmem:[#allocation5 + $0xc68] sm:$0xff]
    %v493 = vld [vmem:[#allocation5 + $0xc70] sm:$0xff]
    %v494 = vld [vmem:[#allocation5 + $0xc78] sm:$0xff]
    %v495 = vld [vmem:[#allocation5 + $0xc80] sm:$0xff]
    %v496 = vld [vmem:[#allocation5 + $0xc88] sm:$0xff]
    %v497 = vld [vmem:[#allocation5 + $0xc90] sm:$0xff]
    %v498 = vld [vmem:[#allocation5 + $0xc98] sm:$0xff]
    %v499 = vld [vmem:[#allocation5 + $0xca0] sm:$0xff]
    %v500 = vld [vmem:[#allocation5 + $0xca8] sm:$0xff]
    %v501 = vld [vmem:[#allocation5 + $0xcb0] sm:$0xff]
    %v502 = vld [vmem:[#allocation5 + $0xcb8] sm:$0xff]
    %v503 = vld [vmem:[#allocation5 + $0xcc0] sm:$0xff]
    %v504 = vld [vmem:[#allocation5 + $0xcc8] sm:$0xff]
    %v505 = vld [vmem:[#allocation5 + $0xcd0] sm:$0xff]
    %v506 = vld [vmem:[#allocation5 + $0xcd8] sm:$0xff]
    %v507 = vld [vmem:[#allocation5 + $0xce0] sm:$0xff]
    %v508 = vld [vmem:[#allocation5 + $0xce8] sm:$0xff]
    %v509 = vld [vmem:[#allocation5 + $0xcf0] sm:$0xff]
    %v510 = vld [vmem:[#allocation5 + $0xcf8] sm:$0xff]
    %v511 = vld [vmem:[#allocation5 + $0xd00] sm:$0xff]
    %v512 = vld [vmem:[#allocation5 + $0xd08] sm:$0xff]
    %v513 = vld [vmem:[#allocation5 + $0xd10] sm:$0xff]
    %v514 = vld [vmem:[#allocation5 + $0xd18] sm:$0xff]
    %v515 = vld [vmem:[#allocation5 + $0xd20] sm:$0xff]
    %v516 = vld [vmem:[#allocation5 + $0xd28] sm:$0xff]
    %v517 = vld [vmem:[#allocation5 + $0xd30] sm:$0xff]
    %v518 = vld [vmem:[#allocation5 + $0xd38] sm:$0xff]
    %v519 = vld [vmem:[#allocation5 + $0xd40] sm:$0xff]
    %v520 = vld [vmem:[#allocation5 + $0xd48] sm:$0xff]
    %v521 = vld [vmem:[#allocation5 + $0xd50] sm:$0xff]
    %v522 = vld [vmem:[#allocation5 + $0xd58] sm:$0xff]
    %v523 = vld [vmem:[#allocation5 + $0xd60] sm:$0xff]
    %v524 = vld [vmem:[#allocation5 + $0xd68] sm:$0xff]
    %v525 = vld [vmem:[#allocation5 + $0xd70] sm:$0xff]
    %v526 = vld [vmem:[#allocation5 + $0xd78] sm:$0xff]
    %v527 = vld [vmem:[#allocation5 + $0xd80] sm:$0xff]
    %v528 = vld [vmem:[#allocation5 + $0xd88] sm:$0xff]
    %v529 = vld [vmem:[#allocation5 + $0xd90] sm:$0xff]
    %v530 = vld [vmem:[#allocation5 + $0xd98] sm:$0xff]
    %v531 = vld [vmem:[#allocation5 + $0xda0] sm:$0xff]
    %v532 = vld [vmem:[#allocation5 + $0xda8] sm:$0xff]
    %v533 = vld [vmem:[#allocation5 + $0xdb0] sm:$0xff]
    %v534 = vld [vmem:[#allocation5 + $0xdb8] sm:$0xff]
    %v535 = vld [vmem:[#allocation5 + $0xdc0] sm:$0xff]
    %v536 = vld [vmem:[#allocation5 + $0xdc8] sm:$0xff]
    %v537 = vld [vmem:[#allocation5 + $0xdd0] sm:$0xff]
    %v538 = vld [vmem:[#allocation5 + $0xdd8] sm:$0xff]
    %v539 = vld [vmem:[#allocation5 + $0xde0] sm:$0xff]
    %v540 = vld [vmem:[#allocation5 + $0xde8] sm:$0xff]
    %v541 = vld [vmem:[#allocation5 + $0xdf0] sm:$0xff]
    %v542 = vld [vmem:[#allocation5 + $0xdf8] sm:$0xff]
    %v543 = vld [vmem:[#allocation5 + $0xe00] sm:$0xff]
    %v544 = vld [vmem:[#allocation5 + $0xe08] sm:$0xff]
    %v545 = vld [vmem:[#allocation5 + $0xe10] sm:$0xff]
    %v546 = vld [vmem:[#allocation5 + $0xe18] sm:$0xff]
    %v547 = vld [vmem:[#allocation5 + $0xe20] sm:$0xff]
    %v548 = vld [vmem:[#allocation5 + $0xe28] sm:$0xff]
    %v549 = vld [vmem:[#allocation5 + $0xe30] sm:$0xff]
    %v550 = vld [vmem:[#allocation5 + $0xe38] sm:$0xff]
    %v551 = vld [vmem:[#allocation5 + $0xe40] sm:$0xff]
    %v552 = vld [vmem:[#allocation5 + $0xe48] sm:$0xff]
    %v553 = vld [vmem:[#allocation5 + $0xe50] sm:$0xff]
    %v554 = vld [vmem:[#allocation5 + $0xe58] sm:$0xff]
    %v555 = vld [vmem:[#allocation5 + $0xe60] sm:$0xff]
    %v556 = vld [vmem:[#allocation5 + $0xe68] sm:$0xff]
    %v557 = vld [vmem:[#allocation5 + $0xe70] sm:$0xff]
    %v558 = vld [vmem:[#allocation5 + $0xe78] sm:$0xff]
    %v559 = vld [vmem:[#allocation5 + $0xe80] sm:$0xff]
    %v560 = vld [vmem:[#allocation5 + $0xe88] sm:$0xff]
    %v561 = vld [vmem:[#allocation5 + $0xe90] sm:$0xff]
    %v562 = vld [vmem:[#allocation5 + $0xe98] sm:$0xff]
    %v563 = vld [vmem:[#allocation5 + $0xea0] sm:$0xff]
    %v564 = vld [vmem:[#allocation5 + $0xea8] sm:$0xff]
    %v565 = vld [vmem:[#allocation5 + $0xeb0] sm:$0xff]
    %v566 = vld [vmem:[#allocation5 + $0xeb8] sm:$0xff]
    %v567 = vld [vmem:[#allocation5 + $0xec0] sm:$0xff]
    %v568 = vld [vmem:[#allocation5 + $0xec8] sm:$0xff]
    %v569 = vld [vmem:[#allocation5 + $0xed0] sm:$0xff]
    %v570 = vld [vmem:[#allocation5 + $0xed8] sm:$0xff]
    %v571 = vld [vmem:[#allocation5 + $0xee0] sm:$0xff]
    %v572 = vld [vmem:[#allocation5 + $0xee8] sm:$0xff]
    %v573 = vld [vmem:[#allocation5 + $0xef0] sm:$0xff]
    %v574 = vld [vmem:[#allocation5 + $0xef8] sm:$0xff]
    %v575 = vld [vmem:[#allocation5 + $0xf00] sm:$0xff]
    %v576 = vld [vmem:[#allocation5 + $0xf08] sm:$0xff]
    %v577 = vld [vmem:[#allocation5 + $0xf10] sm:$0xff]
    %v578 = vld [vmem:[#allocation5 + $0xf18] sm:$0xff]
    %v579 = vld [vmem:[#allocation5 + $0xf20] sm:$0xff]
    %v580 = vld [vmem:[#allocation5 + $0xf28] sm:$0xff]
    %v581 = vld [vmem:[#allocation5 + $0xf30] sm:$0xff]
    %v582 = vld [vmem:[#allocation5 + $0xf38] sm:$0xff]
    %v583 = vld [vmem:[#allocation5 + $0xf40] sm:$0xff]
    %v584 = vld [vmem:[#allocation5 + $0xf48] sm:$0xff]
    %v585 = vld [vmem:[#allocation5 + $0xf50] sm:$0xff]
    %v586 = vld [vmem:[#allocation5 + $0xf58] sm:$0xff]
    %v587 = vld [vmem:[#allocation5 + $0xf60] sm:$0xff]
    %v588 = vld [vmem:[#allocation5 + $0xf68] sm:$0xff]
    %v589 = vld [vmem:[#allocation5 + $0xf70] sm:$0xff]
    %v590 = vld [vmem:[#allocation5 + $0xf78] sm:$0xff]
    %v591 = vld [vmem:[#allocation5 + $0xf80] sm:$0xff]
    %v592 = vld [vmem:[#allocation5 + $0xf88] sm:$0xff]
    %v593 = vld [vmem:[#allocation5 + $0xf90] sm:$0xff]
    %v594 = vld [vmem:[#allocation5 + $0xf98] sm:$0xff]
    %v595 = vld [vmem:[#allocation5 + $0xfa0] sm:$0xff]
    %v596 = vld [vmem:[#allocation5 + $0xfa8] sm:$0xff]
    %v597 = vld [vmem:[#allocation5 + $0xfb0] sm:$0xff]
    %v598 = vld [vmem:[#allocation5 + $0xfb8] sm:$0xff]
    %v599 = vld [vmem:[#allocation5 + $0xfc0] sm:$0xff]
    %v600 = vld [vmem:[#allocation5 + $0xfc8] sm:$0xff]
    %v601 = vld [vmem:[#allocation5 + $0xfd0] sm:$0xff]
    %v602 = vld [vmem:[#allocation5 + $0xfd8] sm:$0xff]
    %v603 = vld [vmem:[#allocation5 + $0xfe0] sm:$0xff]
    %v604 = vld [vmem:[#allocation5 + $0xfe8] sm:$0xff]
    %v605 = vld [vmem:[#allocation5 + $0xff0] sm:$0xff]
    %v606 = vld [vmem:[#allocation5 + $0xff8] sm:$0xff]
    %v607 = vld [vmem:[#allocation8] ss:$2 sm:$0xf]
    %v609 = vlaneseq
    %v610 = vshrl.u32 %v609, 7
    %v611 = vsub.s32 0, %v610
    %v612 = vrot.slane %v607, %v611
    %v613 = vlaneseq
    %v614 = vshrl.u32 %v613, 7
    %v615 = vsub.s32 1, %v614
    %v616 = vrot.slane %v607, %v615
    %v617 = vlaneseq
    %v618 = vshrl.u32 %v617, 7
    %v619 = vsub.s32 2, %v618
    %v620 = vrot.slane %v607, %v619
    %v621 = vlaneseq
    %v622 = vshrl.u32 %v621, 7
    %v623 = vsub.s32 3, %v622
    %v624 = vrot.slane %v607, %v623
    %629 = vmatprep.subr.mxu0 %v96
    %630 = vmatpush1.msra.mxu0 %v95
    %631 = vmatprep.subr.mxu0 %v100
    %632 = vmatpush1.msra.mxu0 %v99
    %633 = vmatprep.subr.mxu0 %v104
    %634 = vmatpush1.msra.mxu0 %v103
    %635 = vmatprep.subr.mxu0 %v108
    %636 = vmatpush1.msra.mxu0 %v107
    %637 = vmatprep.subr.mxu0 %v112
    %638 = vmatpush1.msra.mxu0 %v111
    %639 = vmatprep.subr.mxu0 %v116
    %640 = vmatpush1.msra.mxu0 %v115
    %641 = vmatprep.subr.mxu0 %v120
    %642 = vmatpush1.msra.mxu0 %v119
    %643 = vmatprep.subr.mxu0 %v124
    %644 = vmatpush1.msra.mxu0 %v123
    %645 = vmatprep.subr.mxu0 %v128
    %646 = vmatpush1.msra.mxu0 %v127
    %647 = vmatprep.subr.mxu0 %v132
    %648 = vmatpush1.msra.mxu0 %v131
    %649 = vmatprep.subr.mxu0 %v136
    %650 = vmatpush1.msra.mxu0 %v135
    %651 = vmatprep.subr.mxu0 %v140
    %652 = vmatpush1.msra.mxu0 %v139
    %653 = vmatprep.subr.mxu0 %v144
    %654 = vmatpush1.msra.mxu0 %v143
    %655 = vmatprep.subr.mxu0 %v148
    %656 = vmatpush1.msra.mxu0 %v147
    %657 = vmatprep.subr.mxu0 %v152
    %658 = vmatpush1.msra.mxu0 %v151
    %659 = vmatprep.subr.mxu0 %v156
    %660 = vmatpush1.msra.mxu0 %v155
    %661 = vmatprep.subr.mxu0 %v160
    %662 = vmatpush1.msra.mxu0 %v159
    %663 = vmatprep.subr.mxu0 %v164
    %664 = vmatpush1.msra.mxu0 %v163
    %665 = vmatprep.subr.mxu0 %v168
    %666 = vmatpush1.msra.mxu0 %v167
    %667 = vmatprep.subr.mxu0 %v172
    %668 = vmatpush1.msra.mxu0 %v171
    %669 = vmatprep.subr.mxu0 %v176
    %670 = vmatpush1.msra.mxu0 %v175
    %671 = vmatprep.subr.mxu0 %v180
    %672 = vmatpush1.msra.mxu0 %v179
    %673 = vmatprep.subr.mxu0 %v184
    %674 = vmatpush1.msra.mxu0 %v183
    %675 = vmatprep.subr.mxu0 %v188
    %676 = vmatpush1.msra.mxu0 %v187
    %677 = vmatprep.subr.mxu0 %v192
    %678 = vmatpush1.msra.mxu0 %v191
    %679 = vmatprep.subr.mxu0 %v196
    %680 = vmatpush1.msra.mxu0 %v195
    %681 = vmatprep.subr.mxu0 %v200
    %682 = vmatpush1.msra.mxu0 %v199
    %683 = vmatprep.subr.mxu0 %v204
    %684 = vmatpush1.msra.mxu0 %v203
    %685 = vmatprep.subr.mxu0 %v208
    %686 = vmatpush1.msra.mxu0 %v207
    %687 = vmatprep.subr.mxu0 %v212
    %688 = vmatpush1.msra.mxu0 %v211
    %689 = vmatprep.subr.mxu0 %v216
    %690 = vmatpush1.msra.mxu0 %v215
    %691 = vmatprep.subr.mxu0 %v220
    %692 = vmatpush1.msra.mxu0 %v219
    %693 = vmatprep.mubr.f32.mxu0 %v88
    %694 = vmatmul.mubr.f32.gmra.mrb[0].mxu0 %v87
    %v695 = vpop.f32.mrb[0].mxu0
    %v696 = vadd.f32 %v612, %v695
    %v697 = vpop.f32.mrb[0].mxu0
    %v698 = vadd.f32 %v616, %v697
    %699 = vdwg.mxu0
    %700 = vmatprep.subr.mxu0 %v224
    %701 = vmatpush1.msra.mxu0 %v223
    %702 = vmatprep.subr.mxu0 %v228
    %703 = vmatpush1.msra.mxu0 %v227
    %704 = vmatprep.subr.mxu0 %v232
    %705 = vmatpush1.msra.mxu0 %v231
    %706 = vmatprep.subr.mxu0 %v236
    %707 = vmatpush1.msra.mxu0 %v235
    %708 = vmatprep.subr.mxu0 %v240
    %709 = vmatpush1.msra.mxu0 %v239
    %710 = vmatprep.subr.mxu0 %v244
    %711 = vmatpush1.msra.mxu0 %v243
    %712 = vmatprep.subr.mxu0 %v248
    %713 = vmatpush1.msra.mxu0 %v247
    %714 = vmatprep.subr.mxu0 %v252
    %715 = vmatpush1.msra.mxu0 %v251
    %716 = vmatprep.subr.mxu0 %v256
    %717 = vmatpush1.msra.mxu0 %v255
    %718 = vmatprep.subr.mxu0 %v260
    %719 = vmatpush1.msra.mxu0 %v259
    %720 = vmatprep.subr.mxu0 %v264
    %721 = vmatpush1.msra.mxu0 %v263
    %722 = vmatprep.subr.mxu0 %v268
    %723 = vmatpush1.msra.mxu0 %v267
    %724 = vmatprep.subr.mxu0 %v272
    %725 = vmatpush1.msra.mxu0 %v271
    %726 = vmatprep.subr.mxu0 %v276
    %727 = vmatpush1.msra.mxu0 %v275
    %728 = vmatprep.subr.mxu0 %v280
    %729 = vmatpush1.msra.mxu0 %v279
    %730 = vmatprep.subr.mxu0 %v284
    %731 = vmatpush1.msra.mxu0 %v283
    %732 = vmatprep.subr.mxu0 %v288
    %733 = vmatpush1.msra.mxu0 %v287
    %734 = vmatprep.subr.mxu0 %v292
    %735 = vmatpush1.msra.mxu0 %v291
    %736 = vmatprep.subr.mxu0 %v296
    %737 = vmatpush1.msra.mxu0 %v295
    %738 = vmatprep.subr.mxu0 %v300
    %739 = vmatpush1.msra.mxu0 %v299
    %740 = vmatprep.subr.mxu0 %v304
    %741 = vmatpush1.msra.mxu0 %v303
    %742 = vmatprep.subr.mxu0 %v308
    %743 = vmatpush1.msra.mxu0 %v307
    %744 = vmatprep.subr.mxu0 %v312
    %745 = vmatpush1.msra.mxu0 %v311
    %746 = vmatprep.subr.mxu0 %v316
    %747 = vmatpush1.msra.mxu0 %v315
    %748 = vmatprep.subr.mxu0 %v320
    %749 = vmatpush1.msra.mxu0 %v319
    %750 = vmatprep.subr.mxu0 %v324
    %751 = vmatpush1.msra.mxu0 %v323
    %752 = vmatprep.subr.mxu0 %v328
    %753 = vmatpush1.msra.mxu0 %v327
    %754 = vmatprep.subr.mxu0 %v332
    %755 = vmatpush1.msra.mxu0 %v331
    %756 = vmatprep.subr.mxu0 %v336
    %757 = vmatpush1.msra.mxu0 %v335
    %758 = vmatprep.subr.mxu0 %v340
    %759 = vmatpush1.msra.mxu0 %v339
    %760 = vmatprep.subr.mxu0 %v344
    %761 = vmatpush1.msra.mxu0 %v343
    %762 = vmatprep.subr.mxu0 %v348
    %763 = vmatpush1.msra.mxu0 %v347
    %764 = vmatprep.mubr.f32.mxu0 %v90
    %765 = vmatmul.mubr.f32.gmra.mrb[0].mxu0 %v89
    %v766 = vpop.f32.mrb[0].mxu0
    %v767 = vadd.f32 %v696, %v766
    %v768 = vpop.f32.mrb[0].mxu0
    %v769 = vadd.f32 %v698, %v768
    %770 = vdwg.mxu0
    %771 = vmatprep.subr.mxu0 %v352
    %772 = vmatpush1.msra.mxu0 %v351
    %773 = vmatprep.subr.mxu0 %v356
    %774 = vmatpush1.msra.mxu0 %v355
    %775 = vmatprep.subr.mxu0 %v360
    %776 = vmatpush1.msra.mxu0 %v359
    %777 = vmatprep.subr.mxu0 %v364
    %778 = vmatpush1.msra.mxu0 %v363
    %779 = vmatprep.subr.mxu0 %v368
    %780 = vmatpush1.msra.mxu0 %v367
    %781 = vmatprep.subr.mxu0 %v372
    %782 = vmatpush1.msra.mxu0 %v371
    %783 = vmatprep.subr.mxu0 %v376
    %784 = vmatpush1.msra.mxu0 %v375
    %785 = vmatprep.subr.mxu0 %v380
    %786 = vmatpush1.msra.mxu0 %v379
    %787 = vmatprep.subr.mxu0 %v384
    %788 = vmatpush1.msra.mxu0 %v383
    %789 = vmatprep.subr.mxu0 %v388
    %790 = vmatpush1.msra.mxu0 %v387
    %791 = vmatprep.subr.mxu0 %v392
    %792 = vmatpush1.msra.mxu0 %v391
    %793 = vmatprep.subr.mxu0 %v396
    %794 = vmatpush1.msra.mxu0 %v395
    %795 = vmatprep.subr.mxu0 %v400
    %796 = vmatpush1.msra.mxu0 %v399
    %797 = vmatprep.subr.mxu0 %v404
    %798 = vmatpush1.msra.mxu0 %v403
    %799 = vmatprep.subr.mxu0 %v408
    %800 = vmatpush1.msra.mxu0 %v407
    %801 = vmatprep.subr.mxu0 %v412
    %802 = vmatpush1.msra.mxu0 %v411
    %803 = vmatprep.subr.mxu0 %v416
    %804 = vmatpush1.msra.mxu0 %v415
    %805 = vmatprep.subr.mxu0 %v420
    %806 = vmatpush1.msra.mxu0 %v419
    %807 = vmatprep.subr.mxu0 %v424
    %808 = vmatpush1.msra.mxu0 %v423
    %809 = vmatprep.subr.mxu0 %v428
    %810 = vmatpush1.msra.mxu0 %v427
    %811 = vmatprep.subr.mxu0 %v432
    %812 = vmatpush1.msra.mxu0 %v431
    %813 = vmatprep.subr.mxu0 %v436
    %814 = vmatpush1.msra.mxu0 %v435
    %815 = vmatprep.subr.mxu0 %v440
    %816 = vmatpush1.msra.mxu0 %v439
    %817 = vmatprep.subr.mxu0 %v444
    %818 = vmatpush1.msra.mxu0 %v443
    %819 = vmatprep.subr.mxu0 %v448
    %820 = vmatpush1.msra.mxu0 %v447
    %821 = vmatprep.subr.mxu0 %v452
    %822 = vmatpush1.msra.mxu0 %v451
    %823 = vmatprep.subr.mxu0 %v456
    %824 = vmatpush1.msra.mxu0 %v455
    %825 = vmatprep.subr.mxu0 %v460
    %826 = vmatpush1.msra.mxu0 %v459
    %827 = vmatprep.subr.mxu0 %v464
    %828 = vmatpush1.msra.mxu0 %v463
    %829 = vmatprep.subr.mxu0 %v468
    %830 = vmatpush1.msra.mxu0 %v467
    %831 = vmatprep.subr.mxu0 %v472
    %832 = vmatpush1.msra.mxu0 %v471
    %833 = vmatprep.subr.mxu0 %v476
    %834 = vmatpush1.msra.mxu0 %v475
    %835 = vmatprep.mubr.f32.mxu0 %v92
    %836 = vmatmul.mubr.f32.gmra.mrb[0].mxu0 %v91
    %v837 = vpop.f32.mrb[0].mxu0
    %v838 = vadd.f32 %v767, %v837
    %v839 = vpop.f32.mrb[0].mxu0
    %v840 = vadd.f32 %v769, %v839
    %841 = vdwg.mxu0
    %842 = vmatprep.subr.mxu0 %v480
    %843 = vmatpush1.msra.mxu0 %v479
    %844 = vmatprep.subr.mxu0 %v484
    %845 = vmatpush1.msra.mxu0 %v483
    %846 = vmatprep.subr.mxu0 %v488
    %847 = vmatpush1.msra.mxu0 %v487
    %848 = vmatprep.subr.mxu0 %v492
    %849 = vmatpush1.msra.mxu0 %v491
    %850 = vmatprep.subr.mxu0 %v496
    %851 = vmatpush1.msra.mxu0 %v495
    %852 = vmatprep.subr.mxu0 %v500
    %853 = vmatpush1.msra.mxu0 %v499
    %854 = vmatprep.subr.mxu0 %v504
    %855 = vmatpush1.msra.mxu0 %v503
    %856 = vmatprep.subr.mxu0 %v508
    %857 = vmatpush1.msra.mxu0 %v507
    %858 = vmatprep.subr.mxu0 %v512
    %859 = vmatpush1.msra.mxu0 %v511
    %860 = vmatprep.subr.mxu0 %v516
    %861 = vmatpush1.msra.mxu0 %v515
    %862 = vmatprep.subr.mxu0 %v520
    %863 = vmatpush1.msra.mxu0 %v519
    %864 = vmatprep.subr.mxu0 %v524
    %865 = vmatpush1.msra.mxu0 %v523
    %866 = vmatprep.subr.mxu0 %v528
    %867 = vmatpush1.msra.mxu0 %v527
    %868 = vmatprep.subr.mxu0 %v532
    %869 = vmatpush1.msra.mxu0 %v531
    %870 = vmatprep.subr.mxu0 %v536
    %871 = vmatpush1.msra.mxu0 %v535
    %872 = vmatprep.subr.mxu0 %v540
    %873 = vmatpush1.msra.mxu0 %v539
    %874 = vmatprep.subr.mxu0 %v544
    %875 = vmatpush1.msra.mxu0 %v543
    %876 = vmatprep.subr.mxu0 %v548
    %877 = vmatpush1.msra.mxu0 %v547
    %878 = vmatprep.subr.mxu0 %v552
    %879 = vmatpush1.msra.mxu0 %v551
    %880 = vmatprep.subr.mxu0 %v556
    %881 = vmatpush1.msra.mxu0 %v555
    %882 = vmatprep.subr.mxu0 %v560
    %883 = vmatpush1.msra.mxu0 %v559
    %884 = vmatprep.subr.mxu0 %v564
    %885 = vmatpush1.msra.mxu0 %v563
    %886 = vmatprep.subr.mxu0 %v568
    %887 = vmatpush1.msra.mxu0 %v567
    %888 = vmatprep.subr.mxu0 %v572
    %889 = vmatpush1.msra.mxu0 %v571
    %890 = vmatprep.subr.mxu0 %v576
    %891 = vmatpush1.msra.mxu0 %v575
    %892 = vmatprep.subr.mxu0 %v580
    %893 = vmatpush1.msra.mxu0 %v579
    %894 = vmatprep.subr.mxu0 %v584
    %895 = vmatpush1.msra.mxu0 %v583
    %896 = vmatprep.subr.mxu0 %v588
    %897 = vmatpush1.msra.mxu0 %v587
    %898 = vmatprep.subr.mxu0 %v592
    %899 = vmatpush1.msra.mxu0 %v591
    %900 = vmatprep.subr.mxu0 %v596
    %901 = vmatpush1.msra.mxu0 %v595
    %902 = vmatprep.subr.mxu0 %v600
    %903 = vmatpush1.msra.mxu0 %v599
    %904 = vmatprep.subr.mxu0 %v604
    %905 = vmatpush1.msra.mxu0 %v603
    %906 = vmatprep.mubr.f32.mxu0 %v94
    %907 = vmatmul.mubr.f32.gmra.mrb[0].mxu0 %v93
    %v908 = vpop.f32.mrb[0].mxu0
    %v909 = vadd.f32 %v838, %v908
    %v910 = vpop.f32.mrb[0].mxu0
    %v911 = vadd.f32 %v840, %v910
    %912 = vdwg.mxu0
    %913 = vmatprep.subr.mxu0 %v98
    %914 = vmatpush1.msra.mxu0 %v97
    %915 = vmatprep.subr.mxu0 %v102
    %916 = vmatpush1.msra.mxu0 %v101
    %917 = vmatprep.subr.mxu0 %v106
    %918 = vmatpush1.msra.mxu0 %v105
    %919 = vmatprep.subr.mxu0 %v110
    %920 = vmatpush1.msra.mxu0 %v109
    %921 = vmatprep.subr.mxu0 %v114
    %922 = vmatpush1.msra.mxu0 %v113
    %923 = vmatprep.subr.mxu0 %v118
    %924 = vmatpush1.msra.mxu0 %v117
    %925 = vmatprep.subr.mxu0 %v122
    %926 = vmatpush1.msra.mxu0 %v121
    %927 = vmatprep.subr.mxu0 %v126
    %928 = vmatpush1.msra.mxu0 %v125
    %929 = vmatprep.subr.mxu0 %v130
    %930 = vmatpush1.msra.mxu0 %v129
    %931 = vmatprep.subr.mxu0 %v134
    %932 = vmatpush1.msra.mxu0 %v133
    %933 = vmatprep.subr.mxu0 %v138
    %934 = vmatpush1.msra.mxu0 %v137
    %935 = vmatprep.subr.mxu0 %v142
    %936 = vmatpush1.msra.mxu0 %v141
    %937 = vmatprep.subr.mxu0 %v146
    %938 = vmatpush1.msra.mxu0 %v145
    %939 = vmatprep.subr.mxu0 %v150
    %940 = vmatpush1.msra.mxu0 %v149
    %941 = vmatprep.subr.mxu0 %v154
    %942 = vmatpush1.msra.mxu0 %v153
    %943 = vmatprep.subr.mxu0 %v158
    %944 = vmatpush1.msra.mxu0 %v157
    %945 = vmatprep.subr.mxu0 %v162
    %946 = vmatpush1.msra.mxu0 %v161
    %947 = vmatprep.subr.mxu0 %v166
    %948 = vmatpush1.msra.mxu0 %v165
    %949 = vmatprep.subr.mxu0 %v170
    %950 = vmatpush1.msra.mxu0 %v169
    %951 = vmatprep.subr.mxu0 %v174
    %952 = vmatpush1.msra.mxu0 %v173
    %953 = vmatprep.subr.mxu0 %v178
    %954 = vmatpush1.msra.mxu0 %v177
    %955 = vmatprep.subr.mxu0 %v182
    %956 = vmatpush1.msra.mxu0 %v181
    %957 = vmatprep.subr.mxu0 %v186
    %958 = vmatpush1.msra.mxu0 %v185
    %959 = vmatprep.subr.mxu0 %v190
    %960 = vmatpush1.msra.mxu0 %v189
    %961 = vmatprep.subr.mxu0 %v194
    %962 = vmatpush1.msra.mxu0 %v193
    %963 = vmatprep.subr.mxu0 %v198
    %964 = vmatpush1.msra.mxu0 %v197
    %965 = vmatprep.subr.mxu0 %v202
    %966 = vmatpush1.msra.mxu0 %v201
    %967 = vmatprep.subr.mxu0 %v206
    %968 = vmatpush1.msra.mxu0 %v205
    %969 = vmatprep.subr.mxu0 %v210
    %970 = vmatpush1.msra.mxu0 %v209
    %971 = vmatprep.subr.mxu0 %v214
    %972 = vmatpush1.msra.mxu0 %v213
    %973 = vmatprep.subr.mxu0 %v218
    %974 = vmatpush1.msra.mxu0 %v217
    %975 = vmatprep.subr.mxu0 %v222
    %976 = vmatpush1.msra.mxu0 %v221
    %977 = vmatprep.mubr.f32.mxu0 %v88
    %978 = vmatmul.mubr.f32.gmra.mrb[0].mxu0 %v87
    %v979 = vpop.f32.mrb[0].mxu0
    %v980 = vadd.f32 %v620, %v979
    %v981 = vpop.f32.mrb[0].mxu0
    %v982 = vadd.f32 %v624, %v981
    %983 = vdwg.mxu0
    %984 = vmatprep.subr.mxu0 %v226
    %985 = vmatpush1.msra.mxu0 %v225
    %986 = vmatprep.subr.mxu0 %v230
    %987 = vmatpush1.msra.mxu0 %v229
    %988 = vmatprep.subr.mxu0 %v234
    %989 = vmatpush1.msra.mxu0 %v233
    %990 = vmatprep.subr.mxu0 %v238
    %991 = vmatpush1.msra.mxu0 %v237
    %992 = vmatprep.subr.mxu0 %v242
    %993 = vmatpush1.msra.mxu0 %v241
    %994 = vmatprep.subr.mxu0 %v246
    %995 = vmatpush1.msra.mxu0 %v245
    %996 = vmatprep.subr.mxu0 %v250
    %997 = vmatpush1.msra.mxu0 %v249
    %998 = vmatprep.subr.mxu0 %v254
    %999 = vmatpush1.msra.mxu0 %v253
    %1000 = vmatprep.subr.mxu0 %v258
    %1001 = vmatpush1.msra.mxu0 %v257
    %1002 = vmatprep.subr.mxu0 %v262
    %1003 = vmatpush1.msra.mxu0 %v261
    %1004 = vmatprep.subr.mxu0 %v266
    %1005 = vmatpush1.msra.mxu0 %v265
    %1006 = vmatprep.subr.mxu0 %v270
    %1007 = vmatpush1.msra.mxu0 %v269
    %1008 = vmatprep.subr.mxu0 %v274
    %1009 = vmatpush1.msra.mxu0 %v273
    %1010 = vmatprep.subr.mxu0 %v278
    %1011 = vmatpush1.msra.mxu0 %v277
    %1012 = vmatprep.subr.mxu0 %v282
    %1013 = vmatpush1.msra.mxu0 %v281
    %1014 = vmatprep.subr.mxu0 %v286
    %1015 = vmatpush1.msra.mxu0 %v285
    %1016 = vmatprep.subr.mxu0 %v290
    %1017 = vmatpush1.msra.mxu0 %v289
    %1018 = vmatprep.subr.mxu0 %v294
    %1019 = vmatpush1.msra.mxu0 %v293
    %1020 = vmatprep.subr.mxu0 %v298
    %1021 = vmatpush1.msra.mxu0 %v297
    %1022 = vmatprep.subr.mxu0 %v302
    %1023 = vmatpush1.msra.mxu0 %v301
    %1024 = vmatprep.subr.mxu0 %v306
    %1025 = vmatpush1.msra.mxu0 %v305
    %1026 = vmatprep.subr.mxu0 %v310
    %1027 = vmatpush1.msra.mxu0 %v309
    %1028 = vmatprep.subr.mxu0 %v314
    %1029 = vmatpush1.msra.mxu0 %v313
    %1030 = vmatprep.subr.mxu0 %v318
    %1031 = vmatpush1.msra.mxu0 %v317
    %1032 = vmatprep.subr.mxu0 %v322
    %1033 = vmatpush1.msra.mxu0 %v321
    %1034 = vmatprep.subr.mxu0 %v326
    %1035 = vmatpush1.msra.mxu0 %v325
    %1036 = vmatprep.subr.mxu0 %v330
    %1037 = vmatpush1.msra.mxu0 %v329
    %1038 = vmatprep.subr.mxu0 %v334
    %1039 = vmatpush1.msra.mxu0 %v333
    %1040 = vmatprep.subr.mxu0 %v338
    %1041 = vmatpush1.msra.mxu0 %v337
    %1042 = vmatprep.subr.mxu0 %v342
    %1043 = vmatpush1.msra.mxu0 %v341
    %1044 = vmatprep.subr.mxu0 %v346
    %1045 = vmatpush1.msra.mxu0 %v345
    %1046 = vmatprep.subr.mxu0 %v350
    %1047 = vmatpush1.msra.mxu0 %v349
    %1048 = vmatprep.mubr.f32.mxu0 %v90
    %1049 = vmatmul.mubr.f32.gmra.mrb[0].mxu0 %v89
    %v1050 = vpop.f32.mrb[0].mxu0
    %v1051 = vadd.f32 %v980, %v1050
    %v1052 = vpop.f32.mrb[0].mxu0
    %v1053 = vadd.f32 %v982, %v1052
    %1054 = vdwg.mxu0
    %1055 = vmatprep.subr.mxu0 %v354
    %1056 = vmatpush1.msra.mxu0 %v353
    %1057 = vmatprep.subr.mxu0 %v358
    %1058 = vmatpush1.msra.mxu0 %v357
    %1059 = vmatprep.subr.mxu0 %v362
    %1060 = vmatpush1.msra.mxu0 %v361
    %1061 = vmatprep.subr.mxu0 %v366
    %1062 = vmatpush1.msra.mxu0 %v365
    %1063 = vmatprep.subr.mxu0 %v370
    %1064 = vmatpush1.msra.mxu0 %v369
    %1065 = vmatprep.subr.mxu0 %v374
    %1066 = vmatpush1.msra.mxu0 %v373
    %1067 = vmatprep.subr.mxu0 %v378
    %1068 = vmatpush1.msra.mxu0 %v377
    %1069 = vmatprep.subr.mxu0 %v382
    %1070 = vmatpush1.msra.mxu0 %v381
    %1071 = vmatprep.subr.mxu0 %v386
    %1072 = vmatpush1.msra.mxu0 %v385
    %1073 = vmatprep.subr.mxu0 %v390
    %1074 = vmatpush1.msra.mxu0 %v389
    %1075 = vmatprep.subr.mxu0 %v394
    %1076 = vmatpush1.msra.mxu0 %v393
    %1077 = vmatprep.subr.mxu0 %v398
    %1078 = vmatpush1.msra.mxu0 %v397
    %1079 = vmatprep.subr.mxu0 %v402
    %1080 = vmatpush1.msra.mxu0 %v401
    %1081 = vmatprep.subr.mxu0 %v406
    %1082 = vmatpush1.msra.mxu0 %v405
    %1083 = vmatprep.subr.mxu0 %v410
    %1084 = vmatpush1.msra.mxu0 %v409
    %1085 = vmatprep.subr.mxu0 %v414
    %1086 = vmatpush1.msra.mxu0 %v413
    %1087 = vmatprep.subr.mxu0 %v418
    %1088 = vmatpush1.msra.mxu0 %v417
    %1089 = vmatprep.subr.mxu0 %v422
    %1090 = vmatpush1.msra.mxu0 %v421
    %1091 = vmatprep.subr.mxu0 %v426
    %1092 = vmatpush1.msra.mxu0 %v425
    %1093 = vmatprep.subr.mxu0 %v430
    %1094 = vmatpush1.msra.mxu0 %v429
    %1095 = vmatprep.subr.mxu0 %v434
    %1096 = vmatpush1.msra.mxu0 %v433
    %1097 = vmatprep.subr.mxu0 %v438
    %1098 = vmatpush1.msra.mxu0 %v437
    %1099 = vmatprep.subr.mxu0 %v442
    %1100 = vmatpush1.msra.mxu0 %v441
    %1101 = vmatprep.subr.mxu0 %v446
    %1102 = vmatpush1.msra.mxu0 %v445
    %1103 = vmatprep.subr.mxu0 %v450
    %1104 = vmatpush1.msra.mxu0 %v449
    %1105 = vmatprep.subr.mxu0 %v454
    %1106 = vmatpush1.msra.mxu0 %v453
    %1107 = vmatprep.subr.mxu0 %v458
    %1108 = vmatpush1.msra.mxu0 %v457
    %1109 = vmatprep.subr.mxu0 %v462
    %1110 = vmatpush1.msra.mxu0 %v461
    %1111 = vmatprep.subr.mxu0 %v466
    %1112 = vmatpush1.msra.mxu0 %v465
    %1113 = vmatprep.subr.mxu0 %v470
    %1114 = vmatpush1.msra.mxu0 %v469
    %1115 = vmatprep.subr.mxu0 %v474
    %1116 = vmatpush1.msra.mxu0 %v473
    %1117 = vmatprep.subr.mxu0 %v478
    %1118 = vmatpush1.msra.mxu0 %v477
    %1119 = vmatprep.mubr.f32.mxu0 %v92
    %1120 = vmatmul.mubr.f32.gmra.mrb[0].mxu0 %v91
    %v1121 = vpop.f32.mrb[0].mxu0
    %v1122 = vadd.f32 %v1051, %v1121
    %v1123 = vpop.f32.mrb[0].mxu0
    %v1124 = vadd.f32 %v1053, %v1123
    %1125 = vdwg.mxu0
    %1126 = vmatprep.subr.mxu0 %v482
    %1127 = vmatpush1.msra.mxu0 %v481
    %1128 = vmatprep.subr.mxu0 %v486
    %1129 = vmatpush1.msra.mxu0 %v485
    %1130 = vmatprep.subr.mxu0 %v490
    %1131 = vmatpush1.msra.mxu0 %v489
    %1132 = vmatprep.subr.mxu0 %v494
    %1133 = vmatpush1.msra.mxu0 %v493
    %1134 = vmatprep.subr.mxu0 %v498
    %1135 = vmatpush1.msra.mxu0 %v497
    %1136 = vmatprep.subr.mxu0 %v502
    %1137 = vmatpush1.msra.mxu0 %v501
    %1138 = vmatprep.subr.mxu0 %v506
    %1139 = vmatpush1.msra.mxu0 %v505
    %1140 = vmatprep.subr.mxu0 %v510
    %1141 = vmatpush1.msra.mxu0 %v509
    %1142 = vmatprep.subr.mxu0 %v514
    %1143 = vmatpush1.msra.mxu0 %v513
    %1144 = vmatprep.subr.mxu0 %v518
    %1145 = vmatpush1.msra.mxu0 %v517
    %1146 = vmatprep.subr.mxu0 %v522
    %1147 = vmatpush1.msra.mxu0 %v521
    %1148 = vmatprep.subr.mxu0 %v526
    %1149 = vmatpush1.msra.mxu0 %v525
    %1150 = vmatprep.subr.mxu0 %v530
    %1151 = vmatpush1.msra.mxu0 %v529
    %1152 = vmatprep.subr.mxu0 %v534
    %1153 = vmatpush1.msra.mxu0 %v533
    %1154 = vmatprep.subr.mxu0 %v538
    %1155 = vmatpush1.msra.mxu0 %v537
    %1156 = vmatprep.subr.mxu0 %v542
    %1157 = vmatpush1.msra.mxu0 %v541
    %1158 = vmatprep.subr.mxu0 %v546
    %1159 = vmatpush1.msra.mxu0 %v545
    %1160 = vmatprep.subr.mxu0 %v550
    %1161 = vmatpush1.msra.mxu0 %v549
    %1162 = vmatprep.subr.mxu0 %v554
    %1163 = vmatpush1.msra.mxu0 %v553
    %1164 = vmatprep.subr.mxu0 %v558
    %1165 = vmatpush1.msra.mxu0 %v557
    %1166 = vmatprep.subr.mxu0 %v562
    %1167 = vmatpush1.msra.mxu0 %v561
    %1168 = vmatprep.subr.mxu0 %v566
    %1169 = vmatpush1.msra.mxu0 %v565
    %1170 = vmatprep.subr.mxu0 %v570
    %1171 = vmatpush1.msra.mxu0 %v569
    %1172 = vmatprep.subr.mxu0 %v574
    %1173 = vmatpush1.msra.mxu0 %v573
    %1174 = vmatprep.subr.mxu0 %v578
    %1175 = vmatpush1.msra.mxu0 %v577
    %1176 = vmatprep.subr.mxu0 %v582
    %1177 = vmatpush1.msra.mxu0 %v581
    %1178 = vmatprep.subr.mxu0 %v586
    %1179 = vmatpush1.msra.mxu0 %v585
    %1180 = vmatprep.subr.mxu0 %v590
    %1181 = vmatpush1.msra.mxu0 %v589
    %1182 = vmatprep.subr.mxu0 %v594
    %1183 = vmatpush1.msra.mxu0 %v593
    %1184 = vmatprep.subr.mxu0 %v598
    %1185 = vmatpush1.msra.mxu0 %v597
    %1186 = vmatprep.subr.mxu0 %v602
    %1187 = vmatpush1.msra.mxu0 %v601
    %1188 = vmatprep.subr.mxu0 %v606
    %1189 = vmatpush1.msra.mxu0 %v605
    %1190 = vmatprep.mubr.f32.mxu0 %v94
    %1191 = vmatmul.mubr.f32.gmra.mrb[0].mxu0 %v93
    %v1192 = vpop.f32.mrb[0].mxu0
    %v1193 = vadd.f32 %v1122, %v1192
    %v1194 = vpop.f32.mrb[0].mxu0
    %v1195 = vadd.f32 %v1124, %v1194
    %1196 = vdwg.mxu0
    %v1197 = vld [vmem:[#allocation7] sm:$0xff]
    %v1198 = vld [vmem:[#allocation7 + $0x8] sm:$0xff]
    %v1199 = vld [vmem:[#allocation7 + $0x10] sm:$0xff]
    %v1200 = vld [vmem:[#allocation7 + $0x18] sm:$0xff]
    %v1201 = vld [vmem:[#allocation7 + $0x20] sm:$0xff]
    %v1202 = vld [vmem:[#allocation7 + $0x28] sm:$0xff]
    %v1203 = vld [vmem:[#allocation7 + $0x30] sm:$0xff]
    %v1204 = vld [vmem:[#allocation7 + $0x38] sm:$0xff]
    %v1205 = vld [vmem:[#allocation7 + $0x40] sm:$0xff]
    %v1206 = vld [vmem:[#allocation7 + $0x48] sm:$0xff]
    %v1207 = vld [vmem:[#allocation7 + $0x50] sm:$0xff]
    %v1208 = vld [vmem:[#allocation7 + $0x58] sm:$0xff]
    %v1209 = vld [vmem:[#allocation7 + $0x60] sm:$0xff]
    %v1210 = vld [vmem:[#allocation7 + $0x68] sm:$0xff]
    %v1211 = vld [vmem:[#allocation7 + $0x70] sm:$0xff]
    %v1212 = vld [vmem:[#allocation7 + $0x78] sm:$0xff]
    %v1213 = vld [vmem:[#allocation7 + $0x80] sm:$0xff]
    %v1214 = vld [vmem:[#allocation7 + $0x88] sm:$0xff]
    %v1215 = vld [vmem:[#allocation7 + $0x90] sm:$0xff]
    %v1216 = vld [vmem:[#allocation7 + $0x98] sm:$0xff]
    %v1217 = vld [vmem:[#allocation7 + $0xa0] sm:$0xff]
    %v1218 = vld [vmem:[#allocation7 + $0xa8] sm:$0xff]
    %v1219 = vld [vmem:[#allocation7 + $0xb0] sm:$0xff]
    %v1220 = vld [vmem:[#allocation7 + $0xb8] sm:$0xff]
    %v1221 = vld [vmem:[#allocation7 + $0xc0] sm:$0xff]
    %v1222 = vld [vmem:[#allocation7 + $0xc8] sm:$0xff]
    %v1223 = vld [vmem:[#allocation7 + $0xd0] sm:$0xff]
    %v1224 = vld [vmem:[#allocation7 + $0xd8] sm:$0xff]
    %v1225 = vld [vmem:[#allocation7 + $0xe0] sm:$0xff]
    %v1226 = vld [vmem:[#allocation7 + $0xe8] sm:$0xff]
    %v1227 = vld [vmem:[#allocation7 + $0xf0] sm:$0xff]
    %v1228 = vld [vmem:[#allocation7 + $0xf8] sm:$0xff]
    %v1229 = vld [vmem:[#allocation7 + $0x100] sm:$0xff]
    %v1230 = vld [vmem:[#allocation7 + $0x108] sm:$0xff]
    %v1231 = vld [vmem:[#allocation7 + $0x110] sm:$0xff]
    %v1232 = vld [vmem:[#allocation7 + $0x118] sm:$0xff]
    %v1233 = vld [vmem:[#allocation7 + $0x120] sm:$0xff]
    %v1234 = vld [vmem:[#allocation7 + $0x128] sm:$0xff]
    %v1235 = vld [vmem:[#allocation7 + $0x130] sm:$0xff]
    %v1236 = vld [vmem:[#allocation7 + $0x138] sm:$0xff]
    %v1237 = vld [vmem:[#allocation7 + $0x140] sm:$0xff]
    %v1238 = vld [vmem:[#allocation7 + $0x148] sm:$0xff]
    %v1239 = vld [vmem:[#allocation7 + $0x150] sm:$0xff]
    %v1240 = vld [vmem:[#allocation7 + $0x158] sm:$0xff]
    %v1241 = vld [vmem:[#allocation7 + $0x160] sm:$0xff]
    %v1242 = vld [vmem:[#allocation7 + $0x168] sm:$0xff]
    %v1243 = vld [vmem:[#allocation7 + $0x170] sm:$0xff]
    %v1244 = vld [vmem:[#allocation7 + $0x178] sm:$0xff]
    %v1245 = vld [vmem:[#allocation7 + $0x180] sm:$0xff]
    %v1246 = vld [vmem:[#allocation7 + $0x188] sm:$0xff]
    %v1247 = vld [vmem:[#allocation7 + $0x190] sm:$0xff]
    %v1248 = vld [vmem:[#allocation7 + $0x198] sm:$0xff]
    %v1249 = vld [vmem:[#allocation7 + $0x1a0] sm:$0xff]
    %v1250 = vld [vmem:[#allocation7 + $0x1a8] sm:$0xff]
    %v1251 = vld [vmem:[#allocation7 + $0x1b0] sm:$0xff]
    %v1252 = vld [vmem:[#allocation7 + $0x1b8] sm:$0xff]
    %v1253 = vld [vmem:[#allocation7 + $0x1c0] sm:$0xff]
    %v1254 = vld [vmem:[#allocation7 + $0x1c8] sm:$0xff]
    %v1255 = vld [vmem:[#allocation7 + $0x1d0] sm:$0xff]
    %v1256 = vld [vmem:[#allocation7 + $0x1d8] sm:$0xff]
    %v1257 = vld [vmem:[#allocation7 + $0x1e0] sm:$0xff]
    %v1258 = vld [vmem:[#allocation7 + $0x1e8] sm:$0xff]
    %v1259 = vld [vmem:[#allocation7 + $0x1f0] sm:$0xff]
    %v1260 = vld [vmem:[#allocation7 + $0x1f8] sm:$0xff]
    %v1261 = vld [vmem:[#allocation7 + $0x200] sm:$0xff]
    %v1262 = vld [vmem:[#allocation7 + $0x208] sm:$0xff]
    %v1263 = vld [vmem:[#allocation7 + $0x210] sm:$0xff]
    %v1264 = vld [vmem:[#allocation7 + $0x218] sm:$0xff]
    %v1265 = vld [vmem:[#allocation7 + $0x220] sm:$0xff]
    %v1266 = vld [vmem:[#allocation7 + $0x228] sm:$0xff]
    %v1267 = vld [vmem:[#allocation7 + $0x230] sm:$0xff]
    %v1268 = vld [vmem:[#allocation7 + $0x238] sm:$0xff]
    %v1269 = vld [vmem:[#allocation7 + $0x240] sm:$0xff]
    %v1270 = vld [vmem:[#allocation7 + $0x248] sm:$0xff]
    %v1271 = vld [vmem:[#allocation7 + $0x250] sm:$0xff]
    %v1272 = vld [vmem:[#allocation7 + $0x258] sm:$0xff]
    %v1273 = vld [vmem:[#allocation7 + $0x260] sm:$0xff]
    %v1274 = vld [vmem:[#allocation7 + $0x268] sm:$0xff]
    %v1275 = vld [vmem:[#allocation7 + $0x270] sm:$0xff]
    %v1276 = vld [vmem:[#allocation7 + $0x278] sm:$0xff]
    %v1277 = vld [vmem:[#allocation7 + $0x280] sm:$0xff]
    %v1278 = vld [vmem:[#allocation7 + $0x288] sm:$0xff]
    %v1279 = vld [vmem:[#allocation7 + $0x290] sm:$0xff]
    %v1280 = vld [vmem:[#allocation7 + $0x298] sm:$0xff]
    %v1281 = vld [vmem:[#allocation7 + $0x2a0] sm:$0xff]
    %v1282 = vld [vmem:[#allocation7 + $0x2a8] sm:$0xff]
    %v1283 = vld [vmem:[#allocation7 + $0x2b0] sm:$0xff]
    %v1284 = vld [vmem:[#allocation7 + $0x2b8] sm:$0xff]
    %v1285 = vld [vmem:[#allocation7 + $0x2c0] sm:$0xff]
    %v1286 = vld [vmem:[#allocation7 + $0x2c8] sm:$0xff]
    %v1287 = vld [vmem:[#allocation7 + $0x2d0] sm:$0xff]
    %v1288 = vld [vmem:[#allocation7 + $0x2d8] sm:$0xff]
    %v1289 = vld [vmem:[#allocation7 + $0x2e0] sm:$0xff]
    %v1290 = vld [vmem:[#allocation7 + $0x2e8] sm:$0xff]
    %v1291 = vld [vmem:[#allocation7 + $0x2f0] sm:$0xff]
    %v1292 = vld [vmem:[#allocation7 + $0x2f8] sm:$0xff]
    %v1293 = vld [vmem:[#allocation7 + $0x300] sm:$0xff]
    %v1294 = vld [vmem:[#allocation7 + $0x308] sm:$0xff]
    %v1295 = vld [vmem:[#allocation7 + $0x310] sm:$0xff]
    %v1296 = vld [vmem:[#allocation7 + $0x318] sm:$0xff]
    %v1297 = vld [vmem:[#allocation7 + $0x320] sm:$0xff]
    %v1298 = vld [vmem:[#allocation7 + $0x328] sm:$0xff]
    %v1299 = vld [vmem:[#allocation7 + $0x330] sm:$0xff]
    %v1300 = vld [vmem:[#allocation7 + $0x338] sm:$0xff]
    %v1301 = vld [vmem:[#allocation7 + $0x340] sm:$0xff]
    %v1302 = vld [vmem:[#allocation7 + $0x348] sm:$0xff]
    %v1303 = vld [vmem:[#allocation7 + $0x350] sm:$0xff]
    %v1304 = vld [vmem:[#allocation7 + $0x358] sm:$0xff]
    %v1305 = vld [vmem:[#allocation7 + $0x360] sm:$0xff]
    %v1306 = vld [vmem:[#allocation7 + $0x368] sm:$0xff]
    %v1307 = vld [vmem:[#allocation7 + $0x370] sm:$0xff]
    %v1308 = vld [vmem:[#allocation7 + $0x378] sm:$0xff]
    %v1309 = vld [vmem:[#allocation7 + $0x380] sm:$0xff]
    %v1310 = vld [vmem:[#allocation7 + $0x388] sm:$0xff]
    %v1311 = vld [vmem:[#allocation7 + $0x390] sm:$0xff]
    %v1312 = vld [vmem:[#allocation7 + $0x398] sm:$0xff]
    %v1313 = vld [vmem:[#allocation7 + $0x3a0] sm:$0xff]
    %v1314 = vld [vmem:[#allocation7 + $0x3a8] sm:$0xff]
    %v1315 = vld [vmem:[#allocation7 + $0x3b0] sm:$0xff]
    %v1316 = vld [vmem:[#allocation7 + $0x3b8] sm:$0xff]
    %v1317 = vld [vmem:[#allocation7 + $0x3c0] sm:$0xff]
    %v1318 = vld [vmem:[#allocation7 + $0x3c8] sm:$0xff]
    %v1319 = vld [vmem:[#allocation7 + $0x3d0] sm:$0xff]
    %v1320 = vld [vmem:[#allocation7 + $0x3d8] sm:$0xff]
    %v1321 = vld [vmem:[#allocation7 + $0x3e0] sm:$0xff]
    %v1322 = vld [vmem:[#allocation7 + $0x3e8] sm:$0xff]
    %v1323 = vld [vmem:[#allocation7 + $0x3f0] sm:$0xff]
    %v1324 = vld [vmem:[#allocation7 + $0x3f8] sm:$0xff]
    %v1325 = vld [vmem:[#allocation7 + $0x400] sm:$0xff]
    %v1326 = vld [vmem:[#allocation7 + $0x408] sm:$0xff]
    %v1327 = vld [vmem:[#allocation7 + $0x410] sm:$0xff]
    %v1328 = vld [vmem:[#allocation7 + $0x418] sm:$0xff]
    %v1329 = vld [vmem:[#allocation7 + $0x420] sm:$0xff]
    %v1330 = vld [vmem:[#allocation7 + $0x428] sm:$0xff]
    %v1331 = vld [vmem:[#allocation7 + $0x430] sm:$0xff]
    %v1332 = vld [vmem:[#allocation7 + $0x438] sm:$0xff]
    %v1333 = vld [vmem:[#allocation7 + $0x440] sm:$0xff]
    %v1334 = vld [vmem:[#allocation7 + $0x448] sm:$0xff]
    %v1335 = vld [vmem:[#allocation7 + $0x450] sm:$0xff]
    %v1336 = vld [vmem:[#allocation7 + $0x458] sm:$0xff]
    %v1337 = vld [vmem:[#allocation7 + $0x460] sm:$0xff]
    %v1338 = vld [vmem:[#allocation7 + $0x468] sm:$0xff]
    %v1339 = vld [vmem:[#allocation7 + $0x470] sm:$0xff]
    %v1340 = vld [vmem:[#allocation7 + $0x478] sm:$0xff]
    %v1341 = vld [vmem:[#allocation7 + $0x480] sm:$0xff]
    %v1342 = vld [vmem:[#allocation7 + $0x488] sm:$0xff]
    %v1343 = vld [vmem:[#allocation7 + $0x490] sm:$0xff]
    %v1344 = vld [vmem:[#allocation7 + $0x498] sm:$0xff]
    %v1345 = vld [vmem:[#allocation7 + $0x4a0] sm:$0xff]
    %v1346 = vld [vmem:[#allocation7 + $0x4a8] sm:$0xff]
    %v1347 = vld [vmem:[#allocation7 + $0x4b0] sm:$0xff]
    %v1348 = vld [vmem:[#allocation7 + $0x4b8] sm:$0xff]
    %v1349 = vld [vmem:[#allocation7 + $0x4c0] sm:$0xff]
    %v1350 = vld [vmem:[#allocation7 + $0x4c8] sm:$0xff]
    %v1351 = vld [vmem:[#allocation7 + $0x4d0] sm:$0xff]
    %v1352 = vld [vmem:[#allocation7 + $0x4d8] sm:$0xff]
    %v1353 = vld [vmem:[#allocation7 + $0x4e0] sm:$0xff]
    %v1354 = vld [vmem:[#allocation7 + $0x4e8] sm:$0xff]
    %v1355 = vld [vmem:[#allocation7 + $0x4f0] sm:$0xff]
    %v1356 = vld [vmem:[#allocation7 + $0x4f8] sm:$0xff]
    %v1357 = vld [vmem:[#allocation7 + $0x500] sm:$0xff]
    %v1358 = vld [vmem:[#allocation7 + $0x508] sm:$0xff]
    %v1359 = vld [vmem:[#allocation7 + $0x510] sm:$0xff]
    %v1360 = vld [vmem:[#allocation7 + $0x518] sm:$0xff]
    %v1361 = vld [vmem:[#allocation7 + $0x520] sm:$0xff]
    %v1362 = vld [vmem:[#allocation7 + $0x528] sm:$0xff]
    %v1363 = vld [vmem:[#allocation7 + $0x530] sm:$0xff]
    %v1364 = vld [vmem:[#allocation7 + $0x538] sm:$0xff]
    %v1365 = vld [vmem:[#allocation7 + $0x540] sm:$0xff]
    %v1366 = vld [vmem:[#allocation7 + $0x548] sm:$0xff]
    %v1367 = vld [vmem:[#allocation7 + $0x550] sm:$0xff]
    %v1368 = vld [vmem:[#allocation7 + $0x558] sm:$0xff]
    %v1369 = vld [vmem:[#allocation7 + $0x560] sm:$0xff]
    %v1370 = vld [vmem:[#allocation7 + $0x568] sm:$0xff]
    %v1371 = vld [vmem:[#allocation7 + $0x570] sm:$0xff]
    %v1372 = vld [vmem:[#allocation7 + $0x578] sm:$0xff]
    %v1373 = vld [vmem:[#allocation7 + $0x580] sm:$0xff]
    %v1374 = vld [vmem:[#allocation7 + $0x588] sm:$0xff]
    %v1375 = vld [vmem:[#allocation7 + $0x590] sm:$0xff]
    %v1376 = vld [vmem:[#allocation7 + $0x598] sm:$0xff]
    %v1377 = vld [vmem:[#allocation7 + $0x5a0] sm:$0xff]
    %v1378 = vld [vmem:[#allocation7 + $0x5a8] sm:$0xff]
    %v1379 = vld [vmem:[#allocation7 + $0x5b0] sm:$0xff]
    %v1380 = vld [vmem:[#allocation7 + $0x5b8] sm:$0xff]
    %v1381 = vld [vmem:[#allocation7 + $0x5c0] sm:$0xff]
    %v1382 = vld [vmem:[#allocation7 + $0x5c8] sm:$0xff]
    %v1383 = vld [vmem:[#allocation7 + $0x5d0] sm:$0xff]
    %v1384 = vld [vmem:[#allocation7 + $0x5d8] sm:$0xff]
    %v1385 = vld [vmem:[#allocation7 + $0x5e0] sm:$0xff]
    %v1386 = vld [vmem:[#allocation7 + $0x5e8] sm:$0xff]
    %v1387 = vld [vmem:[#allocation7 + $0x5f0] sm:$0xff]
    %v1388 = vld [vmem:[#allocation7 + $0x5f8] sm:$0xff]
    %v1389 = vld [vmem:[#allocation7 + $0x600] sm:$0xff]
    %v1390 = vld [vmem:[#allocation7 + $0x608] sm:$0xff]
    %v1391 = vld [vmem:[#allocation7 + $0x610] sm:$0xff]
    %v1392 = vld [vmem:[#allocation7 + $0x618] sm:$0xff]
    %v1393 = vld [vmem:[#allocation7 + $0x620] sm:$0xff]
    %v1394 = vld [vmem:[#allocation7 + $0x628] sm:$0xff]
    %v1395 = vld [vmem:[#allocation7 + $0x630] sm:$0xff]
    %v1396 = vld [vmem:[#allocation7 + $0x638] sm:$0xff]
    %v1397 = vld [vmem:[#allocation7 + $0x640] sm:$0xff]
    %v1398 = vld [vmem:[#allocation7 + $0x648] sm:$0xff]
    %v1399 = vld [vmem:[#allocation7 + $0x650] sm:$0xff]
    %v1400 = vld [vmem:[#allocation7 + $0x658] sm:$0xff]
    %v1401 = vld [vmem:[#allocation7 + $0x660] sm:$0xff]
    %v1402 = vld [vmem:[#allocation7 + $0x668] sm:$0xff]
    %v1403 = vld [vmem:[#allocation7 + $0x670] sm:$0xff]
    %v1404 = vld [vmem:[#allocation7 + $0x678] sm:$0xff]
    %v1405 = vld [vmem:[#allocation7 + $0x680] sm:$0xff]
    %v1406 = vld [vmem:[#allocation7 + $0x688] sm:$0xff]
    %v1407 = vld [vmem:[#allocation7 + $0x690] sm:$0xff]
    %v1408 = vld [vmem:[#allocation7 + $0x698] sm:$0xff]
    %v1409 = vld [vmem:[#allocation7 + $0x6a0] sm:$0xff]
    %v1410 = vld [vmem:[#allocation7 + $0x6a8] sm:$0xff]
    %v1411 = vld [vmem:[#allocation7 + $0x6b0] sm:$0xff]
    %v1412 = vld [vmem:[#allocation7 + $0x6b8] sm:$0xff]
    %v1413 = vld [vmem:[#allocation7 + $0x6c0] sm:$0xff]
    %v1414 = vld [vmem:[#allocation7 + $0x6c8] sm:$0xff]
    %v1415 = vld [vmem:[#allocation7 + $0x6d0] sm:$0xff]
    %v1416 = vld [vmem:[#allocation7 + $0x6d8] sm:$0xff]
    %v1417 = vld [vmem:[#allocation7 + $0x6e0] sm:$0xff]
    %v1418 = vld [vmem:[#allocation7 + $0x6e8] sm:$0xff]
    %v1419 = vld [vmem:[#allocation7 + $0x6f0] sm:$0xff]
    %v1420 = vld [vmem:[#allocation7 + $0x6f8] sm:$0xff]
    %v1421 = vld [vmem:[#allocation7 + $0x700] sm:$0xff]
    %v1422 = vld [vmem:[#allocation7 + $0x708] sm:$0xff]
    %v1423 = vld [vmem:[#allocation7 + $0x710] sm:$0xff]
    %v1424 = vld [vmem:[#allocation7 + $0x718] sm:$0xff]
    %v1425 = vld [vmem:[#allocation7 + $0x720] sm:$0xff]
    %v1426 = vld [vmem:[#allocation7 + $0x728] sm:$0xff]
    %v1427 = vld [vmem:[#allocation7 + $0x730] sm:$0xff]
    %v1428 = vld [vmem:[#allocation7 + $0x738] sm:$0xff]
    %v1429 = vld [vmem:[#allocation7 + $0x740] sm:$0xff]
    %v1430 = vld [vmem:[#allocation7 + $0x748] sm:$0xff]
    %v1431 = vld [vmem:[#allocation7 + $0x750] sm:$0xff]
    %v1432 = vld [vmem:[#allocation7 + $0x758] sm:$0xff]
    %v1433 = vld [vmem:[#allocation7 + $0x760] sm:$0xff]
    %v1434 = vld [vmem:[#allocation7 + $0x768] sm:$0xff]
    %v1435 = vld [vmem:[#allocation7 + $0x770] sm:$0xff]
    %v1436 = vld [vmem:[#allocation7 + $0x778] sm:$0xff]
    %v1437 = vld [vmem:[#allocation7 + $0x780] sm:$0xff]
    %v1438 = vld [vmem:[#allocation7 + $0x788] sm:$0xff]
    %v1439 = vld [vmem:[#allocation7 + $0x790] sm:$0xff]
    %v1440 = vld [vmem:[#allocation7 + $0x798] sm:$0xff]
    %v1441 = vld [vmem:[#allocation7 + $0x7a0] sm:$0xff]
    %v1442 = vld [vmem:[#allocation7 + $0x7a8] sm:$0xff]
    %v1443 = vld [vmem:[#allocation7 + $0x7b0] sm:$0xff]
    %v1444 = vld [vmem:[#allocation7 + $0x7b8] sm:$0xff]
    %v1445 = vld [vmem:[#allocation7 + $0x7c0] sm:$0xff]
    %v1446 = vld [vmem:[#allocation7 + $0x7c8] sm:$0xff]
    %v1447 = vld [vmem:[#allocation7 + $0x7d0] sm:$0xff]
    %v1448 = vld [vmem:[#allocation7 + $0x7d8] sm:$0xff]
    %v1449 = vld [vmem:[#allocation7 + $0x7e0] sm:$0xff]
    %v1450 = vld [vmem:[#allocation7 + $0x7e8] sm:$0xff]
    %v1451 = vld [vmem:[#allocation7 + $0x7f0] sm:$0xff]
    %v1452 = vld [vmem:[#allocation7 + $0x7f8] sm:$0xff]
    %v1453 = vld [vmem:[#allocation10] sm:$0x1]
    %v1454 = vld [vmem:[#allocation10 + $0x1] sm:$0x1]
    %v1455 = vld [vmem:[#allocation10 + $0x2] sm:$0x1]
    %v1456 = vld [vmem:[#allocation10 + $0x3] sm:$0x1]
    %1457 = vmatprep.subr.mxu0 %v1198
    %1458 = vmatpush1.msra.mxu0 %v1197
    %1459 = vmatprep.subr.mxu0 %v1206
    %1460 = vmatpush1.msra.mxu0 %v1205
    %1461 = vmatprep.subr.mxu0 %v1214
    %1462 = vmatpush1.msra.mxu0 %v1213
    %1463 = vmatprep.subr.mxu0 %v1222
    %1464 = vmatpush1.msra.mxu0 %v1221
    %1465 = vmatprep.subr.mxu0 %v1230
    %1466 = vmatpush1.msra.mxu0 %v1229
    %1467 = vmatprep.subr.mxu0 %v1238
    %1468 = vmatpush1.msra.mxu0 %v1237
    %1469 = vmatprep.subr.mxu0 %v1246
    %1470 = vmatpush1.msra.mxu0 %v1245
    %1471 = vmatprep.subr.mxu0 %v1254
    %1472 = vmatpush1.msra.mxu0 %v1253
    %1473 = vmatprep.subr.mxu0 %v1262
    %1474 = vmatpush1.msra.mxu0 %v1261
    %1475 = vmatprep.subr.mxu0 %v1270
    %1476 = vmatpush1.msra.mxu0 %v1269
    %1477 = vmatprep.subr.mxu0 %v1278
    %1478 = vmatpush1.msra.mxu0 %v1277
    %1479 = vmatprep.subr.mxu0 %v1286
    %1480 = vmatpush1.msra.mxu0 %v1285
    %1481 = vmatprep.subr.mxu0 %v1294
    %1482 = vmatpush1.msra.mxu0 %v1293
    %1483 = vmatprep.subr.mxu0 %v1302
    %1484 = vmatpush1.msra.mxu0 %v1301
    %1485 = vmatprep.subr.mxu0 %v1310
    %1486 = vmatpush1.msra.mxu0 %v1309
    %1487 = vmatprep.subr.mxu0 %v1318
    %1488 = vmatpush1.msra.mxu0 %v1317
    %1489 = vmatprep.subr.mxu0 %v1326
    %1490 = vmatpush1.msra.mxu0 %v1325
    %1491 = vmatprep.subr.mxu0 %v1334
    %1492 = vmatpush1.msra.mxu0 %v1333
    %1493 = vmatprep.subr.mxu0 %v1342
    %1494 = vmatpush1.msra.mxu0 %v1341
    %1495 = vmatprep.subr.mxu0 %v1350
    %1496 = vmatpush1.msra.mxu0 %v1349
    %1497 = vmatprep.subr.mxu0 %v1358
    %1498 = vmatpush1.msra.mxu0 %v1357
    %1499 = vmatprep.subr.mxu0 %v1366
    %1500 = vmatpush1.msra.mxu0 %v1365
    %1501 = vmatprep.subr.mxu0 %v1374
    %1502 = vmatpush1.msra.mxu0 %v1373
    %1503 = vmatprep.subr.mxu0 %v1382
    %1504 = vmatpush1.msra.mxu0 %v1381
    %1505 = vmatprep.subr.mxu0 %v1390
    %1506 = vmatpush1.msra.mxu0 %v1389
    %1507 = vmatprep.subr.mxu0 %v1398
    %1508 = vmatpush1.msra.mxu0 %v1397
    %1509 = vmatprep.subr.mxu0 %v1406
    %1510 = vmatpush1.msra.mxu0 %v1405
    %1511 = vmatprep.subr.mxu0 %v1414
    %1512 = vmatpush1.msra.mxu0 %v1413
    %1513 = vmatprep.subr.mxu0 %v1422
    %1514 = vmatpush1.msra.mxu0 %v1421
    %1515 = vmatprep.subr.mxu0 %v1430
    %1516 = vmatpush1.msra.mxu0 %v1429
    %1517 = vmatprep.subr.mxu0 %v1438
    %1518 = vmatpush1.msra.mxu0 %v1437
    %1519 = vmatprep.subr.mxu0 %v1446
    %1520 = vmatpush1.msra.mxu0 %v1445
    %1521 = vmatprep.mubr.f32.mxu0 %v1454
    %1522 = vmatmul.mubr.f32.gmra.mrb[0].mxu0 %v1453
    %v1523 = vpop.f32.mrb[0].mxu0
    %v1524 = vadd.f32 0.0, %v1523
    %v1525 = vpop.f32.mrb[0].mxu0
    %v1526 = vadd.f32 0.0, %v1525
    %1527 = vdwg.mxu0
    %1528 = vmatprep.subr.mxu0 %v1200
    %1529 = vmatpush1.msra.mxu0 %v1199
    %1530 = vmatprep.subr.mxu0 %v1208
    %1531 = vmatpush1.msra.mxu0 %v1207
    %1532 = vmatprep.subr.mxu0 %v1216
    %1533 = vmatpush1.msra.mxu0 %v1215
    %1534 = vmatprep.subr.mxu0 %v1224
    %1535 = vmatpush1.msra.mxu0 %v1223
    %1536 = vmatprep.subr.mxu0 %v1232
    %1537 = vmatpush1.msra.mxu0 %v1231
    %1538 = vmatprep.subr.mxu0 %v1240
    %1539 = vmatpush1.msra.mxu0 %v1239
    %1540 = vmatprep.subr.mxu0 %v1248
    %1541 = vmatpush1.msra.mxu0 %v1247
    %1542 = vmatprep.subr.mxu0 %v1256
    %1543 = vmatpush1.msra.mxu0 %v1255
    %1544 = vmatprep.subr.mxu0 %v1264
    %1545 = vmatpush1.msra.mxu0 %v1263
    %1546 = vmatprep.subr.mxu0 %v1272
    %1547 = vmatpush1.msra.mxu0 %v1271
    %1548 = vmatprep.subr.mxu0 %v1280
    %1549 = vmatpush1.msra.mxu0 %v1279
    %1550 = vmatprep.subr.mxu0 %v1288
    %1551 = vmatpush1.msra.mxu0 %v1287
    %1552 = vmatprep.subr.mxu0 %v1296
    %1553 = vmatpush1.msra.mxu0 %v1295
    %1554 = vmatprep.subr.mxu0 %v1304
    %1555 = vmatpush1.msra.mxu0 %v1303
    %1556 = vmatprep.subr.mxu0 %v1312
    %1557 = vmatpush1.msra.mxu0 %v1311
    %1558 = vmatprep.subr.mxu0 %v1320
    %1559 = vmatpush1.msra.mxu0 %v1319
    %1560 = vmatprep.subr.mxu0 %v1328
    %1561 = vmatpush1.msra.mxu0 %v1327
    %1562 = vmatprep.subr.mxu0 %v1336
    %1563 = vmatpush1.msra.mxu0 %v1335
    %1564 = vmatprep.subr.mxu0 %v1344
    %1565 = vmatpush1.msra.mxu0 %v1343
    %1566 = vmatprep.subr.mxu0 %v1352
    %1567 = vmatpush1.msra.mxu0 %v1351
    %1568 = vmatprep.subr.mxu0 %v1360
    %1569 = vmatpush1.msra.mxu0 %v1359
    %1570 = vmatprep.subr.mxu0 %v1368
    %1571 = vmatpush1.msra.mxu0 %v1367
    %1572 = vmatprep.subr.mxu0 %v1376
    %1573 = vmatpush1.msra.mxu0 %v1375
    %1574 = vmatprep.subr.mxu0 %v1384
    %1575 = vmatpush1.msra.mxu0 %v1383
    %1576 = vmatprep.subr.mxu0 %v1392
    %1577 = vmatpush1.msra.mxu0 %v1391
    %1578 = vmatprep.subr.mxu0 %v1400
    %1579 = vmatpush1.msra.mxu0 %v1399
    %1580 = vmatprep.subr.mxu0 %v1408
    %1581 = vmatpush1.msra.mxu0 %v1407
    %1582 = vmatprep.subr.mxu0 %v1416
    %1583 = vmatpush1.msra.mxu0 %v1415
    %1584 = vmatprep.subr.mxu0 %v1424
    %1585 = vmatpush1.msra.mxu0 %v1423
    %1586 = vmatprep.subr.mxu0 %v1432
    %1587 = vmatpush1.msra.mxu0 %v1431
    %1588 = vmatprep.subr.mxu0 %v1440
    %1589 = vmatpush1.msra.mxu0 %v1439
    %1590 = vmatprep.subr.mxu0 %v1448
    %1591 = vmatpush1.msra.mxu0 %v1447
    %1592 = vmatprep.mubr.f32.mxu0 %v1454
    %1593 = vmatmul.mubr.f32.gmra.mrb[0].mxu0 %v1453
    %v1594 = vpop.f32.mrb[0].mxu0
    %v1595 = vadd.f32 0.0, %v1594
    %v1596 = vpop.f32.mrb[0].mxu0
    %v1597 = vadd.f32 0.0, %v1596
    %1598 = vdwg.mxu0
    %v1599 = vadd.f32 %v1524, %v909
    %v1600 = vadd.f32 %v1526, %v911
    %v1601 = vadd.f32 %v1595, %v1193
    %v1602 = vadd.f32 %v1597, %v1195
    %v1603 = vxor.u32 %v1599, 2147483648
    %v1604 = vmul.f32 %v1603, 1.442695
    %v1605 = vpow.pop %v1604
    %v1606 = vadd.f32 %v1605, 1.0
    %v1607 = vrcp.pop %v1606
    %v1608 = vmul.f32 1.0, %v1607
    %v1609 = vxor.u32 %v1600, 2147483648
    %v1610 = vmul.f32 %v1609, 1.442695
    %v1611 = vpow.pop %v1610
    %v1612 = vadd.f32 %v1611, 1.0
    %v1613 = vrcp.pop %v1612
    %v1614 = vmul.f32 1.0, %v1613
    %v1615 = vtanh.pop %v1601
    %v1616 = vxor.u32 %v1602, 2147483648
    %v1617 = vmul.f32 %v1616, 1.442695
    %v1618 = vpow.pop %v1617
    %v1619 = vadd.f32 %v1618, 1.0
    %v1620 = vrcp.pop %v1619
    %v1621 = vmul.f32 1.0, %v1620
    %v1622 = vmul.f32 %v1614, %v1455
    %v1623 = vmul.f32 %v1608, %v1615
    %v1624 = vadd.f32 %v1622, %v1623
    %v1625 = vtanh.pop %v1624
    %v1626 = vmul.f32 %v1621, %v1625
    %1627 = vmatprep.subr.mxu0 %v1198
    %1628 = vmatpush1.msra.mxu0 %v1197
    %1629 = vmatprep.subr.mxu0 %v1206
    %1630 = vmatpush1.msra.mxu0 %v1205
    %1631 = vmatprep.subr.mxu0 %v1214
    %1632 = vmatpush1.msra.mxu0 %v1213
    %1633 = vmatprep.subr.mxu0 %v1222
    %1634 = vmatpush1.msra.mxu0 %v1221
    %1635 = vmatprep.subr.mxu0 %v1230
    %1636 = vmatpush1.msra.mxu0 %v1229
    %1637 = vmatprep.subr.mxu0 %v1238
    %1638 = vmatpush1.msra.mxu0 %v1237
    %1639 = vmatprep.subr.mxu0 %v1246
    %1640 = vmatpush1.msra.mxu0 %v1245
    %1641 = vmatprep.subr.mxu0 %v1254
    %1642 = vmatpush1.msra.mxu0 %v1253
    %1643 = vmatprep.subr.mxu0 %v1262
    %1644 = vmatpush1.msra.mxu0 %v1261
    %1645 = vmatprep.subr.mxu0 %v1270
    %1646 = vmatpush1.msra.mxu0 %v1269
    %1647 = vmatprep.subr.mxu0 %v1278
    %1648 = vmatpush1.msra.mxu0 %v1277
    %1649 = vmatprep.subr.mxu0 %v1286
    %1650 = vmatpush1.msra.mxu0 %v1285
    %1651 = vmatprep.subr.mxu0 %v1294
    %1652 = vmatpush1.msra.mxu0 %v1293
    %1653 = vmatprep.subr.mxu0 %v1302
    %1654 = vmatpush1.msra.mxu0 %v1301
    %1655 = vmatprep.subr.mxu0 %v1310
    %1656 = vmatpush1.msra.mxu0 %v1309
    %1657 = vmatprep.subr.mxu0 %v1318
    %1658 = vmatpush1.msra.mxu0 %v1317
    %1659 = vmatprep.subr.mxu0 %v1326
    %1660 = vmatpush1.msra.mxu0 %v1325
    %1661 = vmatprep.subr.mxu0 %v1334
    %1662 = vmatpush1.msra.mxu0 %v1333
    %1663 = vmatprep.subr.mxu0 %v1342
    %1664 = vmatpush1.msra.mxu0 %v1341
    %1665 = vmatprep.subr.mxu0 %v1350
    %1666 = vmatpush1.msra.mxu0 %v1349
    %1667 = vmatprep.subr.mxu0 %v1358
    %1668 = vmatpush1.msra.mxu0 %v1357
    %1669 = vmatprep.subr.mxu0 %v1366
    %1670 = vmatpush1.msra.mxu0 %v1365
    %1671 = vmatprep.subr.mxu0 %v1374
    %1672 = vmatpush1.msra.mxu0 %v1373
    %1673 = vmatprep.subr.mxu0 %v1382
    %1674 = vmatpush1.msra.mxu0 %v1381
    %1675 = vmatprep.subr.mxu0 %v1390
    %1676 = vmatpush1.msra.mxu0 %v1389
    %1677 = vmatprep.subr.mxu0 %v1398
    %1678 = vmatpush1.msra.mxu0 %v1397
    %1679 = vmatprep.subr.mxu0 %v1406
    %1680 = vmatpush1.msra.mxu0 %v1405
    %1681 = vmatprep.subr.mxu0 %v1414
    %1682 = vmatpush1.msra.mxu0 %v1413
    %1683 = vmatprep.subr.mxu0 %v1422
    %1684 = vmatpush1.msra.mxu0 %v1421
    %1685 = vmatprep.subr.mxu0 %v1430
    %1686 = vmatpush1.msra.mxu0 %v1429
    %1687 = vmatprep.subr.mxu0 %v1438
    %1688 = vmatpush1.msra.mxu0 %v1437
    %1689 = vmatprep.subr.mxu0 %v1446
    %1690 = vmatpush1.msra.mxu0 %v1445
    %1691 = vmatprep.mubr.f32.mxu0 %v1454
    %1692 = vmatmul.mubr.f32.gmra.mrb[0].mxu0 %v1626
    %v1693 = vpop.f32.mrb[0].mxu0
    %v1694 = vadd.f32 0.0, %v1693
    %v1695 = vpop.f32.mrb[0].mxu0
    %v1696 = vadd.f32 0.0, %v1695
    %1697 = vdwg.mxu0
    %1698 = vmatprep.subr.mxu0 %v1200
    %1699 = vmatpush1.msra.mxu0 %v1199
    %1700 = vmatprep.subr.mxu0 %v1208
    %1701 = vmatpush1.msra.mxu0 %v1207
    %1702 = vmatprep.subr.mxu0 %v1216
    %1703 = vmatpush1.msra.mxu0 %v1215
    %1704 = vmatprep.subr.mxu0 %v1224
    %1705 = vmatpush1.msra.mxu0 %v1223
    %1706 = vmatprep.subr.mxu0 %v1232
    %1707 = vmatpush1.msra.mxu0 %v1231
    %1708 = vmatprep.subr.mxu0 %v1240
    %1709 = vmatpush1.msra.mxu0 %v1239
    %1710 = vmatprep.subr.mxu0 %v1248
    %1711 = vmatpush1.msra.mxu0 %v1247
    %1712 = vmatprep.subr.mxu0 %v1256
    %1713 = vmatpush1.msra.mxu0 %v1255
    %1714 = vmatprep.subr.mxu0 %v1264
    %1715 = vmatpush1.msra.mxu0 %v1263
    %1716 = vmatprep.subr.mxu0 %v1272
    %1717 = vmatpush1.msra.mxu0 %v1271
    %1718 = vmatprep.subr.mxu0 %v1280
    %1719 = vmatpush1.msra.mxu0 %v1279
    %1720 = vmatprep.subr.mxu0 %v1288
    %1721 = vmatpush1.msra.mxu0 %v1287
    %1722 = vmatprep.subr.mxu0 %v1296
    %1723 = vmatpush1.msra.mxu0 %v1295
    %1724 = vmatprep.subr.mxu0 %v1304
    %1725 = vmatpush1.msra.mxu0 %v1303
    %1726 = vmatprep.subr.mxu0 %v1312
    %1727 = vmatpush1.msra.mxu0 %v1311
    %1728 = vmatprep.subr.mxu0 %v1320
    %1729 = vmatpush1.msra.mxu0 %v1319
    %1730 = vmatprep.subr.mxu0 %v1328
    %1731 = vmatpush1.msra.mxu0 %v1327
    %1732 = vmatprep.subr.mxu0 %v1336
    %1733 = vmatpush1.msra.mxu0 %v1335
    %1734 = vmatprep.subr.mxu0 %v1344
    %1735 = vmatpush1.msra.mxu0 %v1343
    %1736 = vmatprep.subr.mxu0 %v1352
    %1737 = vmatpush1.msra.mxu0 %v1351
    %1738 = vmatprep.subr.mxu0 %v1360
    %1739 = vmatpush1.msra.mxu0 %v1359
    %1740 = vmatprep.subr.mxu0 %v1368
    %1741 = vmatpush1.msra.mxu0 %v1367
    %1742 = vmatprep.subr.mxu0 %v1376
    %1743 = vmatpush1.msra.mxu0 %v1375
    %1744 = vmatprep.subr.mxu0 %v1384
    %1745 = vmatpush1.msra.mxu0 %v1383
    %1746 = vmatprep.subr.mxu0 %v1392
    %1747 = vmatpush1.msra.mxu0 %v1391
    %1748 = vmatprep.subr.mxu0 %v1400
    %1749 = vmatpush1.msra.mxu0 %v1399
    %1750 = vmatprep.subr.mxu0 %v1408
    %1751 = vmatpush1.msra.mxu0 %v1407
    %1752 = vmatprep.subr.mxu0 %v1416
    %1753 = vmatpush1.msra.mxu0 %v1415
    %1754 = vmatprep.subr.mxu0 %v1424
    %1755 = vmatpush1.msra.mxu0 %v1423
    %1756 = vmatprep.subr.mxu0 %v1432
    %1757 = vmatpush1.msra.mxu0 %v1431
    %1758 = vmatprep.subr.mxu0 %v1440
    %1759 = vmatpush1.msra.mxu0 %v1439
    %1760 = vmatprep.subr.mxu0 %v1448
    %1761 = vmatpush1.msra.mxu0 %v1447
    %1762 = vmatprep.mubr.f32.mxu0 %v1454
    %1763 = vmatmul.mubr.f32.gmra.mrb[0].mxu0 %v1626
    %v1764 = vpop.f32.mrb[0].mxu0
    %v1765 = vadd.f32 0.0, %v1764
    %v1766 = vpop.f32.mrb[0].mxu0
    %v1767 = vadd.f32 0.0, %v1766
    %1768 = vdwg.mxu0
    %1769 = vmatprep.subr.mxu0 %v1202
    %1770 = vmatpush1.msra.mxu0 %v1201
    %1771 = vmatprep.subr.mxu0 %v1210
    %1772 = vmatpush1.msra.mxu0 %v1209
    %1773 = vmatprep.subr.mxu0 %v1218
    %1774 = vmatpush1.msra.mxu0 %v1217
    %1775 = vmatprep.subr.mxu0 %v1226
    %1776 = vmatpush1.msra.mxu0 %v1225
    %1777 = vmatprep.subr.mxu0 %v1234
    %1778 = vmatpush1.msra.mxu0 %v1233
    %1779 = vmatprep.subr.mxu0 %v1242
    %1780 = vmatpush1.msra.mxu0 %v1241
    %1781 = vmatprep.subr.mxu0 %v1250
    %1782 = vmatpush1.msra.mxu0 %v1249
    %1783 = vmatprep.subr.mxu0 %v1258
    %1784 = vmatpush1.msra.mxu0 %v1257
    %1785 = vmatprep.subr.mxu0 %v1266
    %1786 = vmatpush1.msra.mxu0 %v1265
    %1787 = vmatprep.subr.mxu0 %v1274
    %1788 = vmatpush1.msra.mxu0 %v1273
    %1789 = vmatprep.subr.mxu0 %v1282
    %1790 = vmatpush1.msra.mxu0 %v1281
    %1791 = vmatprep.subr.mxu0 %v1290
    %1792 = vmatpush1.msra.mxu0 %v1289
    %1793 = vmatprep.subr.mxu0 %v1298
    %1794 = vmatpush1.msra.mxu0 %v1297
    %1795 = vmatprep.subr.mxu0 %v1306
    %1796 = vmatpush1.msra.mxu0 %v1305
    %1797 = vmatprep.subr.mxu0 %v1314
    %1798 = vmatpush1.msra.mxu0 %v1313
    %1799 = vmatprep.subr.mxu0 %v1322
    %1800 = vmatpush1.msra.mxu0 %v1321
    %1801 = vmatprep.subr.mxu0 %v1330
    %1802 = vmatpush1.msra.mxu0 %v1329
    %1803 = vmatprep.subr.mxu0 %v1338
    %1804 = vmatpush1.msra.mxu0 %v1337
    %1805 = vmatprep.subr.mxu0 %v1346
    %1806 = vmatpush1.msra.mxu0 %v1345
    %1807 = vmatprep.subr.mxu0 %v1354
    %1808 = vmatpush1.msra.mxu0 %v1353
    %1809 = vmatprep.subr.mxu0 %v1362
    %1810 = vmatpush1.msra.mxu0 %v1361
    %1811 = vmatprep.subr.mxu0 %v1370
    %1812 = vmatpush1.msra.mxu0 %v1369
    %1813 = vmatprep.subr.mxu0 %v1378
    %1814 = vmatpush1.msra.mxu0 %v1377
    %1815 = vmatprep.subr.mxu0 %v1386
    %1816 = vmatpush1.msra.mxu0 %v1385
    %1817 = vmatprep.subr.mxu0 %v1394
    %1818 = vmatpush1.msra.mxu0 %v1393
    %1819 = vmatprep.subr.mxu0 %v1402
    %1820 = vmatpush1.msra.mxu0 %v1401
    %1821 = vmatprep.subr.mxu0 %v1410
    %1822 = vmatpush1.msra.mxu0 %v1409
    %1823 = vmatprep.subr.mxu0 %v1418
    %1824 = vmatpush1.msra.mxu0 %v1417
    %1825 = vmatprep.subr.mxu0 %v1426
    %1826 = vmatpush1.msra.mxu0 %v1425
    %1827 = vmatprep.subr.mxu0 %v1434
    %1828 = vmatpush1.msra.mxu0 %v1433
    %1829 = vmatprep.subr.mxu0 %v1442
    %1830 = vmatpush1.msra.mxu0 %v1441
    %1831 = vmatprep.subr.mxu0 %v1450
    %1832 = vmatpush1.msra.mxu0 %v1449
    %1833 = vmatprep.mubr.f32.mxu0 %v1454
    %1834 = vmatmul.mubr.f32.gmra.mrb[0].mxu0 %v1626
    %v1835 = vpop.f32.mrb[0].mxu0
    %v1836 = vadd.f32 0.0, %v1835
    %v1837 = vpop.f32.mrb[0].mxu0
    %v1838 = vadd.f32 0.0, %v1837
    %1839 = vdwg.mxu0
    %1840 = vmatprep.subr.mxu0 %v1204
    %1841 = vmatpush1.msra.mxu0 %v1203
    %1842 = vmatprep.subr.mxu0 %v1212
    %1843 = vmatpush1.msra.mxu0 %v1211
    %1844 = vmatprep.subr.mxu0 %v1220
    %1845 = vmatpush1.msra.mxu0 %v1219
    %1846 = vmatprep.subr.mxu0 %v1228
    %1847 = vmatpush1.msra.mxu0 %v1227
    %1848 = vmatprep.subr.mxu0 %v1236
    %1849 = vmatpush1.msra.mxu0 %v1235
    %1850 = vmatprep.subr.mxu0 %v1244
    %1851 = vmatpush1.msra.mxu0 %v1243
    %1852 = vmatprep.subr.mxu0 %v1252
    %1853 = vmatpush1.msra.mxu0 %v1251
    %1854 = vmatprep.subr.mxu0 %v1260
    %1855 = vmatpush1.msra.mxu0 %v1259
    %1856 = vmatprep.subr.mxu0 %v1268
    %1857 = vmatpush1.msra.mxu0 %v1267
    %1858 = vmatprep.subr.mxu0 %v1276
    %1859 = vmatpush1.msra.mxu0 %v1275
    %1860 = vmatprep.subr.mxu0 %v1284
    %1861 = vmatpush1.msra.mxu0 %v1283
    %1862 = vmatprep.subr.mxu0 %v1292
    %1863 = vmatpush1.msra.mxu0 %v1291
    %1864 = vmatprep.subr.mxu0 %v1300
    %1865 = vmatpush1.msra.mxu0 %v1299
    %1866 = vmatprep.subr.mxu0 %v1308
    %1867 = vmatpush1.msra.mxu0 %v1307
    %1868 = vmatprep.subr.mxu0 %v1316
    %1869 = vmatpush1.msra.mxu0 %v1315
    %1870 = vmatprep.subr.mxu0 %v1324
    %1871 = vmatpush1.msra.mxu0 %v1323
    %1872 = vmatprep.subr.mxu0 %v1332
    %1873 = vmatpush1.msra.mxu0 %v1331
    %1874 = vmatprep.subr.mxu0 %v1340
    %1875 = vmatpush1.msra.mxu0 %v1339
    %1876 = vmatprep.subr.mxu0 %v1348
    %1877 = vmatpush1.msra.mxu0 %v1347
    %1878 = vmatprep.subr.mxu0 %v1356
    %1879 = vmatpush1.msra.mxu0 %v1355
    %1880 = vmatprep.subr.mxu0 %v1364
    %1881 = vmatpush1.msra.mxu0 %v1363
    %1882 = vmatprep.subr.mxu0 %v1372
    %1883 = vmatpush1.msra.mxu0 %v1371
    %1884 = vmatprep.subr.mxu0 %v1380
    %1885 = vmatpush1.msra.mxu0 %v1379
    %1886 = vmatprep.subr.mxu0 %v1388
    %1887 = vmatpush1.msra.mxu0 %v1387
    %1888 = vmatprep.subr.mxu0 %v1396
    %1889 = vmatpush1.msra.mxu0 %v1395
    %1890 = vmatprep.subr.mxu0 %v1404
    %1891 = vmatpush1.msra.mxu0 %v1403
    %1892 = vmatprep.subr.mxu0 %v1412
    %1893 = vmatpush1.msra.mxu0 %v1411
    %1894 = vmatprep.subr.mxu0 %v1420
    %1895 = vmatpush1.msra.mxu0 %v1419
    %1896 = vmatprep.subr.mxu0 %v1428
    %1897 = vmatpush1.msra.mxu0 %v1427
    %1898 = vmatprep.subr.mxu0 %v1436
    %1899 = vmatpush1.msra.mxu0 %v1435
    %1900 = vmatprep.subr.mxu0 %v1444
    %1901 = vmatpush1.msra.mxu0 %v1443
    %1902 = vmatprep.subr.mxu0 %v1452
    %1903 = vmatpush1.msra.mxu0 %v1451
    %1904 = vmatprep.mubr.f32.mxu0 %v1454
    %1905 = vmatmul.mubr.f32.gmra.mrb[0].mxu0 %v1626
    %v1906 = vpop.f32.mrb[0].mxu0
    %v1907 = vadd.f32 0.0, %v1906
    %v1908 = vpop.f32.mrb[0].mxu0
    %v1909 = vadd.f32 0.0, %v1908
    %1910 = vdwg.mxu0
    %v1915 = vrot.slane %v909, 1
    %v1916 = vrot.slane %v911, 1
    %v1917 = vrot.slane %v1193, 1
    %v1918 = vrot.slane %v1195, 1
    %v1923 = vadd.f32 %v1694, %v1915
    %v1924 = vadd.f32 %v1696, %v1916
    %v1925 = vadd.f32 %v1765, %v1917
    %v1926 = vadd.f32 %v1767, %v1918
    %v1927 = vxor.u32 %v1923, 2147483648
    %v1928 = vmul.f32 %v1927, 1.442695
    %v1929 = vpow.pop %v1928
    %v1930 = vadd.f32 %v1929, 1.0
    %v1931 = vrcp.pop %v1930
    %v1932 = vmul.f32 1.0, %v1931
    %v1933 = vxor.u32 %v1924, 2147483648
    %v1934 = vmul.f32 %v1933, 1.442695
    %v1935 = vpow.pop %v1934
    %v1936 = vadd.f32 %v1935, 1.0
    %v1937 = vrcp.pop %v1936
    %v1938 = vmul.f32 1.0, %v1937
    %v1939 = vtanh.pop %v1925
    %v1940 = vxor.u32 %v1926, 2147483648
    %v1941 = vmul.f32 %v1940, 1.442695
    %v1942 = vpow.pop %v1941
    %v1943 = vadd.f32 %v1942, 1.0
    %v1944 = vrcp.pop %v1943
    %v1945 = vmul.f32 1.0, %v1944
    %v1946 = vmul.f32 %v1938, %v1624
    %v1947 = vmul.f32 %v1932, %v1939
    %v1948 = vadd.f32 %v1946, %v1947
    %v1949 = vtanh.pop %v1948
    %v1950 = vmul.f32 %v1945, %v1949
    %s1951 = scalar_lea.vmem [#allocation8], 1
    %v1952 = vld [vmem:[%s1951] ss:$2 sm:$0xf]
    %v1954 = vlaneseq
    %v1955 = vshrl.u32 %v1954, 7
    %v1956 = vsub.s32 0, %v1955
    %v1957 = vrot.slane %v1952, %v1956
    %v1958 = vlaneseq
    %v1959 = vshrl.u32 %v1958, 7
    %v1960 = vsub.s32 1, %v1959
    %v1961 = vrot.slane %v1952, %v1960
    %v1962 = vlaneseq
    %v1963 = vshrl.u32 %v1962, 7
    %v1964 = vsub.s32 2, %v1963
    %v1965 = vrot.slane %v1952, %v1964
    %v1966 = vlaneseq
    %v1967 = vshrl.u32 %v1966, 7
    %v1968 = vsub.s32 3, %v1967
    %v1969 = vrot.slane %v1952, %v1968
    %v1974 = vadd.f32 %v1836, %v1957
    %v1975 = vadd.f32 %v1838, %v1961
    %v1976 = vadd.f32 %v1907, %v1965
    %v1977 = vadd.f32 %v1909, %v1969
    %v1978 = vxor.u32 %v1974, 2147483648
    %v1979 = vmul.f32 %v1978, 1.442695
    %v1980 = vpow.pop %v1979
    %v1981 = vadd.f32 %v1980, 1.0
    %v1982 = vrcp.pop %v1981
    %v1983 = vmul.f32 1.0, %v1982
    %v1984 = vxor.u32 %v1975, 2147483648
    %v1985 = vmul.f32 %v1984, 1.442695
    %v1986 = vpow.pop %v1985
    %v1987 = vadd.f32 %v1986, 1.0
    %v1988 = vrcp.pop %v1987
    %v1989 = vmul.f32 1.0, %v1988
    %v1990 = vtanh.pop %v1976
    %v1991 = vxor.u32 %v1977, 2147483648
    %v1992 = vmul.f32 %v1991, 1.442695
    %v1993 = vpow.pop %v1992
    %v1994 = vadd.f32 %v1993, 1.0
    %v1995 = vrcp.pop %v1994
    %v1996 = vmul.f32 1.0, %v1995
    %v1997 = vmul.f32 %v1989, %v1456
    %v1998 = vmul.f32 %v1983, %v1990
    %v1999 = vadd.f32 %v1997, %v1998
    %v2000 = vtanh.pop %v1999
    %v2001 = vmul.f32 %v1996, %v2000
    %2002 = vst [vmem:[#allocation11] sm:$0x1] %v2001
    %2003 = vmatprep.subr.mxu0 %v1198
    %2004 = vmatpush1.msra.mxu0 %v1197
    %2005 = vmatprep.subr.mxu0 %v1206
    %2006 = vmatpush1.msra.mxu0 %v1205
    %2007 = vmatprep.subr.mxu0 %v1214
    %2008 = vmatpush1.msra.mxu0 %v1213
    %2009 = vmatprep.subr.mxu0 %v1222
    %2010 = vmatpush1.msra.mxu0 %v1221
    %2011 = vmatprep.subr.mxu0 %v1230
    %2012 = vmatpush1.msra.mxu0 %v1229
    %2013 = vmatprep.subr.mxu0 %v1238
    %2014 = vmatpush1.msra.mxu0 %v1237
    %2015 = vmatprep.subr.mxu0 %v1246
    %2016 = vmatpush1.msra.mxu0 %v1245
    %2017 = vmatprep.subr.mxu0 %v1254
    %2018 = vmatpush1.msra.mxu0 %v1253
    %2019 = vmatprep.subr.mxu0 %v1262
    %2020 = vmatpush1.msra.mxu0 %v1261
    %2021 = vmatprep.subr.mxu0 %v1270
    %2022 = vmatpush1.msra.mxu0 %v1269
    %2023 = vmatprep.subr.mxu0 %v1278
    %2024 = vmatpush1.msra.mxu0 %v1277
    %2025 = vmatprep.subr.mxu0 %v1286
    %2026 = vmatpush1.msra.mxu0 %v1285
    %2027 = vmatprep.subr.mxu0 %v1294
    %2028 = vmatpush1.msra.mxu0 %v1293
    %2029 = vmatprep.subr.mxu0 %v1302
    %2030 = vmatpush1.msra.mxu0 %v1301
    %2031 = vmatprep.subr.mxu0 %v1310
    %2032 = vmatpush1.msra.mxu0 %v1309
    %2033 = vmatprep.subr.mxu0 %v1318
    %2034 = vmatpush1.msra.mxu0 %v1317
    %2035 = vmatprep.subr.mxu0 %v1326
    %2036 = vmatpush1.msra.mxu0 %v1325
    %2037 = vmatprep.subr.mxu0 %v1334
    %2038 = vmatpush1.msra.mxu0 %v1333
    %2039 = vmatprep.subr.mxu0 %v1342
    %2040 = vmatpush1.msra.mxu0 %v1341
    %2041 = vmatprep.subr.mxu0 %v1350
    %2042 = vmatpush1.msra.mxu0 %v1349
    %2043 = vmatprep.subr.mxu0 %v1358
    %2044 = vmatpush1.msra.mxu0 %v1357
    %2045 = vmatprep.subr.mxu0 %v1366
    %2046 = vmatpush1.msra.mxu0 %v1365
    %2047 = vmatprep.subr.mxu0 %v1374
    %2048 = vmatpush1.msra.mxu0 %v1373
    %2049 = vmatprep.subr.mxu0 %v1382
    %2050 = vmatpush1.msra.mxu0 %v1381
    %2051 = vmatprep.subr.mxu0 %v1390
    %2052 = vmatpush1.msra.mxu0 %v1389
    %2053 = vmatprep.subr.mxu0 %v1398
    %2054 = vmatpush1.msra.mxu0 %v1397
    %2055 = vmatprep.subr.mxu0 %v1406
    %2056 = vmatpush1.msra.mxu0 %v1405
    %2057 = vmatprep.subr.mxu0 %v1414
    %2058 = vmatpush1.msra.mxu0 %v1413
    %2059 = vmatprep.subr.mxu0 %v1422
    %2060 = vmatpush1.msra.mxu0 %v1421
    %2061 = vmatprep.subr.mxu0 %v1430
    %2062 = vmatpush1.msra.mxu0 %v1429
    %2063 = vmatprep.subr.mxu0 %v1438
    %2064 = vmatpush1.msra.mxu0 %v1437
    %2065 = vmatprep.subr.mxu0 %v1446
    %2066 = vmatpush1.msra.mxu0 %v1445
    %2067 = vmatprep.mubr.f32.mxu0 %v2001
    %2068 = vmatmul.mubr.f32.gmra.mrb[0].mxu0 %v1950
    %v2069 = vpop.f32.mrb[0].mxu0
    %v2070 = vadd.f32 0.0, %v2069
    %v2071 = vpop.f32.mrb[0].mxu0
    %v2072 = vadd.f32 0.0, %v2071
    %2073 = vdwg.mxu0
    %2074 = vmatprep.subr.mxu0 %v1200
    %2075 = vmatpush1.msra.mxu0 %v1199
    %2076 = vmatprep.subr.mxu0 %v1208
    %2077 = vmatpush1.msra.mxu0 %v1207
    %2078 = vmatprep.subr.mxu0 %v1216
    %2079 = vmatpush1.msra.mxu0 %v1215
    %2080 = vmatprep.subr.mxu0 %v1224
    %2081 = vmatpush1.msra.mxu0 %v1223
    %2082 = vmatprep.subr.mxu0 %v1232
    %2083 = vmatpush1.msra.mxu0 %v1231
    %2084 = vmatprep.subr.mxu0 %v1240
    %2085 = vmatpush1.msra.mxu0 %v1239
    %2086 = vmatprep.subr.mxu0 %v1248
    %2087 = vmatpush1.msra.mxu0 %v1247
    %2088 = vmatprep.subr.mxu0 %v1256
    %2089 = vmatpush1.msra.mxu0 %v1255
    %2090 = vmatprep.subr.mxu0 %v1264
    %2091 = vmatpush1.msra.mxu0 %v1263
    %2092 = vmatprep.subr.mxu0 %v1272
    %2093 = vmatpush1.msra.mxu0 %v1271
    %2094 = vmatprep.subr.mxu0 %v1280
    %2095 = vmatpush1.msra.mxu0 %v1279
    %2096 = vmatprep.subr.mxu0 %v1288
    %2097 = vmatpush1.msra.mxu0 %v1287
    %2098 = vmatprep.subr.mxu0 %v1296
    %2099 = vmatpush1.msra.mxu0 %v1295
    %2100 = vmatprep.subr.mxu0 %v1304
    %2101 = vmatpush1.msra.mxu0 %v1303
    %2102 = vmatprep.subr.mxu0 %v1312
    %2103 = vmatpush1.msra.mxu0 %v1311
    %2104 = vmatprep.subr.mxu0 %v1320
    %2105 = vmatpush1.msra.mxu0 %v1319
    %2106 = vmatprep.subr.mxu0 %v1328
    %2107 = vmatpush1.msra.mxu0 %v1327
    %2108 = vmatprep.subr.mxu0 %v1336
    %2109 = vmatpush1.msra.mxu0 %v1335
    %2110 = vmatprep.subr.mxu0 %v1344
    %2111 = vmatpush1.msra.mxu0 %v1343
    %2112 = vmatprep.subr.mxu0 %v1352
    %2113 = vmatpush1.msra.mxu0 %v1351
    %2114 = vmatprep.subr.mxu0 %v1360
    %2115 = vmatpush1.msra.mxu0 %v1359
    %2116 = vmatprep.subr.mxu0 %v1368
    %2117 = vmatpush1.msra.mxu0 %v1367
    %2118 = vmatprep.subr.mxu0 %v1376
    %2119 = vmatpush1.msra.mxu0 %v1375
    %2120 = vmatprep.subr.mxu0 %v1384
    %2121 = vmatpush1.msra.mxu0 %v1383
    %2122 = vmatprep.subr.mxu0 %v1392
    %2123 = vmatpush1.msra.mxu0 %v1391
    %2124 = vmatprep.subr.mxu0 %v1400
    %2125 = vmatpush1.msra.mxu0 %v1399
    %2126 = vmatprep.subr.mxu0 %v1408
    %2127 = vmatpush1.msra.mxu0 %v1407
    %2128 = vmatprep.subr.mxu0 %v1416
    %2129 = vmatpush1.msra.mxu0 %v1415
    %2130 = vmatprep.subr.mxu0 %v1424
    %2131 = vmatpush1.msra.mxu0 %v1423
    %2132 = vmatprep.subr.mxu0 %v1432
    %2133 = vmatpush1.msra.mxu0 %v1431
    %2134 = vmatprep.subr.mxu0 %v1440
    %2135 = vmatpush1.msra.mxu0 %v1439
    %2136 = vmatprep.subr.mxu0 %v1448
    %2137 = vmatpush1.msra.mxu0 %v1447
    %2138 = vmatprep.mubr.f32.mxu0 %v2001
    %2139 = vmatmul.mubr.f32.gmra.mrb[0].mxu0 %v1950
    %v2140 = vpop.f32.mrb[0].mxu0
    %v2141 = vadd.f32 0.0, %v2140
    %v2142 = vpop.f32.mrb[0].mxu0
    %v2143 = vadd.f32 0.0, %v2142
    %2144 = vdwg.mxu0
    %2145 = vmatprep.subr.mxu0 %v1202
    %2146 = vmatpush1.msra.mxu0 %v1201
    %2147 = vmatprep.subr.mxu0 %v1210
    %2148 = vmatpush1.msra.mxu0 %v1209
    %2149 = vmatprep.subr.mxu0 %v1218
    %2150 = vmatpush1.msra.mxu0 %v1217
    %2151 = vmatprep.subr.mxu0 %v1226
    %2152 = vmatpush1.msra.mxu0 %v1225
    %2153 = vmatprep.subr.mxu0 %v1234
    %2154 = vmatpush1.msra.mxu0 %v1233
    %2155 = vmatprep.subr.mxu0 %v1242
    %2156 = vmatpush1.msra.mxu0 %v1241
    %2157 = vmatprep.subr.mxu0 %v1250
    %2158 = vmatpush1.msra.mxu0 %v1249
    %2159 = vmatprep.subr.mxu0 %v1258
    %2160 = vmatpush1.msra.mxu0 %v1257
    %2161 = vmatprep.subr.mxu0 %v1266
    %2162 = vmatpush1.msra.mxu0 %v1265
    %2163 = vmatprep.subr.mxu0 %v1274
    %2164 = vmatpush1.msra.mxu0 %v1273
    %2165 = vmatprep.subr.mxu0 %v1282
    %2166 = vmatpush1.msra.mxu0 %v1281
    %2167 = vmatprep.subr.mxu0 %v1290
    %2168 = vmatpush1.msra.mxu0 %v1289
    %2169 = vmatprep.subr.mxu0 %v1298
    %2170 = vmatpush1.msra.mxu0 %v1297
    %2171 = vmatprep.subr.mxu0 %v1306
    %2172 = vmatpush1.msra.mxu0 %v1305
    %2173 = vmatprep.subr.mxu0 %v1314
    %2174 = vmatpush1.msra.mxu0 %v1313
    %2175 = vmatprep.subr.mxu0 %v1322
    %2176 = vmatpush1.msra.mxu0 %v1321
    %2177 = vmatprep.subr.mxu0 %v1330
    %2178 = vmatpush1.msra.mxu0 %v1329
    %2179 = vmatprep.subr.mxu0 %v1338
    %2180 = vmatpush1.msra.mxu0 %v1337
    %2181 = vmatprep.subr.mxu0 %v1346
    %2182 = vmatpush1.msra.mxu0 %v1345
    %2183 = vmatprep.subr.mxu0 %v1354
    %2184 = vmatpush1.msra.mxu0 %v1353
    %2185 = vmatprep.subr.mxu0 %v1362
    %2186 = vmatpush1.msra.mxu0 %v1361
    %2187 = vmatprep.subr.mxu0 %v1370
    %2188 = vmatpush1.msra.mxu0 %v1369
    %2189 = vmatprep.subr.mxu0 %v1378
    %2190 = vmatpush1.msra.mxu0 %v1377
    %2191 = vmatprep.subr.mxu0 %v1386
    %2192 = vmatpush1.msra.mxu0 %v1385
    %2193 = vmatprep.subr.mxu0 %v1394
    %2194 = vmatpush1.msra.mxu0 %v1393
    %2195 = vmatprep.subr.mxu0 %v1402
    %2196 = vmatpush1.msra.mxu0 %v1401
    %2197 = vmatprep.subr.mxu0 %v1410
    %2198 = vmatpush1.msra.mxu0 %v1409
    %2199 = vmatprep.subr.mxu0 %v1418
    %2200 = vmatpush1.msra.mxu0 %v1417
    %2201 = vmatprep.subr.mxu0 %v1426
    %2202 = vmatpush1.msra.mxu0 %v1425
    %2203 = vmatprep.subr.mxu0 %v1434
    %2204 = vmatpush1.msra.mxu0 %v1433
    %2205 = vmatprep.subr.mxu0 %v1442
    %2206 = vmatpush1.msra.mxu0 %v1441
    %2207 = vmatprep.subr.mxu0 %v1450
    %2208 = vmatpush1.msra.mxu0 %v1449
    %2209 = vmatprep.mubr.f32.mxu0 %v2001
    %2210 = vmatmul.mubr.f32.gmra.mrb[0].mxu0 %v1950
    %v2211 = vpop.f32.mrb[0].mxu0
    %v2212 = vadd.f32 0.0, %v2211
    %v2213 = vpop.f32.mrb[0].mxu0
    %v2214 = vadd.f32 0.0, %v2213
    %2215 = vdwg.mxu0
    %2216 = vmatprep.subr.mxu0 %v1204
    %2217 = vmatpush1.msra.mxu0 %v1203
    %2218 = vmatprep.subr.mxu0 %v1212
    %2219 = vmatpush1.msra.mxu0 %v1211
    %2220 = vmatprep.subr.mxu0 %v1220
    %2221 = vmatpush1.msra.mxu0 %v1219
    %2222 = vmatprep.subr.mxu0 %v1228
    %2223 = vmatpush1.msra.mxu0 %v1227
    %2224 = vmatprep.subr.mxu0 %v1236
    %2225 = vmatpush1.msra.mxu0 %v1235
    %2226 = vmatprep.subr.mxu0 %v1244
    %2227 = vmatpush1.msra.mxu0 %v1243
    %2228 = vmatprep.subr.mxu0 %v1252
    %2229 = vmatpush1.msra.mxu0 %v1251
    %2230 = vmatprep.subr.mxu0 %v1260
    %2231 = vmatpush1.msra.mxu0 %v1259
    %2232 = vmatprep.subr.mxu0 %v1268
    %2233 = vmatpush1.msra.mxu0 %v1267
    %2234 = vmatprep.subr.mxu0 %v1276
    %2235 = vmatpush1.msra.mxu0 %v1275
    %2236 = vmatprep.subr.mxu0 %v1284
    %2237 = vmatpush1.msra.mxu0 %v1283
    %2238 = vmatprep.subr.mxu0 %v1292
    %2239 = vmatpush1.msra.mxu0 %v1291
    %2240 = vmatprep.subr.mxu0 %v1300
    %2241 = vmatpush1.msra.mxu0 %v1299
    %2242 = vmatprep.subr.mxu0 %v1308
    %2243 = vmatpush1.msra.mxu0 %v1307
    %2244 = vmatprep.subr.mxu0 %v1316
    %2245 = vmatpush1.msra.mxu0 %v1315
    %2246 = vmatprep.subr.mxu0 %v1324
    %2247 = vmatpush1.msra.mxu0 %v1323
    %2248 = vmatprep.subr.mxu0 %v1332
    %2249 = vmatpush1.msra.mxu0 %v1331
    %2250 = vmatprep.subr.mxu0 %v1340
    %2251 = vmatpush1.msra.mxu0 %v1339
    %2252 = vmatprep.subr.mxu0 %v1348
    %2253 = vmatpush1.msra.mxu0 %v1347
    %2254 = vmatprep.subr.mxu0 %v1356
    %2255 = vmatpush1.msra.mxu0 %v1355
    %2256 = vmatprep.subr.mxu0 %v1364
    %2257 = vmatpush1.msra.mxu0 %v1363
    %2258 = vmatprep.subr.mxu0 %v1372
    %2259 = vmatpush1.msra.mxu0 %v1371
    %2260 = vmatprep.subr.mxu0 %v1380
    %2261 = vmatpush1.msra.mxu0 %v1379
    %2262 = vmatprep.subr.mxu0 %v1388
    %2263 = vmatpush1.msra.mxu0 %v1387
    %2264 = vmatprep.subr.mxu0 %v1396
    %2265 = vmatpush1.msra.mxu0 %v1395
    %2266 = vmatprep.subr.mxu0 %v1404
    %2267 = vmatpush1.msra.mxu0 %v1403
    %2268 = vmatprep.subr.mxu0 %v1412
    %2269 = vmatpush1.msra.mxu0 %v1411
    %2270 = vmatprep.subr.mxu0 %v1420
    %2271 = vmatpush1.msra.mxu0 %v1419
    %2272 = vmatprep.subr.mxu0 %v1428
    %2273 = vmatpush1.msra.mxu0 %v1427
    %2274 = vmatprep.subr.mxu0 %v1436
    %2275 = vmatpush1.msra.mxu0 %v1435
    %2276 = vmatprep.subr.mxu0 %v1444
    %2277 = vmatpush1.msra.mxu0 %v1443
    %2278 = vmatprep.subr.mxu0 %v1452
    %2279 = vmatpush1.msra.mxu0 %v1451
    %2280 = vmatprep.mubr.f32.mxu0 %v2001
    %2281 = vmatmul.mubr.f32.gmra.mrb[0].mxu0 %v1950
    %v2282 = vpop.f32.mrb[0].mxu0
    %v2283 = vadd.f32 0.0, %v2282
    %v2284 = vpop.f32.mrb[0].mxu0
    %v2285 = vadd.f32 0.0, %v2284
    %2286 = vdwg.mxu0
    %v2287 = vrot.slane %v909, 2
    %v2288 = vrot.slane %v911, 2
    %v2289 = vrot.slane %v1193, 2
    %v2290 = vrot.slane %v1195, 2
    %v2295 = vadd.f32 %v2070, %v2287
    %v2296 = vadd.f32 %v2072, %v2288
    %v2297 = vadd.f32 %v2141, %v2289
    %v2298 = vadd.f32 %v2143, %v2290
    %v2299 = vxor.u32 %v2295, 2147483648
    %v2300 = vmul.f32 %v2299, 1.442695
    %v2301 = vpow.pop %v2300
    %v2302 = vadd.f32 %v2301, 1.0
    %v2303 = vrcp.pop %v2302
    %v2304 = vmul.f32 1.0, %v2303
    %v2305 = vxor.u32 %v2296, 2147483648
    %v2306 = vmul.f32 %v2305, 1.442695
    %v2307 = vpow.pop %v2306
    %v2308 = vadd.f32 %v2307, 1.0
    %v2309 = vrcp.pop %v2308
    %v2310 = vmul.f32 1.0, %v2309
    %v2311 = vtanh.pop %v2297
    %v2312 = vxor.u32 %v2298, 2147483648
    %v2313 = vmul.f32 %v2312, 1.442695
    %v2314 = vpow.pop %v2313
    %v2315 = vadd.f32 %v2314, 1.0
    %v2316 = vrcp.pop %v2315
    %v2317 = vmul.f32 1.0, %v2316
    %v2318 = vmul.f32 %v2310, %v1948
    %v2319 = vmul.f32 %v2304, %v2311
    %v2320 = vadd.f32 %v2318, %v2319
    %v2321 = vtanh.pop %v2320
    %v2322 = vmul.f32 %v2317, %v2321
    %v2323 = vld [vmem:[%s1951] ss:$2 sm:$0xf]
    %v2325 = vlaneseq
    %v2326 = vshrl.u32 %v2325, 7
    %v2327 = vsub.s32 0, %v2326
    %v2328 = vrot.slane %v2323, %v2327
    %v2329 = vlaneseq
    %v2330 = vshrl.u32 %v2329, 7
    %v2331 = vsub.s32 1, %v2330
    %v2332 = vrot.slane %v2323, %v2331
    %v2333 = vlaneseq
    %v2334 = vshrl.u32 %v2333, 7
    %v2335 = vsub.s32 2, %v2334
    %v2336 = vrot.slane %v2323, %v2335
    %v2337 = vlaneseq
    %v2338 = vshrl.u32 %v2337, 7
    %v2339 = vsub.s32 3, %v2338
    %v2340 = vrot.slane %v2323, %v2339
    %v2345 = vadd.f32 %v2212, %v2328
    %v2346 = vadd.f32 %v2214, %v2332
    %v2347 = vadd.f32 %v2283, %v2336
    %v2348 = vadd.f32 %v2285, %v2340
    %v2349 = vxor.u32 %v2345, 2147483648
    %v2350 = vmul.f32 %v2349, 1.442695
    %v2351 = vpow.pop %v2350
    %v2352 = vadd.f32 %v2351, 1.0
    %v2353 = vrcp.pop %v2352
    %v2354 = vmul.f32 1.0, %v2353
    %v2355 = vxor.u32 %v2346, 2147483648
    %v2356 = vmul.f32 %v2355, 1.442695
    %v2357 = vpow.pop %v2356
    %v2358 = vadd.f32 %v2357, 1.0
    %v2359 = vrcp.pop %v2358
    %v2360 = vmul.f32 1.0, %v2359
    %v2361 = vtanh.pop %v2347
    %v2362 = vxor.u32 %v2348, 2147483648
    %v2363 = vmul.f32 %v2362, 1.442695
    %v2364 = vpow.pop %v2363
    %v2365 = vadd.f32 %v2364, 1.0
    %v2366 = vrcp.pop %v2365
    %v2367 = vmul.f32 1.0, %v2366
    %v2368 = vmul.f32 %v2360, %v1999
    %v2369 = vmul.f32 %v2354, %v2361
    %v2370 = vadd.f32 %v2368, %v2369
    %v2371 = vtanh.pop %v2370
    %v2372 = vmul.f32 %v2367, %v2371
    %2373 = vst [vmem:[#allocation11 + $0x1] sm:$0x1] %v2372
    %2374 = vmatprep.subr.mxu0 %v1198
    %2375 = vmatpush1.msra.mxu0 %v1197
    %2376 = vmatprep.subr.mxu0 %v1206
    %2377 = vmatpush1.msra.mxu0 %v1205
    %2378 = vmatprep.subr.mxu0 %v1214
    %2379 = vmatpush1.msra.mxu0 %v1213
    %2380 = vmatprep.subr.mxu0 %v1222
    %2381 = vmatpush1.msra.mxu0 %v1221
    %2382 = vmatprep.subr.mxu0 %v1230
    %2383 = vmatpush1.msra.mxu0 %v1229
    %2384 = vmatprep.subr.mxu0 %v1238
    %2385 = vmatpush1.msra.mxu0 %v1237
    %2386 = vmatprep.subr.mxu0 %v1246
    %2387 = vmatpush1.msra.mxu0 %v1245
    %2388 = vmatprep.subr.mxu0 %v1254
    %2389 = vmatpush1.msra.mxu0 %v1253
    %2390 = vmatprep.subr.mxu0 %v1262
    %2391 = vmatpush1.msra.mxu0 %v1261
    %2392 = vmatprep.subr.mxu0 %v1270
    %2393 = vmatpush1.msra.mxu0 %v1269
    %2394 = vmatprep.subr.mxu0 %v1278
    %2395 = vmatpush1.msra.mxu0 %v1277
    %2396 = vmatprep.subr.mxu0 %v1286
    %2397 = vmatpush1.msra.mxu0 %v1285
    %2398 = vmatprep.subr.mxu0 %v1294
    %2399 = vmatpush1.msra.mxu0 %v1293
    %2400 = vmatprep.subr.mxu0 %v1302
    %2401 = vmatpush1.msra.mxu0 %v1301
    %2402 = vmatprep.subr.mxu0 %v1310
    %2403 = vmatpush1.msra.mxu0 %v1309
    %2404 = vmatprep.subr.mxu0 %v1318
    %2405 = vmatpush1.msra.mxu0 %v1317
    %2406 = vmatprep.subr.mxu0 %v1326
    %2407 = vmatpush1.msra.mxu0 %v1325
    %2408 = vmatprep.subr.mxu0 %v1334
    %2409 = vmatpush1.msra.mxu0 %v1333
    %2410 = vmatprep.subr.mxu0 %v1342
    %2411 = vmatpush1.msra.mxu0 %v1341
    %2412 = vmatprep.subr.mxu0 %v1350
    %2413 = vmatpush1.msra.mxu0 %v1349
    %2414 = vmatprep.subr.mxu0 %v1358
    %2415 = vmatpush1.msra.mxu0 %v1357
    %2416 = vmatprep.subr.mxu0 %v1366
    %2417 = vmatpush1.msra.mxu0 %v1365
    %2418 = vmatprep.subr.mxu0 %v1374
    %2419 = vmatpush1.msra.mxu0 %v1373
    %2420 = vmatprep.subr.mxu0 %v1382
    %2421 = vmatpush1.msra.mxu0 %v1381
    %2422 = vmatprep.subr.mxu0 %v1390
    %2423 = vmatpush1.msra.mxu0 %v1389
    %2424 = vmatprep.subr.mxu0 %v1398
    %2425 = vmatpush1.msra.mxu0 %v1397
    %2426 = vmatprep.subr.mxu0 %v1406
    %2427 = vmatpush1.msra.mxu0 %v1405
    %2428 = vmatprep.subr.mxu0 %v1414
    %2429 = vmatpush1.msra.mxu0 %v1413
    %2430 = vmatprep.subr.mxu0 %v1422
    %2431 = vmatpush1.msra.mxu0 %v1421
    %2432 = vmatprep.subr.mxu0 %v1430
    %2433 = vmatpush1.msra.mxu0 %v1429
    %2434 = vmatprep.subr.mxu0 %v1438
    %2435 = vmatpush1.msra.mxu0 %v1437
    %2436 = vmatprep.subr.mxu0 %v1446
    %2437 = vmatpush1.msra.mxu0 %v1445
    %2438 = vmatprep.mubr.f32.mxu0 %v2372
    %2439 = vmatmul.mubr.f32.gmra.mrb[0].mxu0 %v2322
    %v2440 = vpop.f32.mrb[0].mxu0
    %v2441 = vadd.f32 0.0, %v2440
    %v2442 = vpop.f32.mrb[0].mxu0
    %v2443 = vadd.f32 0.0, %v2442
    %2444 = vdwg.mxu0
    %2445 = vmatprep.subr.mxu0 %v1200
    %2446 = vmatpush1.msra.mxu0 %v1199
    %2447 = vmatprep.subr.mxu0 %v1208
    %2448 = vmatpush1.msra.mxu0 %v1207
    %2449 = vmatprep.subr.mxu0 %v1216
    %2450 = vmatpush1.msra.mxu0 %v1215
    %2451 = vmatprep.subr.mxu0 %v1224
    %2452 = vmatpush1.msra.mxu0 %v1223
    %2453 = vmatprep.subr.mxu0 %v1232
    %2454 = vmatpush1.msra.mxu0 %v1231
    %2455 = vmatprep.subr.mxu0 %v1240
    %2456 = vmatpush1.msra.mxu0 %v1239
    %2457 = vmatprep.subr.mxu0 %v1248
    %2458 = vmatpush1.msra.mxu0 %v1247
    %2459 = vmatprep.subr.mxu0 %v1256
    %2460 = vmatpush1.msra.mxu0 %v1255
    %2461 = vmatprep.subr.mxu0 %v1264
    %2462 = vmatpush1.msra.mxu0 %v1263
    %2463 = vmatprep.subr.mxu0 %v1272
    %2464 = vmatpush1.msra.mxu0 %v1271
    %2465 = vmatprep.subr.mxu0 %v1280
    %2466 = vmatpush1.msra.mxu0 %v1279
    %2467 = vmatprep.subr.mxu0 %v1288
    %2468 = vmatpush1.msra.mxu0 %v1287
    %2469 = vmatprep.subr.mxu0 %v1296
    %2470 = vmatpush1.msra.mxu0 %v1295
    %2471 = vmatprep.subr.mxu0 %v1304
    %2472 = vmatpush1.msra.mxu0 %v1303
    %2473 = vmatprep.subr.mxu0 %v1312
    %2474 = vmatpush1.msra.mxu0 %v1311
    %2475 = vmatprep.subr.mxu0 %v1320
    %2476 = vmatpush1.msra.mxu0 %v1319
    %2477 = vmatprep.subr.mxu0 %v1328
    %2478 = vmatpush1.msra.mxu0 %v1327
    %2479 = vmatprep.subr.mxu0 %v1336
    %2480 = vmatpush1.msra.mxu0 %v1335
    %2481 = vmatprep.subr.mxu0 %v1344
    %2482 = vmatpush1.msra.mxu0 %v1343
    %2483 = vmatprep.subr.mxu0 %v1352
    %2484 = vmatpush1.msra.mxu0 %v1351
    %2485 = vmatprep.subr.mxu0 %v1360
    %2486 = vmatpush1.msra.mxu0 %v1359
    %2487 = vmatprep.subr.mxu0 %v1368
    %2488 = vmatpush1.msra.mxu0 %v1367
    %2489 = vmatprep.subr.mxu0 %v1376
    %2490 = vmatpush1.msra.mxu0 %v1375
    %2491 = vmatprep.subr.mxu0 %v1384
    %2492 = vmatpush1.msra.mxu0 %v1383
    %2493 = vmatprep.subr.mxu0 %v1392
    %2494 = vmatpush1.msra.mxu0 %v1391
    %2495 = vmatprep.subr.mxu0 %v1400
    %2496 = vmatpush1.msra.mxu0 %v1399
    %2497 = vmatprep.subr.mxu0 %v1408
    %2498 = vmatpush1.msra.mxu0 %v1407
    %2499 = vmatprep.subr.mxu0 %v1416
    %2500 = vmatpush1.msra.mxu0 %v1415
    %2501 = vmatprep.subr.mxu0 %v1424
    %2502 = vmatpush1.msra.mxu0 %v1423
    %2503 = vmatprep.subr.mxu0 %v1432
    %2504 = vmatpush1.msra.mxu0 %v1431
    %2505 = vmatprep.subr.mxu0 %v1440
    %2506 = vmatpush1.msra.mxu0 %v1439
    %2507 = vmatprep.subr.mxu0 %v1448
    %2508 = vmatpush1.msra.mxu0 %v1447
    %2509 = vmatprep.mubr.f32.mxu0 %v2372
    %2510 = vmatmul.mubr.f32.gmra.mrb[0].mxu0 %v2322
    %v2511 = vpop.f32.mrb[0].mxu0
    %v2512 = vadd.f32 0.0, %v2511
    %v2513 = vpop.f32.mrb[0].mxu0
    %v2514 = vadd.f32 0.0, %v2513
    %2515 = vdwg.mxu0
    %2516 = vmatprep.subr.mxu0 %v1202
    %2517 = vmatpush1.msra.mxu0 %v1201
    %2518 = vmatprep.subr.mxu0 %v1210
    %2519 = vmatpush1.msra.mxu0 %v1209
    %2520 = vmatprep.subr.mxu0 %v1218
    %2521 = vmatpush1.msra.mxu0 %v1217
    %2522 = vmatprep.subr.mxu0 %v1226
    %2523 = vmatpush1.msra.mxu0 %v1225
    %2524 = vmatprep.subr.mxu0 %v1234
    %2525 = vmatpush1.msra.mxu0 %v1233
    %2526 = vmatprep.subr.mxu0 %v1242
    %2527 = vmatpush1.msra.mxu0 %v1241
    %2528 = vmatprep.subr.mxu0 %v1250
    %2529 = vmatpush1.msra.mxu0 %v1249
    %2530 = vmatprep.subr.mxu0 %v1258
    %2531 = vmatpush1.msra.mxu0 %v1257
    %2532 = vmatprep.subr.mxu0 %v1266
    %2533 = vmatpush1.msra.mxu0 %v1265
    %2534 = vmatprep.subr.mxu0 %v1274
    %2535 = vmatpush1.msra.mxu0 %v1273
    %2536 = vmatprep.subr.mxu0 %v1282
    %2537 = vmatpush1.msra.mxu0 %v1281
    %2538 = vmatprep.subr.mxu0 %v1290
    %2539 = vmatpush1.msra.mxu0 %v1289
    %2540 = vmatprep.subr.mxu0 %v1298
    %2541 = vmatpush1.msra.mxu0 %v1297
    %2542 = vmatprep.subr.mxu0 %v1306
    %2543 = vmatpush1.msra.mxu0 %v1305
    %2544 = vmatprep.subr.mxu0 %v1314
    %2545 = vmatpush1.msra.mxu0 %v1313
    %2546 = vmatprep.subr.mxu0 %v1322
    %2547 = vmatpush1.msra.mxu0 %v1321
    %2548 = vmatprep.subr.mxu0 %v1330
    %2549 = vmatpush1.msra.mxu0 %v1329
    %2550 = vmatprep.subr.mxu0 %v1338
    %2551 = vmatpush1.msra.mxu0 %v1337
    %2552 = vmatprep.subr.mxu0 %v1346
    %2553 = vmatpush1.msra.mxu0 %v1345
    %2554 = vmatprep.subr.mxu0 %v1354
    %2555 = vmatpush1.msra.mxu0 %v1353
    %2556 = vmatprep.subr.mxu0 %v1362
    %2557 = vmatpush1.msra.mxu0 %v1361
    %2558 = vmatprep.subr.mxu0 %v1370
    %2559 = vmatpush1.msra.mxu0 %v1369
    %2560 = vmatprep.subr.mxu0 %v1378
    %2561 = vmatpush1.msra.mxu0 %v1377
    %2562 = vmatprep.subr.mxu0 %v1386
    %2563 = vmatpush1.msra.mxu0 %v1385
    %2564 = vmatprep.subr.mxu0 %v1394
    %2565 = vmatpush1.msra.mxu0 %v1393
    %2566 = vmatprep.subr.mxu0 %v1402
    %2567 = vmatpush1.msra.mxu0 %v1401
    %2568 = vmatprep.subr.mxu0 %v1410
    %2569 = vmatpush1.msra.mxu0 %v1409
    %2570 = vmatprep.subr.mxu0 %v1418
    %2571 = vmatpush1.msra.mxu0 %v1417
    %2572 = vmatprep.subr.mxu0 %v1426
    %2573 = vmatpush1.msra.mxu0 %v1425
    %2574 = vmatprep.subr.mxu0 %v1434
    %2575 = vmatpush1.msra.mxu0 %v1433
    %2576 = vmatprep.subr.mxu0 %v1442
    %2577 = vmatpush1.msra.mxu0 %v1441
    %2578 = vmatprep.subr.mxu0 %v1450
    %2579 = vmatpush1.msra.mxu0 %v1449
    %2580 = vmatprep.mubr.f32.mxu0 %v2372
    %2581 = vmatmul.mubr.f32.gmra.mrb[0].mxu0 %v2322
    %v2582 = vpop.f32.mrb[0].mxu0
    %v2583 = vadd.f32 0.0, %v2582
    %v2584 = vpop.f32.mrb[0].mxu0
    %v2585 = vadd.f32 0.0, %v2584
    %2586 = vdwg.mxu0
    %2587 = vmatprep.subr.mxu0 %v1204
    %2588 = vmatpush1.msra.mxu0 %v1203
    %2589 = vmatprep.subr.mxu0 %v1212
    %2590 = vmatpush1.msra.mxu0 %v1211
    %2591 = vmatprep.subr.mxu0 %v1220
    %2592 = vmatpush1.msra.mxu0 %v1219
    %2593 = vmatprep.subr.mxu0 %v1228
    %2594 = vmatpush1.msra.mxu0 %v1227
    %2595 = vmatprep.subr.mxu0 %v1236
    %2596 = vmatpush1.msra.mxu0 %v1235
    %2597 = vmatprep.subr.mxu0 %v1244
    %2598 = vmatpush1.msra.mxu0 %v1243
    %2599 = vmatprep.subr.mxu0 %v1252
    %2600 = vmatpush1.msra.mxu0 %v1251
    %2601 = vmatprep.subr.mxu0 %v1260
    %2602 = vmatpush1.msra.mxu0 %v1259
    %2603 = vmatprep.subr.mxu0 %v1268
    %2604 = vmatpush1.msra.mxu0 %v1267
    %2605 = vmatprep.subr.mxu0 %v1276
    %2606 = vmatpush1.msra.mxu0 %v1275
    %2607 = vmatprep.subr.mxu0 %v1284
    %2608 = vmatpush1.msra.mxu0 %v1283
    %2609 = vmatprep.subr.mxu0 %v1292
    %2610 = vmatpush1.msra.mxu0 %v1291
    %2611 = vmatprep.subr.mxu0 %v1300
    %2612 = vmatpush1.msra.mxu0 %v1299
    %2613 = vmatprep.subr.mxu0 %v1308
    %2614 = vmatpush1.msra.mxu0 %v1307
    %2615 = vmatprep.subr.mxu0 %v1316
    %2616 = vmatpush1.msra.mxu0 %v1315
    %2617 = vmatprep.subr.mxu0 %v1324
    %2618 = vmatpush1.msra.mxu0 %v1323
    %2619 = vmatprep.subr.mxu0 %v1332
    %2620 = vmatpush1.msra.mxu0 %v1331
    %2621 = vmatprep.subr.mxu0 %v1340
    %2622 = vmatpush1.msra.mxu0 %v1339
    %2623 = vmatprep.subr.mxu0 %v1348
    %2624 = vmatpush1.msra.mxu0 %v1347
    %2625 = vmatprep.subr.mxu0 %v1356
    %2626 = vmatpush1.msra.mxu0 %v1355
    %2627 = vmatprep.subr.mxu0 %v1364
    %2628 = vmatpush1.msra.mxu0 %v1363
    %2629 = vmatprep.subr.mxu0 %v1372
    %2630 = vmatpush1.msra.mxu0 %v1371
    %2631 = vmatprep.subr.mxu0 %v1380
    %2632 = vmatpush1.msra.mxu0 %v1379
    %2633 = vmatprep.subr.mxu0 %v1388
    %2634 = vmatpush1.msra.mxu0 %v1387
    %2635 = vmatprep.subr.mxu0 %v1396
    %2636 = vmatpush1.msra.mxu0 %v1395
    %2637 = vmatprep.subr.mxu0 %v1404
    %2638 = vmatpush1.msra.mxu0 %v1403
    %2639 = vmatprep.subr.mxu0 %v1412
    %2640 = vmatpush1.msra.mxu0 %v1411
    %2641 = vmatprep.subr.mxu0 %v1420
    %2642 = vmatpush1.msra.mxu0 %v1419
    %2643 = vmatprep.subr.mxu0 %v1428
    %2644 = vmatpush1.msra.mxu0 %v1427
    %2645 = vmatprep.subr.mxu0 %v1436
    %2646 = vmatpush1.msra.mxu0 %v1435
    %2647 = vmatprep.subr.mxu0 %v1444
    %2648 = vmatpush1.msra.mxu0 %v1443
    %2649 = vmatprep.subr.mxu0 %v1452
    %2650 = vmatpush1.msra.mxu0 %v1451
    %2651 = vmatprep.mubr.f32.mxu0 %v2372
    %2652 = vmatmul.mubr.f32.gmra.mrb[0].mxu0 %v2322
    %v2653 = vpop.f32.mrb[0].mxu0
    %v2654 = vadd.f32 0.0, %v2653
    %v2655 = vpop.f32.mrb[0].mxu0
    %v2656 = vadd.f32 0.0, %v2655
    %2657 = vdwg.mxu0
    %v2658 = vrot.slane %v909, 3
    %v2659 = vrot.slane %v911, 3
    %v2660 = vrot.slane %v1193, 3
    %v2661 = vrot.slane %v1195, 3
    %v2666 = vadd.f32 %v2441, %v2658
    %v2667 = vadd.f32 %v2443, %v2659
    %v2668 = vadd.f32 %v2512, %v2660
    %v2669 = vadd.f32 %v2514, %v2661
    %v2670 = vxor.u32 %v2666, 2147483648
    %v2671 = vmul.f32 %v2670, 1.442695
    %v2672 = vpow.pop %v2671
    %v2673 = vadd.f32 %v2672, 1.0
    %v2674 = vrcp.pop %v2673
    %v2675 = vmul.f32 1.0, %v2674
    %v2676 = vxor.u32 %v2667, 2147483648
    %v2677 = vmul.f32 %v2676, 1.442695
    %v2678 = vpow.pop %v2677
    %v2679 = vadd.f32 %v2678, 1.0
    %v2680 = vrcp.pop %v2679
    %v2681 = vmul.f32 1.0, %v2680
    %v2682 = vtanh.pop %v2668
    %v2683 = vxor.u32 %v2669, 2147483648
    %v2684 = vmul.f32 %v2683, 1.442695
    %v2685 = vpow.pop %v2684
    %v2686 = vadd.f32 %v2685, 1.0
    %v2687 = vrcp.pop %v2686
    %v2688 = vmul.f32 1.0, %v2687
    %v2689 = vmul.f32 %v2681, %v2320
    %v2690 = vmul.f32 %v2675, %v2682
    %v2691 = vadd.f32 %v2689, %v2690
    %v2692 = vtanh.pop %v2691
    %v2693 = vmul.f32 %v2688, %v2692
    %v2694 = vld [vmem:[%s1951] ss:$2 sm:$0xf]
    %v2696 = vlaneseq
    %v2697 = vshrl.u32 %v2696, 7
    %v2698 = vsub.s32 0, %v2697
    %v2699 = vrot.slane %v2694, %v2698
    %v2700 = vlaneseq
    %v2701 = vshrl.u32 %v2700, 7
    %v2702 = vsub.s32 1, %v2701
    %v2703 = vrot.slane %v2694, %v2702
    %v2704 = vlaneseq
    %v2705 = vshrl.u32 %v2704, 7
    %v2706 = vsub.s32 2, %v2705
    %v2707 = vrot.slane %v2694, %v2706
    %v2708 = vlaneseq
    %v2709 = vshrl.u32 %v2708, 7
    %v2710 = vsub.s32 3, %v2709
    %v2711 = vrot.slane %v2694, %v2710
    %v2716 = vadd.f32 %v2583, %v2699
    %v2717 = vadd.f32 %v2585, %v2703
    %v2718 = vadd.f32 %v2654, %v2707
    %v2719 = vadd.f32 %v2656, %v2711
    %v2720 = vxor.u32 %v2716, 2147483648
    %v2721 = vmul.f32 %v2720, 1.442695
    %v2722 = vpow.pop %v2721
    %v2723 = vadd.f32 %v2722, 1.0
    %v2724 = vrcp.pop %v2723
    %v2725 = vmul.f32 1.0, %v2724
    %v2726 = vxor.u32 %v2717, 2147483648
    %v2727 = vmul.f32 %v2726, 1.442695
    %v2728 = vpow.pop %v2727
    %v2729 = vadd.f32 %v2728, 1.0
    %v2730 = vrcp.pop %v2729
    %v2731 = vmul.f32 1.0, %v2730
    %v2732 = vtanh.pop %v2718
    %v2733 = vxor.u32 %v2719, 2147483648
    %v2734 = vmul.f32 %v2733, 1.442695
    %v2735 = vpow.pop %v2734
    %v2736 = vadd.f32 %v2735, 1.0
    %v2737 = vrcp.pop %v2736
    %v2738 = vmul.f32 1.0, %v2737
    %v2739 = vmul.f32 %v2731, %v2370
    %v2740 = vmul.f32 %v2725, %v2732
    %v2741 = vadd.f32 %v2739, %v2740
    %v2742 = vtanh.pop %v2741
    %v2743 = vmul.f32 %v2738, %v2742
    %2744 = vst [vmem:[#allocation11 + $0x2] sm:$0x1] %v2743
    %2745 = vmatprep.subr.mxu0 %v1198
    %2746 = vmatpush1.msra.mxu0 %v1197
    %2747 = vmatprep.subr.mxu0 %v1206
    %2748 = vmatpush1.msra.mxu0 %v1205
    %2749 = vmatprep.subr.mxu0 %v1214
    %2750 = vmatpush1.msra.mxu0 %v1213
    %2751 = vmatprep.subr.mxu0 %v1222
    %2752 = vmatpush1.msra.mxu0 %v1221
    %2753 = vmatprep.subr.mxu0 %v1230
    %2754 = vmatpush1.msra.mxu0 %v1229
    %2755 = vmatprep.subr.mxu0 %v1238
    %2756 = vmatpush1.msra.mxu0 %v1237
    %2757 = vmatprep.subr.mxu0 %v1246
    %2758 = vmatpush1.msra.mxu0 %v1245
    %2759 = vmatprep.subr.mxu0 %v1254
    %2760 = vmatpush1.msra.mxu0 %v1253
    %2761 = vmatprep.subr.mxu0 %v1262
    %2762 = vmatpush1.msra.mxu0 %v1261
    %2763 = vmatprep.subr.mxu0 %v1270
    %2764 = vmatpush1.msra.mxu0 %v1269
    %2765 = vmatprep.subr.mxu0 %v1278
    %2766 = vmatpush1.msra.mxu0 %v1277
    %2767 = vmatprep.subr.mxu0 %v1286
    %2768 = vmatpush1.msra.mxu0 %v1285
    %2769 = vmatprep.subr.mxu0 %v1294
    %2770 = vmatpush1.msra.mxu0 %v1293
    %2771 = vmatprep.subr.mxu0 %v1302
    %2772 = vmatpush1.msra.mxu0 %v1301
    %2773 = vmatprep.subr.mxu0 %v1310
    %2774 = vmatpush1.msra.mxu0 %v1309
    %2775 = vmatprep.subr.mxu0 %v1318
    %2776 = vmatpush1.msra.mxu0 %v1317
    %2777 = vmatprep.subr.mxu0 %v1326
    %2778 = vmatpush1.msra.mxu0 %v1325
    %2779 = vmatprep.subr.mxu0 %v1334
    %2780 = vmatpush1.msra.mxu0 %v1333
    %2781 = vmatprep.subr.mxu0 %v1342
    %2782 = vmatpush1.msra.mxu0 %v1341
    %2783 = vmatprep.subr.mxu0 %v1350
    %2784 = vmatpush1.msra.mxu0 %v1349
    %2785 = vmatprep.subr.mxu0 %v1358
    %2786 = vmatpush1.msra.mxu0 %v1357
    %2787 = vmatprep.subr.mxu0 %v1366
    %2788 = vmatpush1.msra.mxu0 %v1365
    %2789 = vmatprep.subr.mxu0 %v1374
    %2790 = vmatpush1.msra.mxu0 %v1373
    %2791 = vmatprep.subr.mxu0 %v1382
    %2792 = vmatpush1.msra.mxu0 %v1381
    %2793 = vmatprep.subr.mxu0 %v1390
    %2794 = vmatpush1.msra.mxu0 %v1389
    %2795 = vmatprep.subr.mxu0 %v1398
    %2796 = vmatpush1.msra.mxu0 %v1397
    %2797 = vmatprep.subr.mxu0 %v1406
    %2798 = vmatpush1.msra.mxu0 %v1405
    %2799 = vmatprep.subr.mxu0 %v1414
    %2800 = vmatpush1.msra.mxu0 %v1413
    %2801 = vmatprep.subr.mxu0 %v1422
    %2802 = vmatpush1.msra.mxu0 %v1421
    %2803 = vmatprep.subr.mxu0 %v1430
    %2804 = vmatpush1.msra.mxu0 %v1429
    %2805 = vmatprep.subr.mxu0 %v1438
    %2806 = vmatpush1.msra.mxu0 %v1437
    %2807 = vmatprep.subr.mxu0 %v1446
    %2808 = vmatpush1.msra.mxu0 %v1445
    %2809 = vmatprep.mubr.f32.mxu0 %v2743
    %2810 = vmatmul.mubr.f32.gmra.mrb[0].mxu0 %v2693
    %v2811 = vpop.f32.mrb[0].mxu0
    %v2812 = vadd.f32 0.0, %v2811
    %v2813 = vpop.f32.mrb[0].mxu0
    %v2814 = vadd.f32 0.0, %v2813
    %2815 = vdwg.mxu0
    %2816 = vmatprep.subr.mxu0 %v1200
    %2817 = vmatpush1.msra.mxu0 %v1199
    %2818 = vmatprep.subr.mxu0 %v1208
    %2819 = vmatpush1.msra.mxu0 %v1207
    %2820 = vmatprep.subr.mxu0 %v1216
    %2821 = vmatpush1.msra.mxu0 %v1215
    %2822 = vmatprep.subr.mxu0 %v1224
    %2823 = vmatpush1.msra.mxu0 %v1223
    %2824 = vmatprep.subr.mxu0 %v1232
    %2825 = vmatpush1.msra.mxu0 %v1231
    %2826 = vmatprep.subr.mxu0 %v1240
    %2827 = vmatpush1.msra.mxu0 %v1239
    %2828 = vmatprep.subr.mxu0 %v1248
    %2829 = vmatpush1.msra.mxu0 %v1247
    %2830 = vmatprep.subr.mxu0 %v1256
    %2831 = vmatpush1.msra.mxu0 %v1255
    %2832 = vmatprep.subr.mxu0 %v1264
    %2833 = vmatpush1.msra.mxu0 %v1263
    %2834 = vmatprep.subr.mxu0 %v1272
    %2835 = vmatpush1.msra.mxu0 %v1271
    %2836 = vmatprep.subr.mxu0 %v1280
    %2837 = vmatpush1.msra.mxu0 %v1279
    %2838 = vmatprep.subr.mxu0 %v1288
    %2839 = vmatpush1.msra.mxu0 %v1287
    %2840 = vmatprep.subr.mxu0 %v1296
    %2841 = vmatpush1.msra.mxu0 %v1295
    %2842 = vmatprep.subr.mxu0 %v1304
    %2843 = vmatpush1.msra.mxu0 %v1303
    %2844 = vmatprep.subr.mxu0 %v1312
    %2845 = vmatpush1.msra.mxu0 %v1311
    %2846 = vmatprep.subr.mxu0 %v1320
    %2847 = vmatpush1.msra.mxu0 %v1319
    %2848 = vmatprep.subr.mxu0 %v1328
    %2849 = vmatpush1.msra.mxu0 %v1327
    %2850 = vmatprep.subr.mxu0 %v1336
    %2851 = vmatpush1.msra.mxu0 %v1335
    %2852 = vmatprep.subr.mxu0 %v1344
    %2853 = vmatpush1.msra.mxu0 %v1343
    %2854 = vmatprep.subr.mxu0 %v1352
    %2855 = vmatpush1.msra.mxu0 %v1351
    %2856 = vmatprep.subr.mxu0 %v1360
    %2857 = vmatpush1.msra.mxu0 %v1359
    %2858 = vmatprep.subr.mxu0 %v1368
    %2859 = vmatpush1.msra.mxu0 %v1367
    %2860 = vmatprep.subr.mxu0 %v1376
    %2861 = vmatpush1.msra.mxu0 %v1375
    %2862 = vmatprep.subr.mxu0 %v1384
    %2863 = vmatpush1.msra.mxu0 %v1383
    %2864 = vmatprep.subr.mxu0 %v1392
    %2865 = vmatpush1.msra.mxu0 %v1391
    %2866 = vmatprep.subr.mxu0 %v1400
    %2867 = vmatpush1.msra.mxu0 %v1399
    %2868 = vmatprep.subr.mxu0 %v1408
    %2869 = vmatpush1.msra.mxu0 %v1407
    %2870 = vmatprep.subr.mxu0 %v1416
    %2871 = vmatpush1.msra.mxu0 %v1415
    %2872 = vmatprep.subr.mxu0 %v1424
    %2873 = vmatpush1.msra.mxu0 %v1423
    %2874 = vmatprep.subr.mxu0 %v1432
    %2875 = vmatpush1.msra.mxu0 %v1431
    %2876 = vmatprep.subr.mxu0 %v1440
    %2877 = vmatpush1.msra.mxu0 %v1439
    %2878 = vmatprep.subr.mxu0 %v1448
    %2879 = vmatpush1.msra.mxu0 %v1447
    %2880 = vmatprep.mubr.f32.mxu0 %v2743
    %2881 = vmatmul.mubr.f32.gmra.mrb[0].mxu0 %v2693
    %v2882 = vpop.f32.mrb[0].mxu0
    %v2883 = vadd.f32 0.0, %v2882
    %v2884 = vpop.f32.mrb[0].mxu0
    %v2885 = vadd.f32 0.0, %v2884
    %2886 = vdwg.mxu0
    %2887 = vmatprep.subr.mxu0 %v1202
    %2888 = vmatpush1.msra.mxu0 %v1201
    %2889 = vmatprep.subr.mxu0 %v1210
    %2890 = vmatpush1.msra.mxu0 %v1209
    %2891 = vmatprep.subr.mxu0 %v1218
    %2892 = vmatpush1.msra.mxu0 %v1217
    %2893 = vmatprep.subr.mxu0 %v1226
    %2894 = vmatpush1.msra.mxu0 %v1225
    %2895 = vmatprep.subr.mxu0 %v1234
    %2896 = vmatpush1.msra.mxu0 %v1233
    %2897 = vmatprep.subr.mxu0 %v1242
    %2898 = vmatpush1.msra.mxu0 %v1241
    %2899 = vmatprep.subr.mxu0 %v1250
    %2900 = vmatpush1.msra.mxu0 %v1249
    %2901 = vmatprep.subr.mxu0 %v1258
    %2902 = vmatpush1.msra.mxu0 %v1257
    %2903 = vmatprep.subr.mxu0 %v1266
    %2904 = vmatpush1.msra.mxu0 %v1265
    %2905 = vmatprep.subr.mxu0 %v1274
    %2906 = vmatpush1.msra.mxu0 %v1273
    %2907 = vmatprep.subr.mxu0 %v1282
    %2908 = vmatpush1.msra.mxu0 %v1281
    %2909 = vmatprep.subr.mxu0 %v1290
    %2910 = vmatpush1.msra.mxu0 %v1289
    %2911 = vmatprep.subr.mxu0 %v1298
    %2912 = vmatpush1.msra.mxu0 %v1297
    %2913 = vmatprep.subr.mxu0 %v1306
    %2914 = vmatpush1.msra.mxu0 %v1305
    %2915 = vmatprep.subr.mxu0 %v1314
    %2916 = vmatpush1.msra.mxu0 %v1313
    %2917 = vmatprep.subr.mxu0 %v1322
    %2918 = vmatpush1.msra.mxu0 %v1321
    %2919 = vmatprep.subr.mxu0 %v1330
    %2920 = vmatpush1.msra.mxu0 %v1329
    %2921 = vmatprep.subr.mxu0 %v1338
    %2922 = vmatpush1.msra.mxu0 %v1337
    %2923 = vmatprep.subr.mxu0 %v1346
    %2924 = vmatpush1.msra.mxu0 %v1345
    %2925 = vmatprep.subr.mxu0 %v1354
    %2926 = vmatpush1.msra.mxu0 %v1353
    %2927 = vmatprep.subr.mxu0 %v1362
    %2928 = vmatpush1.msra.mxu0 %v1361
    %2929 = vmatprep.subr.mxu0 %v1370
    %2930 = vmatpush1.msra.mxu0 %v1369
    %2931 = vmatprep.subr.mxu0 %v1378
    %2932 = vmatpush1.msra.mxu0 %v1377
    %2933 = vmatprep.subr.mxu0 %v1386
    %2934 = vmatpush1.msra.mxu0 %v1385
    %2935 = vmatprep.subr.mxu0 %v1394
    %2936 = vmatpush1.msra.mxu0 %v1393
    %2937 = vmatprep.subr.mxu0 %v1402
    %2938 = vmatpush1.msra.mxu0 %v1401
    %2939 = vmatprep.subr.mxu0 %v1410
    %2940 = vmatpush1.msra.mxu0 %v1409
    %2941 = vmatprep.subr.mxu0 %v1418
    %2942 = vmatpush1.msra.mxu0 %v1417
    %2943 = vmatprep.subr.mxu0 %v1426
    %2944 = vmatpush1.msra.mxu0 %v1425
    %2945 = vmatprep.subr.mxu0 %v1434
    %2946 = vmatpush1.msra.mxu0 %v1433
    %2947 = vmatprep.subr.mxu0 %v1442
    %2948 = vmatpush1.msra.mxu0 %v1441
    %2949 = vmatprep.subr.mxu0 %v1450
    %2950 = vmatpush1.msra.mxu0 %v1449
    %2951 = vmatprep.mubr.f32.mxu0 %v2743
    %2952 = vmatmul.mubr.f32.gmra.mrb[0].mxu0 %v2693
    %v2953 = vpop.f32.mrb[0].mxu0
    %v2954 = vadd.f32 0.0, %v2953
    %v2955 = vpop.f32.mrb[0].mxu0
    %v2956 = vadd.f32 0.0, %v2955
    %2957 = vdwg.mxu0
    %2958 = vmatprep.subr.mxu0 %v1204
    %2959 = vmatpush1.msra.mxu0 %v1203
    %2960 = vmatprep.subr.mxu0 %v1212
    %2961 = vmatpush1.msra.mxu0 %v1211
    %2962 = vmatprep.subr.mxu0 %v1220
    %2963 = vmatpush1.msra.mxu0 %v1219
    %2964 = vmatprep.subr.mxu0 %v1228
    %2965 = vmatpush1.msra.mxu0 %v1227
    %2966 = vmatprep.subr.mxu0 %v1236
    %2967 = vmatpush1.msra.mxu0 %v1235
    %2968 = vmatprep.subr.mxu0 %v1244
    %2969 = vmatpush1.msra.mxu0 %v1243
    %2970 = vmatprep.subr.mxu0 %v1252
    %2971 = vmatpush1.msra.mxu0 %v1251
    %2972 = vmatprep.subr.mxu0 %v1260
    %2973 = vmatpush1.msra.mxu0 %v1259
    %2974 = vmatprep.subr.mxu0 %v1268
    %2975 = vmatpush1.msra.mxu0 %v1267
    %2976 = vmatprep.subr.mxu0 %v1276
    %2977 = vmatpush1.msra.mxu0 %v1275
    %2978 = vmatprep.subr.mxu0 %v1284
    %2979 = vmatpush1.msra.mxu0 %v1283
    %2980 = vmatprep.subr.mxu0 %v1292
    %2981 = vmatpush1.msra.mxu0 %v1291
    %2982 = vmatprep.subr.mxu0 %v1300
    %2983 = vmatpush1.msra.mxu0 %v1299
    %2984 = vmatprep.subr.mxu0 %v1308
    %2985 = vmatpush1.msra.mxu0 %v1307
    %2986 = vmatprep.subr.mxu0 %v1316
    %2987 = vmatpush1.msra.mxu0 %v1315
    %2988 = vmatprep.subr.mxu0 %v1324
    %2989 = vmatpush1.msra.mxu0 %v1323
    %2990 = vmatprep.subr.mxu0 %v1332
    %2991 = vmatpush1.msra.mxu0 %v1331
    %2992 = vmatprep.subr.mxu0 %v1340
    %2993 = vmatpush1.msra.mxu0 %v1339
    %2994 = vmatprep.subr.mxu0 %v1348
    %2995 = vmatpush1.msra.mxu0 %v1347
    %2996 = vmatprep.subr.mxu0 %v1356
    %2997 = vmatpush1.msra.mxu0 %v1355
    %2998 = vmatprep.subr.mxu0 %v1364
    %2999 = vmatpush1.msra.mxu0 %v1363
    %3000 = vmatprep.subr.mxu0 %v1372
    %3001 = vmatpush1.msra.mxu0 %v1371
    %3002 = vmatprep.subr.mxu0 %v1380
    %3003 = vmatpush1.msra.mxu0 %v1379
    %3004 = vmatprep.subr.mxu0 %v1388
    %3005 = vmatpush1.msra.mxu0 %v1387
    %3006 = vmatprep.subr.mxu0 %v1396
    %3007 = vmatpush1.msra.mxu0 %v1395
    %3008 = vmatprep.subr.mxu0 %v1404
    %3009 = vmatpush1.msra.mxu0 %v1403
    %3010 = vmatprep.subr.mxu0 %v1412
    %3011 = vmatpush1.msra.mxu0 %v1411
    %3012 = vmatprep.subr.mxu0 %v1420
    %3013 = vmatpush1.msra.mxu0 %v1419
    %3014 = vmatprep.subr.mxu0 %v1428
    %3015 = vmatpush1.msra.mxu0 %v1427
    %3016 = vmatprep.subr.mxu0 %v1436
    %3017 = vmatpush1.msra.mxu0 %v1435
    %3018 = vmatprep.subr.mxu0 %v1444
    %3019 = vmatpush1.msra.mxu0 %v1443
    %3020 = vmatprep.subr.mxu0 %v1452
    %3021 = vmatpush1.msra.mxu0 %v1451
    %3022 = vmatprep.mubr.f32.mxu0 %v2743
    %3023 = vmatmul.mubr.f32.gmra.mrb[0].mxu0 %v2693
    %v3024 = vpop.f32.mrb[0].mxu0
    %v3025 = vadd.f32 0.0, %v3024
    %v3026 = vpop.f32.mrb[0].mxu0
    %v3027 = vadd.f32 0.0, %v3026
    %3028 = vdwg.mxu0
    %v3029 = vrot.slane %v909, 4
    %v3030 = vrot.slane %v911, 4
    %v3031 = vrot.slane %v1193, 4
    %v3032 = vrot.slane %v1195, 4
    %v3037 = vadd.f32 %v2812, %v3029
    %v3038 = vadd.f32 %v2814, %v3030
    %v3039 = vadd.f32 %v2883, %v3031
    %v3040 = vadd.f32 %v2885, %v3032
    %v3041 = vxor.u32 %v3037, 2147483648
    %v3042 = vmul.f32 %v3041, 1.442695
    %v3043 = vpow.pop %v3042
    %v3044 = vadd.f32 %v3043, 1.0
    %v3045 = vrcp.pop %v3044
    %v3046 = vmul.f32 1.0, %v3045
    %v3047 = vxor.u32 %v3038, 2147483648
    %v3048 = vmul.f32 %v3047, 1.442695
    %v3049 = vpow.pop %v3048
    %v3050 = vadd.f32 %v3049, 1.0
    %v3051 = vrcp.pop %v3050
    %v3052 = vmul.f32 1.0, %v3051
    %v3053 = vtanh.pop %v3039
    %v3054 = vxor.u32 %v3040, 2147483648
    %v3055 = vmul.f32 %v3054, 1.442695
    %v3056 = vpow.pop %v3055
    %v3057 = vadd.f32 %v3056, 1.0
    %v3058 = vrcp.pop %v3057
    %v3059 = vmul.f32 1.0, %v3058
    %v3060 = vmul.f32 %v3052, %v2691
    %v3061 = vmul.f32 %v3046, %v3053
    %v3062 = vadd.f32 %v3060, %v3061
    %v3063 = vtanh.pop %v3062
    %v3064 = vmul.f32 %v3059, %v3063
    %v3065 = vld [vmem:[%s1951] ss:$2 sm:$0xf]
    %v3067 = vlaneseq
    %v3068 = vshrl.u32 %v3067, 7
    %v3069 = vsub.s32 0, %v3068
    %v3070 = vrot.slane %v3065, %v3069
    %v3071 = vlaneseq
    %v3072 = vshrl.u32 %v3071, 7
    %v3073 = vsub.s32 1, %v3072
    %v3074 = vrot.slane %v3065, %v3073
    %v3075 = vlaneseq
    %v3076 = vshrl.u32 %v3075, 7
    %v3077 = vsub.s32 2, %v3076
    %v3078 = vrot.slane %v3065, %v3077
    %v3079 = vlaneseq
    %v3080 = vshrl.u32 %v3079, 7
    %v3081 = vsub.s32 3, %v3080
    %v3082 = vrot.slane %v3065, %v3081
    %v3087 = vadd.f32 %v2954, %v3070
    %v3088 = vadd.f32 %v2956, %v3074
    %v3089 = vadd.f32 %v3025, %v3078
    %v3090 = vadd.f32 %v3027, %v3082
    %v3091 = vxor.u32 %v3087, 2147483648
    %v3092 = vmul.f32 %v3091, 1.442695
    %v3093 = vpow.pop %v3092
    %v3094 = vadd.f32 %v3093, 1.0
    %v3095 = vrcp.pop %v3094
    %v3096 = vmul.f32 1.0, %v3095
    %v3097 = vxor.u32 %v3088, 2147483648
    %v3098 = vmul.f32 %v3097, 1.442695
    %v3099 = vpow.pop %v3098
    %v3100 = vadd.f32 %v3099, 1.0
    %v3101 = vrcp.pop %v3100
    %v3102 = vmul.f32 1.0, %v3101
    %v3103 = vtanh.pop %v3089
    %v3104 = vxor.u32 %v3090, 2147483648
    %v3105 = vmul.f32 %v3104, 1.442695
    %v3106 = vpow.pop %v3105
    %v3107 = vadd.f32 %v3106, 1.0
    %v3108 = vrcp.pop %v3107
    %v3109 = vmul.f32 1.0, %v3108
    %v3110 = vmul.f32 %v3102, %v2741
    %v3111 = vmul.f32 %v3096, %v3103
    %v3112 = vadd.f32 %v3110, %v3111
    %v3113 = vtanh.pop %v3112
    %v3114 = vmul.f32 %v3109, %v3113
    %3115 = vst [vmem:[#allocation11 + $0x3] sm:$0x1] %v3114
    %3116 = vmatprep.subr.mxu0 %v1198
    %3117 = vmatpush1.msra.mxu0 %v1197
    %3118 = vmatprep.subr.mxu0 %v1206
    %3119 = vmatpush1.msra.mxu0 %v1205
    %3120 = vmatprep.subr.mxu0 %v1214
    %3121 = vmatpush1.msra.mxu0 %v1213
    %3122 = vmatprep.subr.mxu0 %v1222
    %3123 = vmatpush1.msra.mxu0 %v1221
    %3124 = vmatprep.subr.mxu0 %v1230
    %3125 = vmatpush1.msra.mxu0 %v1229
    %3126 = vmatprep.subr.mxu0 %v1238
    %3127 = vmatpush1.msra.mxu0 %v1237
    %3128 = vmatprep.subr.mxu0 %v1246
    %3129 = vmatpush1.msra.mxu0 %v1245
    %3130 = vmatprep.subr.mxu0 %v1254
    %3131 = vmatpush1.msra.mxu0 %v1253
    %3132 = vmatprep.subr.mxu0 %v1262
    %3133 = vmatpush1.msra.mxu0 %v1261
    %3134 = vmatprep.subr.mxu0 %v1270
    %3135 = vmatpush1.msra.mxu0 %v1269
    %3136 = vmatprep.subr.mxu0 %v1278
    %3137 = vmatpush1.msra.mxu0 %v1277
    %3138 = vmatprep.subr.mxu0 %v1286
    %3139 = vmatpush1.msra.mxu0 %v1285
    %3140 = vmatprep.subr.mxu0 %v1294
    %3141 = vmatpush1.msra.mxu0 %v1293
    %3142 = vmatprep.subr.mxu0 %v1302
    %3143 = vmatpush1.msra.mxu0 %v1301
    %3144 = vmatprep.subr.mxu0 %v1310
    %3145 = vmatpush1.msra.mxu0 %v1309
    %3146 = vmatprep.subr.mxu0 %v1318
    %3147 = vmatpush1.msra.mxu0 %v1317
    %3148 = vmatprep.subr.mxu0 %v1326
    %3149 = vmatpush1.msra.mxu0 %v1325
    %3150 = vmatprep.subr.mxu0 %v1334
    %3151 = vmatpush1.msra.mxu0 %v1333
    %3152 = vmatprep.subr.mxu0 %v1342
    %3153 = vmatpush1.msra.mxu0 %v1341
    %3154 = vmatprep.subr.mxu0 %v1350
    %3155 = vmatpush1.msra.mxu0 %v1349
    %3156 = vmatprep.subr.mxu0 %v1358
    %3157 = vmatpush1.msra.mxu0 %v1357
    %3158 = vmatprep.subr.mxu0 %v1366
    %3159 = vmatpush1.msra.mxu0 %v1365
    %3160 = vmatprep.subr.mxu0 %v1374
    %3161 = vmatpush1.msra.mxu0 %v1373
    %3162 = vmatprep.subr.mxu0 %v1382
    %3163 = vmatpush1.msra.mxu0 %v1381
    %3164 = vmatprep.subr.mxu0 %v1390
    %3165 = vmatpush1.msra.mxu0 %v1389
    %3166 = vmatprep.subr.mxu0 %v1398
    %3167 = vmatpush1.msra.mxu0 %v1397
    %3168 = vmatprep.subr.mxu0 %v1406
    %3169 = vmatpush1.msra.mxu0 %v1405
    %3170 = vmatprep.subr.mxu0 %v1414
    %3171 = vmatpush1.msra.mxu0 %v1413
    %3172 = vmatprep.subr.mxu0 %v1422
    %3173 = vmatpush1.msra.mxu0 %v1421
    %3174 = vmatprep.subr.mxu0 %v1430
    %3175 = vmatpush1.msra.mxu0 %v1429
    %3176 = vmatprep.subr.mxu0 %v1438
    %3177 = vmatpush1.msra.mxu0 %v1437
    %3178 = vmatprep.subr.mxu0 %v1446
    %3179 = vmatpush1.msra.mxu0 %v1445
    %3180 = vmatprep.mubr.f32.mxu0 %v3114
    %3181 = vmatmul.mubr.f32.gmra.mrb[0].mxu0 %v3064
    %v3182 = vpop.f32.mrb[0].mxu0
    %v3183 = vadd.f32 0.0, %v3182
    %v3184 = vpop.f32.mrb[0].mxu0
    %v3185 = vadd.f32 0.0, %v3184
    %3186 = vdwg.mxu0
    %3187 = vmatprep.subr.mxu0 %v1200
    %3188 = vmatpush1.msra.mxu0 %v1199
    %3189 = vmatprep.subr.mxu0 %v1208
    %3190 = vmatpush1.msra.mxu0 %v1207
    %3191 = vmatprep.subr.mxu0 %v1216
    %3192 = vmatpush1.msra.mxu0 %v1215
    %3193 = vmatprep.subr.mxu0 %v1224
    %3194 = vmatpush1.msra.mxu0 %v1223
    %3195 = vmatprep.subr.mxu0 %v1232
    %3196 = vmatpush1.msra.mxu0 %v1231
    %3197 = vmatprep.subr.mxu0 %v1240
    %3198 = vmatpush1.msra.mxu0 %v1239
    %3199 = vmatprep.subr.mxu0 %v1248
    %3200 = vmatpush1.msra.mxu0 %v1247
    %3201 = vmatprep.subr.mxu0 %v1256
    %3202 = vmatpush1.msra.mxu0 %v1255
    %3203 = vmatprep.subr.mxu0 %v1264
    %3204 = vmatpush1.msra.mxu0 %v1263
    %3205 = vmatprep.subr.mxu0 %v1272
    %3206 = vmatpush1.msra.mxu0 %v1271
    %3207 = vmatprep.subr.mxu0 %v1280
    %3208 = vmatpush1.msra.mxu0 %v1279
    %3209 = vmatprep.subr.mxu0 %v1288
    %3210 = vmatpush1.msra.mxu0 %v1287
    %3211 = vmatprep.subr.mxu0 %v1296
    %3212 = vmatpush1.msra.mxu0 %v1295
    %3213 = vmatprep.subr.mxu0 %v1304
    %3214 = vmatpush1.msra.mxu0 %v1303
    %3215 = vmatprep.subr.mxu0 %v1312
    %3216 = vmatpush1.msra.mxu0 %v1311
    %3217 = vmatprep.subr.mxu0 %v1320
    %3218 = vmatpush1.msra.mxu0 %v1319
    %3219 = vmatprep.subr.mxu0 %v1328
    %3220 = vmatpush1.msra.mxu0 %v1327
    %3221 = vmatprep.subr.mxu0 %v1336
    %3222 = vmatpush1.msra.mxu0 %v1335
    %3223 = vmatprep.subr.mxu0 %v1344
    %3224 = vmatpush1.msra.mxu0 %v1343
    %3225 = vmatprep.subr.mxu0 %v1352
    %3226 = vmatpush1.msra.mxu0 %v1351
    %3227 = vmatprep.subr.mxu0 %v1360
    %3228 = vmatpush1.msra.mxu0 %v1359
    %3229 = vmatprep.subr.mxu0 %v1368
    %3230 = vmatpush1.msra.mxu0 %v1367
    %3231 = vmatprep.subr.mxu0 %v1376
    %3232 = vmatpush1.msra.mxu0 %v1375
    %3233 = vmatprep.subr.mxu0 %v1384
    %3234 = vmatpush1.msra.mxu0 %v1383
    %3235 = vmatprep.subr.mxu0 %v1392
    %3236 = vmatpush1.msra.mxu0 %v1391
    %3237 = vmatprep.subr.mxu0 %v1400
    %3238 = vmatpush1.msra.mxu0 %v1399
    %3239 = vmatprep.subr.mxu0 %v1408
    %3240 = vmatpush1.msra.mxu0 %v1407
    %3241 = vmatprep.subr.mxu0 %v1416
    %3242 = vmatpush1.msra.mxu0 %v1415
    %3243 = vmatprep.subr.mxu0 %v1424
    %3244 = vmatpush1.msra.mxu0 %v1423
    %3245 = vmatprep.subr.mxu0 %v1432
    %3246 = vmatpush1.msra.mxu0 %v1431
    %3247 = vmatprep.subr.mxu0 %v1440
    %3248 = vmatpush1.msra.mxu0 %v1439
    %3249 = vmatprep.subr.mxu0 %v1448
    %3250 = vmatpush1.msra.mxu0 %v1447
    %3251 = vmatprep.mubr.f32.mxu0 %v3114
    %3252 = vmatmul.mubr.f32.gmra.mrb[0].mxu0 %v3064
    %v3253 = vpop.f32.mrb[0].mxu0
    %v3254 = vadd.f32 0.0, %v3253
    %v3255 = vpop.f32.mrb[0].mxu0
    %v3256 = vadd.f32 0.0, %v3255
    %3257 = vdwg.mxu0
    %3258 = vmatprep.subr.mxu0 %v1202
    %3259 = vmatpush1.msra.mxu0 %v1201
    %3260 = vmatprep.subr.mxu0 %v1210
    %3261 = vmatpush1.msra.mxu0 %v1209
    %3262 = vmatprep.subr.mxu0 %v1218
    %3263 = vmatpush1.msra.mxu0 %v1217
    %3264 = vmatprep.subr.mxu0 %v1226
    %3265 = vmatpush1.msra.mxu0 %v1225
    %3266 = vmatprep.subr.mxu0 %v1234
    %3267 = vmatpush1.msra.mxu0 %v1233
    %3268 = vmatprep.subr.mxu0 %v1242
    %3269 = vmatpush1.msra.mxu0 %v1241
    %3270 = vmatprep.subr.mxu0 %v1250
    %3271 = vmatpush1.msra.mxu0 %v1249
    %3272 = vmatprep.subr.mxu0 %v1258
    %3273 = vmatpush1.msra.mxu0 %v1257
    %3274 = vmatprep.subr.mxu0 %v1266
    %3275 = vmatpush1.msra.mxu0 %v1265
    %3276 = vmatprep.subr.mxu0 %v1274
    %3277 = vmatpush1.msra.mxu0 %v1273
    %3278 = vmatprep.subr.mxu0 %v1282
    %3279 = vmatpush1.msra.mxu0 %v1281
    %3280 = vmatprep.subr.mxu0 %v1290
    %3281 = vmatpush1.msra.mxu0 %v1289
    %3282 = vmatprep.subr.mxu0 %v1298
    %3283 = vmatpush1.msra.mxu0 %v1297
    %3284 = vmatprep.subr.mxu0 %v1306
    %3285 = vmatpush1.msra.mxu0 %v1305
    %3286 = vmatprep.subr.mxu0 %v1314
    %3287 = vmatpush1.msra.mxu0 %v1313
    %3288 = vmatprep.subr.mxu0 %v1322
    %3289 = vmatpush1.msra.mxu0 %v1321
    %3290 = vmatprep.subr.mxu0 %v1330
    %3291 = vmatpush1.msra.mxu0 %v1329
    %3292 = vmatprep.subr.mxu0 %v1338
    %3293 = vmatpush1.msra.mxu0 %v1337
    %3294 = vmatprep.subr.mxu0 %v1346
    %3295 = vmatpush1.msra.mxu0 %v1345
    %3296 = vmatprep.subr.mxu0 %v1354
    %3297 = vmatpush1.msra.mxu0 %v1353
    %3298 = vmatprep.subr.mxu0 %v1362
    %3299 = vmatpush1.msra.mxu0 %v1361
    %3300 = vmatprep.subr.mxu0 %v1370
    %3301 = vmatpush1.msra.mxu0 %v1369
    %3302 = vmatprep.subr.mxu0 %v1378
    %3303 = vmatpush1.msra.mxu0 %v1377
    %3304 = vmatprep.subr.mxu0 %v1386
    %3305 = vmatpush1.msra.mxu0 %v1385
    %3306 = vmatprep.subr.mxu0 %v1394
    %3307 = vmatpush1.msra.mxu0 %v1393
    %3308 = vmatprep.subr.mxu0 %v1402
    %3309 = vmatpush1.msra.mxu0 %v1401
    %3310 = vmatprep.subr.mxu0 %v1410
    %3311 = vmatpush1.msra.mxu0 %v1409
    %3312 = vmatprep.subr.mxu0 %v1418
    %3313 = vmatpush1.msra.mxu0 %v1417
    %3314 = vmatprep.subr.mxu0 %v1426
    %3315 = vmatpush1.msra.mxu0 %v1425
    %3316 = vmatprep.subr.mxu0 %v1434
    %3317 = vmatpush1.msra.mxu0 %v1433
    %3318 = vmatprep.subr.mxu0 %v1442
    %3319 = vmatpush1.msra.mxu0 %v1441
    %3320 = vmatprep.subr.mxu0 %v1450
    %3321 = vmatpush1.msra.mxu0 %v1449
    %3322 = vmatprep.mubr.f32.mxu0 %v3114
    %3323 = vmatmul.mubr.f32.gmra.mrb[0].mxu0 %v3064
    %v3324 = vpop.f32.mrb[0].mxu0
    %v3325 = vadd.f32 0.0, %v3324
    %v3326 = vpop.f32.mrb[0].mxu0
    %v3327 = vadd.f32 0.0, %v3326
    %3328 = vdwg.mxu0
    %3329 = vmatprep.subr.mxu0 %v1204
    %3330 = vmatpush1.msra.mxu0 %v1203
    %3331 = vmatprep.subr.mxu0 %v1212
    %3332 = vmatpush1.msra.mxu0 %v1211
    %3333 = vmatprep.subr.mxu0 %v1220
    %3334 = vmatpush1.msra.mxu0 %v1219
    %3335 = vmatprep.subr.mxu0 %v1228
    %3336 = vmatpush1.msra.mxu0 %v1227
    %3337 = vmatprep.subr.mxu0 %v1236
    %3338 = vmatpush1.msra.mxu0 %v1235
    %3339 = vmatprep.subr.mxu0 %v1244
    %3340 = vmatpush1.msra.mxu0 %v1243
    %3341 = vmatprep.subr.mxu0 %v1252
    %3342 = vmatpush1.msra.mxu0 %v1251
    %3343 = vmatprep.subr.mxu0 %v1260
    %3344 = vmatpush1.msra.mxu0 %v1259
    %3345 = vmatprep.subr.mxu0 %v1268
    %3346 = vmatpush1.msra.mxu0 %v1267
    %3347 = vmatprep.subr.mxu0 %v1276
    %3348 = vmatpush1.msra.mxu0 %v1275
    %3349 = vmatprep.subr.mxu0 %v1284
    %3350 = vmatpush1.msra.mxu0 %v1283
    %3351 = vmatprep.subr.mxu0 %v1292
    %3352 = vmatpush1.msra.mxu0 %v1291
    %3353 = vmatprep.subr.mxu0 %v1300
    %3354 = vmatpush1.msra.mxu0 %v1299
    %3355 = vmatprep.subr.mxu0 %v1308
    %3356 = vmatpush1.msra.mxu0 %v1307
    %3357 = vmatprep.subr.mxu0 %v1316
    %3358 = vmatpush1.msra.mxu0 %v1315
    %3359 = vmatprep.subr.mxu0 %v1324
    %3360 = vmatpush1.msra.mxu0 %v1323
    %3361 = vmatprep.subr.mxu0 %v1332
    %3362 = vmatpush1.msra.mxu0 %v1331
    %3363 = vmatprep.subr.mxu0 %v1340
    %3364 = vmatpush1.msra.mxu0 %v1339
    %3365 = vmatprep.subr.mxu0 %v1348
    %3366 = vmatpush1.msra.mxu0 %v1347
    %3367 = vmatprep.subr.mxu0 %v1356
    %3368 = vmatpush1.msra.mxu0 %v1355
    %3369 = vmatprep.subr.mxu0 %v1364
    %3370 = vmatpush1.msra.mxu0 %v1363
    %3371 = vmatprep.subr.mxu0 %v1372
    %3372 = vmatpush1.msra.mxu0 %v1371
    %3373 = vmatprep.subr.mxu0 %v1380
    %3374 = vmatpush1.msra.mxu0 %v1379
    %3375 = vmatprep.subr.mxu0 %v1388
    %3376 = vmatpush1.msra.mxu0 %v1387
    %3377 = vmatprep.subr.mxu0 %v1396
    %3378 = vmatpush1.msra.mxu0 %v1395
    %3379 = vmatprep.subr.mxu0 %v1404
    %3380 = vmatpush1.msra.mxu0 %v1403
    %3381 = vmatprep.subr.mxu0 %v1412
    %3382 = vmatpush1.msra.mxu0 %v1411
    %3383 = vmatprep.subr.mxu0 %v1420
    %3384 = vmatpush1.msra.mxu0 %v1419
    %3385 = vmatprep.subr.mxu0 %v1428
    %3386 = vmatpush1.msra.mxu0 %v1427
    %3387 = vmatprep.subr.mxu0 %v1436
    %3388 = vmatpush1.msra.mxu0 %v1435
    %3389 = vmatprep.subr.mxu0 %v1444
    %3390 = vmatpush1.msra.mxu0 %v1443
    %3391 = vmatprep.subr.mxu0 %v1452
    %3392 = vmatpush1.msra.mxu0 %v1451
    %3393 = vmatprep.mubr.f32.mxu0 %v3114
    %3394 = vmatmul.mubr.f32.gmra.mrb[0].mxu0 %v3064
    %v3395 = vpop.f32.mrb[0].mxu0
    %v3396 = vadd.f32 0.0, %v3395
    %v3397 = vpop.f32.mrb[0].mxu0
    %v3398 = vadd.f32 0.0, %v3397
    %3399 = vdwg.mxu0
    %v3400 = vrot.slane %v909, 5
    %v3401 = vrot.slane %v911, 5
    %v3402 = vrot.slane %v1193, 5
    %v3403 = vrot.slane %v1195, 5
    %v3408 = vadd.f32 %v3183, %v3400
    %v3409 = vadd.f32 %v3185, %v3401
    %v3410 = vadd.f32 %v3254, %v3402
    %v3411 = vadd.f32 %v3256, %v3403
    %v3412 = vxor.u32 %v3408, 2147483648
    %v3413 = vmul.f32 %v3412, 1.442695
    %v3414 = vpow.pop %v3413
    %v3415 = vadd.f32 %v3414, 1.0
    %v3416 = vrcp.pop %v3415
    %v3417 = vmul.f32 1.0, %v3416
    %v3418 = vxor.u32 %v3409, 2147483648
    %v3419 = vmul.f32 %v3418, 1.442695
    %v3420 = vpow.pop %v3419
    %v3421 = vadd.f32 %v3420, 1.0
    %v3422 = vrcp.pop %v3421
    %v3423 = vmul.f32 1.0, %v3422
    %v3424 = vtanh.pop %v3410
    %v3425 = vxor.u32 %v3411, 2147483648
    %v3426 = vmul.f32 %v3425, 1.442695
    %v3427 = vpow.pop %v3426
    %v3428 = vadd.f32 %v3427, 1.0
    %v3429 = vrcp.pop %v3428
    %v3430 = vmul.f32 1.0, %v3429
    %v3431 = vmul.f32 %v3423, %v3062
    %v3432 = vmul.f32 %v3417, %v3424
    %v3433 = vadd.f32 %v3431, %v3432
    %v3434 = vtanh.pop %v3433
    %v3435 = vmul.f32 %v3430, %v3434
    %v3436 = vld [vmem:[%s1951] ss:$2 sm:$0xf]
    %v3438 = vlaneseq
    %v3439 = vshrl.u32 %v3438, 7
    %v3440 = vsub.s32 0, %v3439
    %v3441 = vrot.slane %v3436, %v3440
    %v3442 = vlaneseq
    %v3443 = vshrl.u32 %v3442, 7
    %v3444 = vsub.s32 1, %v3443
    %v3445 = vrot.slane %v3436, %v3444
    %v3446 = vlaneseq
    %v3447 = vshrl.u32 %v3446, 7
    %v3448 = vsub.s32 2, %v3447
    %v3449 = vrot.slane %v3436, %v3448
    %v3450 = vlaneseq
    %v3451 = vshrl.u32 %v3450, 7
    %v3452 = vsub.s32 3, %v3451
    %v3453 = vrot.slane %v3436, %v3452
    %v3458 = vadd.f32 %v3325, %v3441
    %v3459 = vadd.f32 %v3327, %v3445
    %v3460 = vadd.f32 %v3396, %v3449
    %v3461 = vadd.f32 %v3398, %v3453
    %v3462 = vxor.u32 %v3458, 2147483648
    %v3463 = vmul.f32 %v3462, 1.442695
    %v3464 = vpow.pop %v3463
    %v3465 = vadd.f32 %v3464, 1.0
    %v3466 = vrcp.pop %v3465
    %v3467 = vmul.f32 1.0, %v3466
    %v3468 = vxor.u32 %v3459, 2147483648
    %v3469 = vmul.f32 %v3468, 1.442695
    %v3470 = vpow.pop %v3469
    %v3471 = vadd.f32 %v3470, 1.0
    %v3472 = vrcp.pop %v3471
    %v3473 = vmul.f32 1.0, %v3472
    %v3474 = vtanh.pop %v3460
    %v3475 = vxor.u32 %v3461, 2147483648
    %v3476 = vmul.f32 %v3475, 1.442695
    %v3477 = vpow.pop %v3476
    %v3478 = vadd.f32 %v3477, 1.0
    %v3479 = vrcp.pop %v3478
    %v3480 = vmul.f32 1.0, %v3479
    %v3481 = vmul.f32 %v3473, %v3112
    %v3482 = vmul.f32 %v3467, %v3474
    %v3483 = vadd.f32 %v3481, %v3482
    %v3484 = vtanh.pop %v3483
    %v3485 = vmul.f32 %v3480, %v3484
    %3486 = vst [vmem:[#allocation11 + $0x4] sm:$0x1] %v3485
    %3487 = vmatprep.subr.mxu0 %v1198
    %3488 = vmatpush1.msra.mxu0 %v1197
    %3489 = vmatprep.subr.mxu0 %v1206
    %3490 = vmatpush1.msra.mxu0 %v1205
    %3491 = vmatprep.subr.mxu0 %v1214
    %3492 = vmatpush1.msra.mxu0 %v1213
    %3493 = vmatprep.subr.mxu0 %v1222
    %3494 = vmatpush1.msra.mxu0 %v1221
    %3495 = vmatprep.subr.mxu0 %v1230
    %3496 = vmatpush1.msra.mxu0 %v1229
    %3497 = vmatprep.subr.mxu0 %v1238
    %3498 = vmatpush1.msra.mxu0 %v1237
    %3499 = vmatprep.subr.mxu0 %v1246
    %3500 = vmatpush1.msra.mxu0 %v1245
    %3501 = vmatprep.subr.mxu0 %v1254
    %3502 = vmatpush1.msra.mxu0 %v1253
    %3503 = vmatprep.subr.mxu0 %v1262
    %3504 = vmatpush1.msra.mxu0 %v1261
    %3505 = vmatprep.subr.mxu0 %v1270
    %3506 = vmatpush1.msra.mxu0 %v1269
    %3507 = vmatprep.subr.mxu0 %v1278
    %3508 = vmatpush1.msra.mxu0 %v1277
    %3509 = vmatprep.subr.mxu0 %v1286
    %3510 = vmatpush1.msra.mxu0 %v1285
    %3511 = vmatprep.subr.mxu0 %v1294
    %3512 = vmatpush1.msra.mxu0 %v1293
    %3513 = vmatprep.subr.mxu0 %v1302
    %3514 = vmatpush1.msra.mxu0 %v1301
    %3515 = vmatprep.subr.mxu0 %v1310
    %3516 = vmatpush1.msra.mxu0 %v1309
    %3517 = vmatprep.subr.mxu0 %v1318
    %3518 = vmatpush1.msra.mxu0 %v1317
    %3519 = vmatprep.subr.mxu0 %v1326
    %3520 = vmatpush1.msra.mxu0 %v1325
    %3521 = vmatprep.subr.mxu0 %v1334
    %3522 = vmatpush1.msra.mxu0 %v1333
    %3523 = vmatprep.subr.mxu0 %v1342
    %3524 = vmatpush1.msra.mxu0 %v1341
    %3525 = vmatprep.subr.mxu0 %v1350
    %3526 = vmatpush1.msra.mxu0 %v1349
    %3527 = vmatprep.subr.mxu0 %v1358
    %3528 = vmatpush1.msra.mxu0 %v1357
    %3529 = vmatprep.subr.mxu0 %v1366
    %3530 = vmatpush1.msra.mxu0 %v1365
    %3531 = vmatprep.subr.mxu0 %v1374
    %3532 = vmatpush1.msra.mxu0 %v1373
    %3533 = vmatprep.subr.mxu0 %v1382
    %3534 = vmatpush1.msra.mxu0 %v1381
    %3535 = vmatprep.subr.mxu0 %v1390
    %3536 = vmatpush1.msra.mxu0 %v1389
    %3537 = vmatprep.subr.mxu0 %v1398
    %3538 = vmatpush1.msra.mxu0 %v1397
    %3539 = vmatprep.subr.mxu0 %v1406
    %3540 = vmatpush1.msra.mxu0 %v1405
    %3541 = vmatprep.subr.mxu0 %v1414
    %3542 = vmatpush1.msra.mxu0 %v1413
    %3543 = vmatprep.subr.mxu0 %v1422
    %3544 = vmatpush1.msra.mxu0 %v1421
    %3545 = vmatprep.subr.mxu0 %v1430
    %3546 = vmatpush1.msra.mxu0 %v1429
    %3547 = vmatprep.subr.mxu0 %v1438
    %3548 = vmatpush1.msra.mxu0 %v1437
    %3549 = vmatprep.subr.mxu0 %v1446
    %3550 = vmatpush1.msra.mxu0 %v1445
    %3551 = vmatprep.mubr.f32.mxu0 %v3485
    %3552 = vmatmul.mubr.f32.gmra.mrb[0].mxu0 %v3435
    %v3553 = vpop.f32.mrb[0].mxu0
    %v3554 = vadd.f32 0.0, %v3553
    %v3555 = vpop.f32.mrb[0].mxu0
    %v3556 = vadd.f32 0.0, %v3555
    %3557 = vdwg.mxu0
    %3558 = vmatprep.subr.mxu0 %v1200
    %3559 = vmatpush1.msra.mxu0 %v1199
    %3560 = vmatprep.subr.mxu0 %v1208
    %3561 = vmatpush1.msra.mxu0 %v1207
    %3562 = vmatprep.subr.mxu0 %v1216
    %3563 = vmatpush1.msra.mxu0 %v1215
    %3564 = vmatprep.subr.mxu0 %v1224
    %3565 = vmatpush1.msra.mxu0 %v1223
    %3566 = vmatprep.subr.mxu0 %v1232
    %3567 = vmatpush1.msra.mxu0 %v1231
    %3568 = vmatprep.subr.mxu0 %v1240
    %3569 = vmatpush1.msra.mxu0 %v1239
    %3570 = vmatprep.subr.mxu0 %v1248
    %3571 = vmatpush1.msra.mxu0 %v1247
    %3572 = vmatprep.subr.mxu0 %v1256
    %3573 = vmatpush1.msra.mxu0 %v1255
    %3574 = vmatprep.subr.mxu0 %v1264
    %3575 = vmatpush1.msra.mxu0 %v1263
    %3576 = vmatprep.subr.mxu0 %v1272
    %3577 = vmatpush1.msra.mxu0 %v1271
    %3578 = vmatprep.subr.mxu0 %v1280
    %3579 = vmatpush1.msra.mxu0 %v1279
    %3580 = vmatprep.subr.mxu0 %v1288
    %3581 = vmatpush1.msra.mxu0 %v1287
    %3582 = vmatprep.subr.mxu0 %v1296
    %3583 = vmatpush1.msra.mxu0 %v1295
    %3584 = vmatprep.subr.mxu0 %v1304
    %3585 = vmatpush1.msra.mxu0 %v1303
    %3586 = vmatprep.subr.mxu0 %v1312
    %3587 = vmatpush1.msra.mxu0 %v1311
    %3588 = vmatprep.subr.mxu0 %v1320
    %3589 = vmatpush1.msra.mxu0 %v1319
    %3590 = vmatprep.subr.mxu0 %v1328
    %3591 = vmatpush1.msra.mxu0 %v1327
    %3592 = vmatprep.subr.mxu0 %v1336
    %3593 = vmatpush1.msra.mxu0 %v1335
    %3594 = vmatprep.subr.mxu0 %v1344
    %3595 = vmatpush1.msra.mxu0 %v1343
    %3596 = vmatprep.subr.mxu0 %v1352
    %3597 = vmatpush1.msra.mxu0 %v1351
    %3598 = vmatprep.subr.mxu0 %v1360
    %3599 = vmatpush1.msra.mxu0 %v1359
    %3600 = vmatprep.subr.mxu0 %v1368
    %3601 = vmatpush1.msra.mxu0 %v1367
    %3602 = vmatprep.subr.mxu0 %v1376
    %3603 = vmatpush1.msra.mxu0 %v1375
    %3604 = vmatprep.subr.mxu0 %v1384
    %3605 = vmatpush1.msra.mxu0 %v1383
    %3606 = vmatprep.subr.mxu0 %v1392
    %3607 = vmatpush1.msra.mxu0 %v1391
    %3608 = vmatprep.subr.mxu0 %v1400
    %3609 = vmatpush1.msra.mxu0 %v1399
    %3610 = vmatprep.subr.mxu0 %v1408
    %3611 = vmatpush1.msra.mxu0 %v1407
    %3612 = vmatprep.subr.mxu0 %v1416
    %3613 = vmatpush1.msra.mxu0 %v1415
    %3614 = vmatprep.subr.mxu0 %v1424
    %3615 = vmatpush1.msra.mxu0 %v1423
    %3616 = vmatprep.subr.mxu0 %v1432
    %3617 = vmatpush1.msra.mxu0 %v1431
    %3618 = vmatprep.subr.mxu0 %v1440
    %3619 = vmatpush1.msra.mxu0 %v1439
    %3620 = vmatprep.subr.mxu0 %v1448
    %3621 = vmatpush1.msra.mxu0 %v1447
    %3622 = vmatprep.mubr.f32.mxu0 %v3485
    %3623 = vmatmul.mubr.f32.gmra.mrb[0].mxu0 %v3435
    %v3624 = vpop.f32.mrb[0].mxu0
    %v3625 = vadd.f32 0.0, %v3624
    %v3626 = vpop.f32.mrb[0].mxu0
    %v3627 = vadd.f32 0.0, %v3626
    %3628 = vdwg.mxu0
    %3629 = vmatprep.subr.mxu0 %v1202
    %3630 = vmatpush1.msra.mxu0 %v1201
    %3631 = vmatprep.subr.mxu0 %v1210
    %3632 = vmatpush1.msra.mxu0 %v1209
    %3633 = vmatprep.subr.mxu0 %v1218
    %3634 = vmatpush1.msra.mxu0 %v1217
    %3635 = vmatprep.subr.mxu0 %v1226
    %3636 = vmatpush1.msra.mxu0 %v1225
    %3637 = vmatprep.subr.mxu0 %v1234
    %3638 = vmatpush1.msra.mxu0 %v1233
    %3639 = vmatprep.subr.mxu0 %v1242
    %3640 = vmatpush1.msra.mxu0 %v1241
    %3641 = vmatprep.subr.mxu0 %v1250
    %3642 = vmatpush1.msra.mxu0 %v1249
    %3643 = vmatprep.subr.mxu0 %v1258
    %3644 = vmatpush1.msra.mxu0 %v1257
    %3645 = vmatprep.subr.mxu0 %v1266
    %3646 = vmatpush1.msra.mxu0 %v1265
    %3647 = vmatprep.subr.mxu0 %v1274
    %3648 = vmatpush1.msra.mxu0 %v1273
    %3649 = vmatprep.subr.mxu0 %v1282
    %3650 = vmatpush1.msra.mxu0 %v1281
    %3651 = vmatprep.subr.mxu0 %v1290
    %3652 = vmatpush1.msra.mxu0 %v1289
    %3653 = vmatprep.subr.mxu0 %v1298
    %3654 = vmatpush1.msra.mxu0 %v1297
    %3655 = vmatprep.subr.mxu0 %v1306
    %3656 = vmatpush1.msra.mxu0 %v1305
    %3657 = vmatprep.subr.mxu0 %v1314
    %3658 = vmatpush1.msra.mxu0 %v1313
    %3659 = vmatprep.subr.mxu0 %v1322
    %3660 = vmatpush1.msra.mxu0 %v1321
    %3661 = vmatprep.subr.mxu0 %v1330
    %3662 = vmatpush1.msra.mxu0 %v1329
    %3663 = vmatprep.subr.mxu0 %v1338
    %3664 = vmatpush1.msra.mxu0 %v1337
    %3665 = vmatprep.subr.mxu0 %v1346
    %3666 = vmatpush1.msra.mxu0 %v1345
    %3667 = vmatprep.subr.mxu0 %v1354
    %3668 = vmatpush1.msra.mxu0 %v1353
    %3669 = vmatprep.subr.mxu0 %v1362
    %3670 = vmatpush1.msra.mxu0 %v1361
    %3671 = vmatprep.subr.mxu0 %v1370
    %3672 = vmatpush1.msra.mxu0 %v1369
    %3673 = vmatprep.subr.mxu0 %v1378
    %3674 = vmatpush1.msra.mxu0 %v1377
    %3675 = vmatprep.subr.mxu0 %v1386
    %3676 = vmatpush1.msra.mxu0 %v1385
    %3677 = vmatprep.subr.mxu0 %v1394
    %3678 = vmatpush1.msra.mxu0 %v1393
    %3679 = vmatprep.subr.mxu0 %v1402
    %3680 = vmatpush1.msra.mxu0 %v1401
    %3681 = vmatprep.subr.mxu0 %v1410
    %3682 = vmatpush1.msra.mxu0 %v1409
    %3683 = vmatprep.subr.mxu0 %v1418
    %3684 = vmatpush1.msra.mxu0 %v1417
    %3685 = vmatprep.subr.mxu0 %v1426
    %3686 = vmatpush1.msra.mxu0 %v1425
    %3687 = vmatprep.subr.mxu0 %v1434
    %3688 = vmatpush1.msra.mxu0 %v1433
    %3689 = vmatprep.subr.mxu0 %v1442
    %3690 = vmatpush1.msra.mxu0 %v1441
    %3691 = vmatprep.subr.mxu0 %v1450
    %3692 = vmatpush1.msra.mxu0 %v1449
    %3693 = vmatprep.mubr.f32.mxu0 %v3485
    %3694 = vmatmul.mubr.f32.gmra.mrb[0].mxu0 %v3435
    %v3695 = vpop.f32.mrb[0].mxu0
    %v3696 = vadd.f32 0.0, %v3695
    %v3697 = vpop.f32.mrb[0].mxu0
    %v3698 = vadd.f32 0.0, %v3697
    %3699 = vdwg.mxu0
    %3700 = vmatprep.subr.mxu0 %v1204
    %3701 = vmatpush1.msra.mxu0 %v1203
    %3702 = vmatprep.subr.mxu0 %v1212
    %3703 = vmatpush1.msra.mxu0 %v1211
    %3704 = vmatprep.subr.mxu0 %v1220
    %3705 = vmatpush1.msra.mxu0 %v1219
    %3706 = vmatprep.subr.mxu0 %v1228
    %3707 = vmatpush1.msra.mxu0 %v1227
    %3708 = vmatprep.subr.mxu0 %v1236
    %3709 = vmatpush1.msra.mxu0 %v1235
    %3710 = vmatprep.subr.mxu0 %v1244
    %3711 = vmatpush1.msra.mxu0 %v1243
    %3712 = vmatprep.subr.mxu0 %v1252
    %3713 = vmatpush1.msra.mxu0 %v1251
    %3714 = vmatprep.subr.mxu0 %v1260
    %3715 = vmatpush1.msra.mxu0 %v1259
    %3716 = vmatprep.subr.mxu0 %v1268
    %3717 = vmatpush1.msra.mxu0 %v1267
    %3718 = vmatprep.subr.mxu0 %v1276
    %3719 = vmatpush1.msra.mxu0 %v1275
    %3720 = vmatprep.subr.mxu0 %v1284
    %3721 = vmatpush1.msra.mxu0 %v1283
    %3722 = vmatprep.subr.mxu0 %v1292
    %3723 = vmatpush1.msra.mxu0 %v1291
    %3724 = vmatprep.subr.mxu0 %v1300
    %3725 = vmatpush1.msra.mxu0 %v1299
    %3726 = vmatprep.subr.mxu0 %v1308
    %3727 = vmatpush1.msra.mxu0 %v1307
    %3728 = vmatprep.subr.mxu0 %v1316
    %3729 = vmatpush1.msra.mxu0 %v1315
    %3730 = vmatprep.subr.mxu0 %v1324
    %3731 = vmatpush1.msra.mxu0 %v1323
    %3732 = vmatprep.subr.mxu0 %v1332
    %3733 = vmatpush1.msra.mxu0 %v1331
    %3734 = vmatprep.subr.mxu0 %v1340
    %3735 = vmatpush1.msra.mxu0 %v1339
    %3736 = vmatprep.subr.mxu0 %v1348
    %3737 = vmatpush1.msra.mxu0 %v1347
    %3738 = vmatprep.subr.mxu0 %v1356
    %3739 = vmatpush1.msra.mxu0 %v1355
    %3740 = vmatprep.subr.mxu0 %v1364
    %3741 = vmatpush1.msra.mxu0 %v1363
    %3742 = vmatprep.subr.mxu0 %v1372
    %3743 = vmatpush1.msra.mxu0 %v1371
    %3744 = vmatprep.subr.mxu0 %v1380
    %3745 = vmatpush1.msra.mxu0 %v1379
    %3746 = vmatprep.subr.mxu0 %v1388
    %3747 = vmatpush1.msra.mxu0 %v1387
    %3748 = vmatprep.subr.mxu0 %v1396
    %3749 = vmatpush1.msra.mxu0 %v1395
    %3750 = vmatprep.subr.mxu0 %v1404
    %3751 = vmatpush1.msra.mxu0 %v1403
    %3752 = vmatprep.subr.mxu0 %v1412
    %3753 = vmatpush1.msra.mxu0 %v1411
    %3754 = vmatprep.subr.mxu0 %v1420
    %3755 = vmatpush1.msra.mxu0 %v1419
    %3756 = vmatprep.subr.mxu0 %v1428
    %3757 = vmatpush1.msra.mxu0 %v1427
    %3758 = vmatprep.subr.mxu0 %v1436
    %3759 = vmatpush1.msra.mxu0 %v1435
    %3760 = vmatprep.subr.mxu0 %v1444
    %3761 = vmatpush1.msra.mxu0 %v1443
    %3762 = vmatprep.subr.mxu0 %v1452
    %3763 = vmatpush1.msra.mxu0 %v1451
    %3764 = vmatprep.mubr.f32.mxu0 %v3485
    %3765 = vmatmul.mubr.f32.gmra.mrb[0].mxu0 %v3435
    %v3766 = vpop.f32.mrb[0].mxu0
    %v3767 = vadd.f32 0.0, %v3766
    %v3768 = vpop.f32.mrb[0].mxu0
    %v3769 = vadd.f32 0.0, %v3768
    %3770 = vdwg.mxu0
    %v3771 = vrot.slane %v909, 6
    %v3772 = vrot.slane %v911, 6
    %v3773 = vrot.slane %v1193, 6
    %v3774 = vrot.slane %v1195, 6
    %v3779 = vadd.f32 %v3554, %v3771
    %v3780 = vadd.f32 %v3556, %v3772
    %v3781 = vadd.f32 %v3625, %v3773
    %v3782 = vadd.f32 %v3627, %v3774
    %v3783 = vxor.u32 %v3779, 2147483648
    %v3784 = vmul.f32 %v3783, 1.442695
    %v3785 = vpow.pop %v3784
    %v3786 = vadd.f32 %v3785, 1.0
    %v3787 = vrcp.pop %v3786
    %v3788 = vmul.f32 1.0, %v3787
    %v3789 = vxor.u32 %v3780, 2147483648
    %v3790 = vmul.f32 %v3789, 1.442695
    %v3791 = vpow.pop %v3790
    %v3792 = vadd.f32 %v3791, 1.0
    %v3793 = vrcp.pop %v3792
    %v3794 = vmul.f32 1.0, %v3793
    %v3795 = vtanh.pop %v3781
    %v3796 = vxor.u32 %v3782, 2147483648
    %v3797 = vmul.f32 %v3796, 1.442695
    %v3798 = vpow.pop %v3797
    %v3799 = vadd.f32 %v3798, 1.0
    %v3800 = vrcp.pop %v3799
    %v3801 = vmul.f32 1.0, %v3800
    %v3802 = vmul.f32 %v3794, %v3433
    %v3803 = vmul.f32 %v3788, %v3795
    %v3804 = vadd.f32 %v3802, %v3803
    %v3805 = vtanh.pop %v3804
    %v3806 = vmul.f32 %v3801, %v3805
    %v3807 = vld [vmem:[%s1951] ss:$2 sm:$0xf]
    %v3809 = vlaneseq
    %v3810 = vshrl.u32 %v3809, 7
    %v3811 = vsub.s32 0, %v3810
    %v3812 = vrot.slane %v3807, %v3811
    %v3813 = vlaneseq
    %v3814 = vshrl.u32 %v3813, 7
    %v3815 = vsub.s32 1, %v3814
    %v3816 = vrot.slane %v3807, %v3815
    %v3817 = vlaneseq
    %v3818 = vshrl.u32 %v3817, 7
    %v3819 = vsub.s32 2, %v3818
    %v3820 = vrot.slane %v3807, %v3819
    %v3821 = vlaneseq
    %v3822 = vshrl.u32 %v3821, 7
    %v3823 = vsub.s32 3, %v3822
    %v3824 = vrot.slane %v3807, %v3823
    %v3829 = vadd.f32 %v3696, %v3812
    %v3830 = vadd.f32 %v3698, %v3816
    %v3831 = vadd.f32 %v3767, %v3820
    %v3832 = vadd.f32 %v3769, %v3824
    %v3833 = vxor.u32 %v3829, 2147483648
    %v3834 = vmul.f32 %v3833, 1.442695
    %v3835 = vpow.pop %v3834
    %v3836 = vadd.f32 %v3835, 1.0
    %v3837 = vrcp.pop %v3836
    %v3838 = vmul.f32 1.0, %v3837
    %v3839 = vxor.u32 %v3830, 2147483648
    %v3840 = vmul.f32 %v3839, 1.442695
    %v3841 = vpow.pop %v3840
    %v3842 = vadd.f32 %v3841, 1.0
    %v3843 = vrcp.pop %v3842
    %v3844 = vmul.f32 1.0, %v3843
    %v3845 = vtanh.pop %v3831
    %v3846 = vxor.u32 %v3832, 2147483648
    %v3847 = vmul.f32 %v3846, 1.442695
    %v3848 = vpow.pop %v3847
    %v3849 = vadd.f32 %v3848, 1.0
    %v3850 = vrcp.pop %v3849
    %v3851 = vmul.f32 1.0, %v3850
    %v3852 = vmul.f32 %v3844, %v3483
    %v3853 = vmul.f32 %v3838, %v3845
    %v3854 = vadd.f32 %v3852, %v3853
    %v3855 = vtanh.pop %v3854
    %v3856 = vmul.f32 %v3851, %v3855
    %3857 = vst [vmem:[#allocation11 + $0x5] sm:$0x1] %v3856
    %3858 = vmatprep.subr.mxu0 %v1198
    %3859 = vmatpush1.msra.mxu0 %v1197
    %3860 = vmatprep.subr.mxu0 %v1206
    %3861 = vmatpush1.msra.mxu0 %v1205
    %3862 = vmatprep.subr.mxu0 %v1214
    %3863 = vmatpush1.msra.mxu0 %v1213
    %3864 = vmatprep.subr.mxu0 %v1222
    %3865 = vmatpush1.msra.mxu0 %v1221
    %3866 = vmatprep.subr.mxu0 %v1230
    %3867 = vmatpush1.msra.mxu0 %v1229
    %3868 = vmatprep.subr.mxu0 %v1238
    %3869 = vmatpush1.msra.mxu0 %v1237
    %3870 = vmatprep.subr.mxu0 %v1246
    %3871 = vmatpush1.msra.mxu0 %v1245
    %3872 = vmatprep.subr.mxu0 %v1254
    %3873 = vmatpush1.msra.mxu0 %v1253
    %3874 = vmatprep.subr.mxu0 %v1262
    %3875 = vmatpush1.msra.mxu0 %v1261
    %3876 = vmatprep.subr.mxu0 %v1270
    %3877 = vmatpush1.msra.mxu0 %v1269
    %3878 = vmatprep.subr.mxu0 %v1278
    %3879 = vmatpush1.msra.mxu0 %v1277
    %3880 = vmatprep.subr.mxu0 %v1286
    %3881 = vmatpush1.msra.mxu0 %v1285
    %3882 = vmatprep.subr.mxu0 %v1294
    %3883 = vmatpush1.msra.mxu0 %v1293
    %3884 = vmatprep.subr.mxu0 %v1302
    %3885 = vmatpush1.msra.mxu0 %v1301
    %3886 = vmatprep.subr.mxu0 %v1310
    %3887 = vmatpush1.msra.mxu0 %v1309
    %3888 = vmatprep.subr.mxu0 %v1318
    %3889 = vmatpush1.msra.mxu0 %v1317
    %3890 = vmatprep.subr.mxu0 %v1326
    %3891 = vmatpush1.msra.mxu0 %v1325
    %3892 = vmatprep.subr.mxu0 %v1334
    %3893 = vmatpush1.msra.mxu0 %v1333
    %3894 = vmatprep.subr.mxu0 %v1342
    %3895 = vmatpush1.msra.mxu0 %v1341
    %3896 = vmatprep.subr.mxu0 %v1350
    %3897 = vmatpush1.msra.mxu0 %v1349
    %3898 = vmatprep.subr.mxu0 %v1358
    %3899 = vmatpush1.msra.mxu0 %v1357
    %3900 = vmatprep.subr.mxu0 %v1366
    %3901 = vmatpush1.msra.mxu0 %v1365
    %3902 = vmatprep.subr.mxu0 %v1374
    %3903 = vmatpush1.msra.mxu0 %v1373
    %3904 = vmatprep.subr.mxu0 %v1382
    %3905 = vmatpush1.msra.mxu0 %v1381
    %3906 = vmatprep.subr.mxu0 %v1390
    %3907 = vmatpush1.msra.mxu0 %v1389
    %3908 = vmatprep.subr.mxu0 %v1398
    %3909 = vmatpush1.msra.mxu0 %v1397
    %3910 = vmatprep.subr.mxu0 %v1406
    %3911 = vmatpush1.msra.mxu0 %v1405
    %3912 = vmatprep.subr.mxu0 %v1414
    %3913 = vmatpush1.msra.mxu0 %v1413
    %3914 = vmatprep.subr.mxu0 %v1422
    %3915 = vmatpush1.msra.mxu0 %v1421
    %3916 = vmatprep.subr.mxu0 %v1430
    %3917 = vmatpush1.msra.mxu0 %v1429
    %3918 = vmatprep.subr.mxu0 %v1438
    %3919 = vmatpush1.msra.mxu0 %v1437
    %3920 = vmatprep.subr.mxu0 %v1446
    %3921 = vmatpush1.msra.mxu0 %v1445
    %3922 = vmatprep.mubr.f32.mxu0 %v3856
    %3923 = vmatmul.mubr.f32.gmra.mrb[0].mxu0 %v3806
    %v3924 = vpop.f32.mrb[0].mxu0
    %v3925 = vadd.f32 0.0, %v3924
    %v3926 = vpop.f32.mrb[0].mxu0
    %v3927 = vadd.f32 0.0, %v3926
    %3928 = vdwg.mxu0
    %3929 = vmatprep.subr.mxu0 %v1200
    %3930 = vmatpush1.msra.mxu0 %v1199
    %3931 = vmatprep.subr.mxu0 %v1208
    %3932 = vmatpush1.msra.mxu0 %v1207
    %3933 = vmatprep.subr.mxu0 %v1216
    %3934 = vmatpush1.msra.mxu0 %v1215
    %3935 = vmatprep.subr.mxu0 %v1224
    %3936 = vmatpush1.msra.mxu0 %v1223
    %3937 = vmatprep.subr.mxu0 %v1232
    %3938 = vmatpush1.msra.mxu0 %v1231
    %3939 = vmatprep.subr.mxu0 %v1240
    %3940 = vmatpush1.msra.mxu0 %v1239
    %3941 = vmatprep.subr.mxu0 %v1248
    %3942 = vmatpush1.msra.mxu0 %v1247
    %3943 = vmatprep.subr.mxu0 %v1256
    %3944 = vmatpush1.msra.mxu0 %v1255
    %3945 = vmatprep.subr.mxu0 %v1264
    %3946 = vmatpush1.msra.mxu0 %v1263
    %3947 = vmatprep.subr.mxu0 %v1272
    %3948 = vmatpush1.msra.mxu0 %v1271
    %3949 = vmatprep.subr.mxu0 %v1280
    %3950 = vmatpush1.msra.mxu0 %v1279
    %3951 = vmatprep.subr.mxu0 %v1288
    %3952 = vmatpush1.msra.mxu0 %v1287
    %3953 = vmatprep.subr.mxu0 %v1296
    %3954 = vmatpush1.msra.mxu0 %v1295
    %3955 = vmatprep.subr.mxu0 %v1304
    %3956 = vmatpush1.msra.mxu0 %v1303
    %3957 = vmatprep.subr.mxu0 %v1312
    %3958 = vmatpush1.msra.mxu0 %v1311
    %3959 = vmatprep.subr.mxu0 %v1320
    %3960 = vmatpush1.msra.mxu0 %v1319
    %3961 = vmatprep.subr.mxu0 %v1328
    %3962 = vmatpush1.msra.mxu0 %v1327
    %3963 = vmatprep.subr.mxu0 %v1336
    %3964 = vmatpush1.msra.mxu0 %v1335
    %3965 = vmatprep.subr.mxu0 %v1344
    %3966 = vmatpush1.msra.mxu0 %v1343
    %3967 = vmatprep.subr.mxu0 %v1352
    %3968 = vmatpush1.msra.mxu0 %v1351
    %3969 = vmatprep.subr.mxu0 %v1360
    %3970 = vmatpush1.msra.mxu0 %v1359
    %3971 = vmatprep.subr.mxu0 %v1368
    %3972 = vmatpush1.msra.mxu0 %v1367
    %3973 = vmatprep.subr.mxu0 %v1376
    %3974 = vmatpush1.msra.mxu0 %v1375
    %3975 = vmatprep.subr.mxu0 %v1384
    %3976 = vmatpush1.msra.mxu0 %v1383
    %3977 = vmatprep.subr.mxu0 %v1392
    %3978 = vmatpush1.msra.mxu0 %v1391
    %3979 = vmatprep.subr.mxu0 %v1400
    %3980 = vmatpush1.msra.mxu0 %v1399
    %3981 = vmatprep.subr.mxu0 %v1408
    %3982 = vmatpush1.msra.mxu0 %v1407
    %3983 = vmatprep.subr.mxu0 %v1416
    %3984 = vmatpush1.msra.mxu0 %v1415
    %3985 = vmatprep.subr.mxu0 %v1424
    %3986 = vmatpush1.msra.mxu0 %v1423
    %3987 = vmatprep.subr.mxu0 %v1432
    %3988 = vmatpush1.msra.mxu0 %v1431
    %3989 = vmatprep.subr.mxu0 %v1440
    %3990 = vmatpush1.msra.mxu0 %v1439
    %3991 = vmatprep.subr.mxu0 %v1448
    %3992 = vmatpush1.msra.mxu0 %v1447
    %3993 = vmatprep.mubr.f32.mxu0 %v3856
    %3994 = vmatmul.mubr.f32.gmra.mrb[0].mxu0 %v3806
    %v3995 = vpop.f32.mrb[0].mxu0
    %v3996 = vadd.f32 0.0, %v3995
    %v3997 = vpop.f32.mrb[0].mxu0
    %v3998 = vadd.f32 0.0, %v3997
    %3999 = vdwg.mxu0
    %4000 = vmatprep.subr.mxu0 %v1202
    %4001 = vmatpush1.msra.mxu0 %v1201
    %4002 = vmatprep.subr.mxu0 %v1210
    %4003 = vmatpush1.msra.mxu0 %v1209
    %4004 = vmatprep.subr.mxu0 %v1218
    %4005 = vmatpush1.msra.mxu0 %v1217
    %4006 = vmatprep.subr.mxu0 %v1226
    %4007 = vmatpush1.msra.mxu0 %v1225
    %4008 = vmatprep.subr.mxu0 %v1234
    %4009 = vmatpush1.msra.mxu0 %v1233
    %4010 = vmatprep.subr.mxu0 %v1242
    %4011 = vmatpush1.msra.mxu0 %v1241
    %4012 = vmatprep.subr.mxu0 %v1250
    %4013 = vmatpush1.msra.mxu0 %v1249
    %4014 = vmatprep.subr.mxu0 %v1258
    %4015 = vmatpush1.msra.mxu0 %v1257
    %4016 = vmatprep.subr.mxu0 %v1266
    %4017 = vmatpush1.msra.mxu0 %v1265
    %4018 = vmatprep.subr.mxu0 %v1274
    %4019 = vmatpush1.msra.mxu0 %v1273
    %4020 = vmatprep.subr.mxu0 %v1282
    %4021 = vmatpush1.msra.mxu0 %v1281
    %4022 = vmatprep.subr.mxu0 %v1290
    %4023 = vmatpush1.msra.mxu0 %v1289
    %4024 = vmatprep.subr.mxu0 %v1298
    %4025 = vmatpush1.msra.mxu0 %v1297
    %4026 = vmatprep.subr.mxu0 %v1306
    %4027 = vmatpush1.msra.mxu0 %v1305
    %4028 = vmatprep.subr.mxu0 %v1314
    %4029 = vmatpush1.msra.mxu0 %v1313
    %4030 = vmatprep.subr.mxu0 %v1322
    %4031 = vmatpush1.msra.mxu0 %v1321
    %4032 = vmatprep.subr.mxu0 %v1330
    %4033 = vmatpush1.msra.mxu0 %v1329
    %4034 = vmatprep.subr.mxu0 %v1338
    %4035 = vmatpush1.msra.mxu0 %v1337
    %4036 = vmatprep.subr.mxu0 %v1346
    %4037 = vmatpush1.msra.mxu0 %v1345
    %4038 = vmatprep.subr.mxu0 %v1354
    %4039 = vmatpush1.msra.mxu0 %v1353
    %4040 = vmatprep.subr.mxu0 %v1362
    %4041 = vmatpush1.msra.mxu0 %v1361
    %4042 = vmatprep.subr.mxu0 %v1370
    %4043 = vmatpush1.msra.mxu0 %v1369
    %4044 = vmatprep.subr.mxu0 %v1378
    %4045 = vmatpush1.msra.mxu0 %v1377
    %4046 = vmatprep.subr.mxu0 %v1386
    %4047 = vmatpush1.msra.mxu0 %v1385
    %4048 = vmatprep.subr.mxu0 %v1394
    %4049 = vmatpush1.msra.mxu0 %v1393
    %4050 = vmatprep.subr.mxu0 %v1402
    %4051 = vmatpush1.msra.mxu0 %v1401
    %4052 = vmatprep.subr.mxu0 %v1410
    %4053 = vmatpush1.msra.mxu0 %v1409
    %4054 = vmatprep.subr.mxu0 %v1418
    %4055 = vmatpush1.msra.mxu0 %v1417
    %4056 = vmatprep.subr.mxu0 %v1426
    %4057 = vmatpush1.msra.mxu0 %v1425
    %4058 = vmatprep.subr.mxu0 %v1434
    %4059 = vmatpush1.msra.mxu0 %v1433
    %4060 = vmatprep.subr.mxu0 %v1442
    %4061 = vmatpush1.msra.mxu0 %v1441
    %4062 = vmatprep.subr.mxu0 %v1450
    %4063 = vmatpush1.msra.mxu0 %v1449
    %4064 = vmatprep.mubr.f32.mxu0 %v3856
    %4065 = vmatmul.mubr.f32.gmra.mrb[0].mxu0 %v3806
    %v4066 = vpop.f32.mrb[0].mxu0
    %v4067 = vadd.f32 0.0, %v4066
    %v4068 = vpop.f32.mrb[0].mxu0
    %v4069 = vadd.f32 0.0, %v4068
    %4070 = vdwg.mxu0
    %4071 = vmatprep.subr.mxu0 %v1204
    %4072 = vmatpush1.msra.mxu0 %v1203
    %4073 = vmatprep.subr.mxu0 %v1212
    %4074 = vmatpush1.msra.mxu0 %v1211
    %4075 = vmatprep.subr.mxu0 %v1220
    %4076 = vmatpush1.msra.mxu0 %v1219
    %4077 = vmatprep.subr.mxu0 %v1228
    %4078 = vmatpush1.msra.mxu0 %v1227
    %4079 = vmatprep.subr.mxu0 %v1236
    %4080 = vmatpush1.msra.mxu0 %v1235
    %4081 = vmatprep.subr.mxu0 %v1244
    %4082 = vmatpush1.msra.mxu0 %v1243
    %4083 = vmatprep.subr.mxu0 %v1252
    %4084 = vmatpush1.msra.mxu0 %v1251
    %4085 = vmatprep.subr.mxu0 %v1260
    %4086 = vmatpush1.msra.mxu0 %v1259
    %4087 = vmatprep.subr.mxu0 %v1268
    %4088 = vmatpush1.msra.mxu0 %v1267
    %4089 = vmatprep.subr.mxu0 %v1276
    %4090 = vmatpush1.msra.mxu0 %v1275
    %4091 = vmatprep.subr.mxu0 %v1284
    %4092 = vmatpush1.msra.mxu0 %v1283
    %4093 = vmatprep.subr.mxu0 %v1292
    %4094 = vmatpush1.msra.mxu0 %v1291
    %4095 = vmatprep.subr.mxu0 %v1300
    %4096 = vmatpush1.msra.mxu0 %v1299
    %4097 = vmatprep.subr.mxu0 %v1308
    %4098 = vmatpush1.msra.mxu0 %v1307
    %4099 = vmatprep.subr.mxu0 %v1316
    %4100 = vmatpush1.msra.mxu0 %v1315
    %4101 = vmatprep.subr.mxu0 %v1324
    %4102 = vmatpush1.msra.mxu0 %v1323
    %4103 = vmatprep.subr.mxu0 %v1332
    %4104 = vmatpush1.msra.mxu0 %v1331
    %4105 = vmatprep.subr.mxu0 %v1340
    %4106 = vmatpush1.msra.mxu0 %v1339
    %4107 = vmatprep.subr.mxu0 %v1348
    %4108 = vmatpush1.msra.mxu0 %v1347
    %4109 = vmatprep.subr.mxu0 %v1356
    %4110 = vmatpush1.msra.mxu0 %v1355
    %4111 = vmatprep.subr.mxu0 %v1364
    %4112 = vmatpush1.msra.mxu0 %v1363
    %4113 = vmatprep.subr.mxu0 %v1372
    %4114 = vmatpush1.msra.mxu0 %v1371
    %4115 = vmatprep.subr.mxu0 %v1380
    %4116 = vmatpush1.msra.mxu0 %v1379
    %4117 = vmatprep.subr.mxu0 %v1388
    %4118 = vmatpush1.msra.mxu0 %v1387
    %4119 = vmatprep.subr.mxu0 %v1396
    %4120 = vmatpush1.msra.mxu0 %v1395
    %4121 = vmatprep.subr.mxu0 %v1404
    %4122 = vmatpush1.msra.mxu0 %v1403
    %4123 = vmatprep.subr.mxu0 %v1412
    %4124 = vmatpush1.msra.mxu0 %v1411
    %4125 = vmatprep.subr.mxu0 %v1420
    %4126 = vmatpush1.msra.mxu0 %v1419
    %4127 = vmatprep.subr.mxu0 %v1428
    %4128 = vmatpush1.msra.mxu0 %v1427
    %4129 = vmatprep.subr.mxu0 %v1436
    %4130 = vmatpush1.msra.mxu0 %v1435
    %4131 = vmatprep.subr.mxu0 %v1444
    %4132 = vmatpush1.msra.mxu0 %v1443
    %4133 = vmatprep.subr.mxu0 %v1452
    %4134 = vmatpush1.msra.mxu0 %v1451
    %4135 = vmatprep.mubr.f32.mxu0 %v3856
    %4136 = vmatmul.mubr.f32.gmra.mrb[0].mxu0 %v3806
    %v4137 = vpop.f32.mrb[0].mxu0
    %v4138 = vadd.f32 0.0, %v4137
    %v4139 = vpop.f32.mrb[0].mxu0
    %v4140 = vadd.f32 0.0, %v4139
    %4141 = vdwg.mxu0
    %v4142 = vrot.slane %v909, 7
    %v4143 = vrot.slane %v911, 7
    %v4144 = vrot.slane %v1193, 7
    %v4145 = vrot.slane %v1195, 7
    %v4150 = vadd.f32 %v3925, %v4142
    %v4151 = vadd.f32 %v3927, %v4143
    %v4152 = vadd.f32 %v3996, %v4144
    %v4153 = vadd.f32 %v3998, %v4145
    %v4154 = vxor.u32 %v4150, 2147483648
    %v4155 = vmul.f32 %v4154, 1.442695
    %v4156 = vpow.pop %v4155
    %v4157 = vadd.f32 %v4156, 1.0
    %v4158 = vrcp.pop %v4157
    %v4159 = vmul.f32 1.0, %v4158
    %v4160 = vxor.u32 %v4151, 2147483648
    %v4161 = vmul.f32 %v4160, 1.442695
    %v4162 = vpow.pop %v4161
    %v4163 = vadd.f32 %v4162, 1.0
    %v4164 = vrcp.pop %v4163
    %v4165 = vmul.f32 1.0, %v4164
    %v4166 = vtanh.pop %v4152
    %v4167 = vxor.u32 %v4153, 2147483648
    %v4168 = vmul.f32 %v4167, 1.442695
    %v4169 = vpow.pop %v4168
    %v4170 = vadd.f32 %v4169, 1.0
    %v4171 = vrcp.pop %v4170
    %v4172 = vmul.f32 1.0, %v4171
    %v4173 = vmul.f32 %v4165, %v3804
    %v4174 = vmul.f32 %v4159, %v4166
    %v4175 = vadd.f32 %v4173, %v4174
    %v4176 = vtanh.pop %v4175
    %v4177 = vmul.f32 %v4172, %v4176
    %v4178 = vld [vmem:[%s1951] ss:$2 sm:$0xf]
    %v4180 = vlaneseq
    %v4181 = vshrl.u32 %v4180, 7
    %v4182 = vsub.s32 0, %v4181
    %v4183 = vrot.slane %v4178, %v4182
    %v4184 = vlaneseq
    %v4185 = vshrl.u32 %v4184, 7
    %v4186 = vsub.s32 1, %v4185
    %v4187 = vrot.slane %v4178, %v4186
    %v4188 = vlaneseq
    %v4189 = vshrl.u32 %v4188, 7
    %v4190 = vsub.s32 2, %v4189
    %v4191 = vrot.slane %v4178, %v4190
    %v4192 = vlaneseq
    %v4193 = vshrl.u32 %v4192, 7
    %v4194 = vsub.s32 3, %v4193
    %v4195 = vrot.slane %v4178, %v4194
    %v4200 = vadd.f32 %v4067, %v4183
    %v4201 = vadd.f32 %v4069, %v4187
    %v4202 = vadd.f32 %v4138, %v4191
    %v4203 = vadd.f32 %v4140, %v4195
    %v4204 = vxor.u32 %v4200, 2147483648
    %v4205 = vmul.f32 %v4204, 1.442695
    %v4206 = vpow.pop %v4205
    %v4207 = vadd.f32 %v4206, 1.0
    %v4208 = vrcp.pop %v4207
    %v4209 = vmul.f32 1.0, %v4208
    %v4210 = vxor.u32 %v4201, 2147483648
    %v4211 = vmul.f32 %v4210, 1.442695
    %v4212 = vpow.pop %v4211
    %v4213 = vadd.f32 %v4212, 1.0
    %v4214 = vrcp.pop %v4213
    %v4215 = vmul.f32 1.0, %v4214
    %v4216 = vtanh.pop %v4202
    %v4217 = vxor.u32 %v4203, 2147483648
    %v4218 = vmul.f32 %v4217, 1.442695
    %v4219 = vpow.pop %v4218
    %v4220 = vadd.f32 %v4219, 1.0
    %v4221 = vrcp.pop %v4220
    %v4222 = vmul.f32 1.0, %v4221
    %v4223 = vmul.f32 %v4215, %v3854
    %v4224 = vmul.f32 %v4209, %v4216
    %v4225 = vadd.f32 %v4223, %v4224
    %v4226 = vtanh.pop %v4225
    %v4227 = vmul.f32 %v4222, %v4226
    %4228 = vst [vmem:[#allocation11 + $0x6] sm:$0x1] %v4227
    %4229 = vmatprep.subr.mxu0 %v1202
    %4230 = vmatpush1.msra.mxu0 %v1201
    %4231 = vmatprep.subr.mxu0 %v1210
    %4232 = vmatpush1.msra.mxu0 %v1209
    %4233 = vmatprep.subr.mxu0 %v1218
    %4234 = vmatpush1.msra.mxu0 %v1217
    %4235 = vmatprep.subr.mxu0 %v1226
    %4236 = vmatpush1.msra.mxu0 %v1225
    %4237 = vmatprep.subr.mxu0 %v1234
    %4238 = vmatpush1.msra.mxu0 %v1233
    %4239 = vmatprep.subr.mxu0 %v1242
    %4240 = vmatpush1.msra.mxu0 %v1241
    %4241 = vmatprep.subr.mxu0 %v1250
    %4242 = vmatpush1.msra.mxu0 %v1249
    %4243 = vmatprep.subr.mxu0 %v1258
    %4244 = vmatpush1.msra.mxu0 %v1257
    %4245 = vmatprep.subr.mxu0 %v1266
    %4246 = vmatpush1.msra.mxu0 %v1265
    %4247 = vmatprep.subr.mxu0 %v1274
    %4248 = vmatpush1.msra.mxu0 %v1273
    %4249 = vmatprep.subr.mxu0 %v1282
    %4250 = vmatpush1.msra.mxu0 %v1281
    %4251 = vmatprep.subr.mxu0 %v1290
    %4252 = vmatpush1.msra.mxu0 %v1289
    %4253 = vmatprep.subr.mxu0 %v1298
    %4254 = vmatpush1.msra.mxu0 %v1297
    %4255 = vmatprep.subr.mxu0 %v1306
    %4256 = vmatpush1.msra.mxu0 %v1305
    %4257 = vmatprep.subr.mxu0 %v1314
    %4258 = vmatpush1.msra.mxu0 %v1313
    %4259 = vmatprep.subr.mxu0 %v1322
    %4260 = vmatpush1.msra.mxu0 %v1321
    %4261 = vmatprep.subr.mxu0 %v1330
    %4262 = vmatpush1.msra.mxu0 %v1329
    %4263 = vmatprep.subr.mxu0 %v1338
    %4264 = vmatpush1.msra.mxu0 %v1337
    %4265 = vmatprep.subr.mxu0 %v1346
    %4266 = vmatpush1.msra.mxu0 %v1345
    %4267 = vmatprep.subr.mxu0 %v1354
    %4268 = vmatpush1.msra.mxu0 %v1353
    %4269 = vmatprep.subr.mxu0 %v1362
    %4270 = vmatpush1.msra.mxu0 %v1361
    %4271 = vmatprep.subr.mxu0 %v1370
    %4272 = vmatpush1.msra.mxu0 %v1369
    %4273 = vmatprep.subr.mxu0 %v1378
    %4274 = vmatpush1.msra.mxu0 %v1377
    %4275 = vmatprep.subr.mxu0 %v1386
    %4276 = vmatpush1.msra.mxu0 %v1385
    %4277 = vmatprep.subr.mxu0 %v1394
    %4278 = vmatpush1.msra.mxu0 %v1393
    %4279 = vmatprep.subr.mxu0 %v1402
    %4280 = vmatpush1.msra.mxu0 %v1401
    %4281 = vmatprep.subr.mxu0 %v1410
    %4282 = vmatpush1.msra.mxu0 %v1409
    %4283 = vmatprep.subr.mxu0 %v1418
    %4284 = vmatpush1.msra.mxu0 %v1417
    %4285 = vmatprep.subr.mxu0 %v1426
    %4286 = vmatpush1.msra.mxu0 %v1425
    %4287 = vmatprep.subr.mxu0 %v1434
    %4288 = vmatpush1.msra.mxu0 %v1433
    %4289 = vmatprep.subr.mxu0 %v1442
    %4290 = vmatpush1.msra.mxu0 %v1441
    %4291 = vmatprep.subr.mxu0 %v1450
    %4292 = vmatpush1.msra.mxu0 %v1449
    %4293 = vmatprep.mubr.f32.mxu0 %v4227
    %4294 = vmatmul.mubr.f32.gmra.mrb[0].mxu0 %v4177
    %v4295 = vpop.f32.mrb[0].mxu0
    %v4296 = vadd.f32 0.0, %v4295
    %v4297 = vpop.f32.mrb[0].mxu0
    %v4298 = vadd.f32 0.0, %v4297
    %4299 = vdwg.mxu0
    %4300 = vmatprep.subr.mxu0 %v1204
    %4301 = vmatpush1.msra.mxu0 %v1203
    %4302 = vmatprep.subr.mxu0 %v1212
    %4303 = vmatpush1.msra.mxu0 %v1211
    %4304 = vmatprep.subr.mxu0 %v1220
    %4305 = vmatpush1.msra.mxu0 %v1219
    %4306 = vmatprep.subr.mxu0 %v1228
    %4307 = vmatpush1.msra.mxu0 %v1227
    %4308 = vmatprep.subr.mxu0 %v1236
    %4309 = vmatpush1.msra.mxu0 %v1235
    %4310 = vmatprep.subr.mxu0 %v1244
    %4311 = vmatpush1.msra.mxu0 %v1243
    %4312 = vmatprep.subr.mxu0 %v1252
    %4313 = vmatpush1.msra.mxu0 %v1251
    %4314 = vmatprep.subr.mxu0 %v1260
    %4315 = vmatpush1.msra.mxu0 %v1259
    %4316 = vmatprep.subr.mxu0 %v1268
    %4317 = vmatpush1.msra.mxu0 %v1267
    %4318 = vmatprep.subr.mxu0 %v1276
    %4319 = vmatpush1.msra.mxu0 %v1275
    %4320 = vmatprep.subr.mxu0 %v1284
    %4321 = vmatpush1.msra.mxu0 %v1283
    %4322 = vmatprep.subr.mxu0 %v1292
    %4323 = vmatpush1.msra.mxu0 %v1291
    %4324 = vmatprep.subr.mxu0 %v1300
    %4325 = vmatpush1.msra.mxu0 %v1299
    %4326 = vmatprep.subr.mxu0 %v1308
    %4327 = vmatpush1.msra.mxu0 %v1307
    %4328 = vmatprep.subr.mxu0 %v1316
    %4329 = vmatpush1.msra.mxu0 %v1315
    %4330 = vmatprep.subr.mxu0 %v1324
    %4331 = vmatpush1.msra.mxu0 %v1323
    %4332 = vmatprep.subr.mxu0 %v1332
    %4333 = vmatpush1.msra.mxu0 %v1331
    %4334 = vmatprep.subr.mxu0 %v1340
    %4335 = vmatpush1.msra.mxu0 %v1339
    %4336 = vmatprep.subr.mxu0 %v1348
    %4337 = vmatpush1.msra.mxu0 %v1347
    %4338 = vmatprep.subr.mxu0 %v1356
    %4339 = vmatpush1.msra.mxu0 %v1355
    %4340 = vmatprep.subr.mxu0 %v1364
    %4341 = vmatpush1.msra.mxu0 %v1363
    %4342 = vmatprep.subr.mxu0 %v1372
    %4343 = vmatpush1.msra.mxu0 %v1371
    %4344 = vmatprep.subr.mxu0 %v1380
    %4345 = vmatpush1.msra.mxu0 %v1379
    %4346 = vmatprep.subr.mxu0 %v1388
    %4347 = vmatpush1.msra.mxu0 %v1387
    %4348 = vmatprep.subr.mxu0 %v1396
    %4349 = vmatpush1.msra.mxu0 %v1395
    %4350 = vmatprep.subr.mxu0 %v1404
    %4351 = vmatpush1.msra.mxu0 %v1403
    %4352 = vmatprep.subr.mxu0 %v1412
    %4353 = vmatpush1.msra.mxu0 %v1411
    %4354 = vmatprep.subr.mxu0 %v1420
    %4355 = vmatpush1.msra.mxu0 %v1419
    %4356 = vmatprep.subr.mxu0 %v1428
    %4357 = vmatpush1.msra.mxu0 %v1427
    %4358 = vmatprep.subr.mxu0 %v1436
    %4359 = vmatpush1.msra.mxu0 %v1435
    %4360 = vmatprep.subr.mxu0 %v1444
    %4361 = vmatpush1.msra.mxu0 %v1443
    %4362 = vmatprep.subr.mxu0 %v1452
    %4363 = vmatpush1.msra.mxu0 %v1451
    %4364 = vmatprep.mubr.f32.mxu0 %v4227
    %4365 = vmatmul.mubr.f32.gmra.mrb[0].mxu0 %v4177
    %v4366 = vpop.f32.mrb[0].mxu0
    %v4367 = vadd.f32 0.0, %v4366
    %v4368 = vpop.f32.mrb[0].mxu0
    %v4369 = vadd.f32 0.0, %v4368
    %4370 = vdwg.mxu0
    %v4371 = vld [vmem:[%s1951] ss:$2 sm:$0xf]
    %v4373 = vlaneseq
    %v4374 = vshrl.u32 %v4373, 7
    %v4375 = vsub.s32 0, %v4374
    %v4376 = vrot.slane %v4371, %v4375
    %v4377 = vlaneseq
    %v4378 = vshrl.u32 %v4377, 7
    %v4379 = vsub.s32 1, %v4378
    %v4380 = vrot.slane %v4371, %v4379
    %v4381 = vlaneseq
    %v4382 = vshrl.u32 %v4381, 7
    %v4383 = vsub.s32 2, %v4382
    %v4384 = vrot.slane %v4371, %v4383
    %v4385 = vlaneseq
    %v4386 = vshrl.u32 %v4385, 7
    %v4387 = vsub.s32 3, %v4386
    %v4388 = vrot.slane %v4371, %v4387
    %v4393 = vadd.f32 %v4296, %v4376
    %v4394 = vadd.f32 %v4298, %v4380
    %v4395 = vadd.f32 %v4367, %v4384
    %v4396 = vadd.f32 %v4369, %v4388
    %v4397 = vxor.u32 %v4393, 2147483648
    %v4398 = vmul.f32 %v4397, 1.442695
    %v4399 = vpow.pop %v4398
    %v4400 = vadd.f32 %v4399, 1.0
    %v4401 = vrcp.pop %v4400
    %v4402 = vmul.f32 1.0, %v4401
    %v4403 = vxor.u32 %v4394, 2147483648
    %v4404 = vmul.f32 %v4403, 1.442695
    %v4405 = vpow.pop %v4404
    %v4406 = vadd.f32 %v4405, 1.0
    %v4407 = vrcp.pop %v4406
    %v4408 = vmul.f32 1.0, %v4407
    %v4409 = vtanh.pop %v4395
    %v4410 = vxor.u32 %v4396, 2147483648
    %v4411 = vmul.f32 %v4410, 1.442695
    %v4412 = vpow.pop %v4411
    %v4413 = vadd.f32 %v4412, 1.0
    %v4414 = vrcp.pop %v4413
    %v4415 = vmul.f32 1.0, %v4414
    %v4416 = vmul.f32 %v4408, %v4225
    %v4417 = vmul.f32 %v4402, %v4409
    %v4418 = vadd.f32 %v4416, %v4417
    %v4419 = vtanh.pop %v4418
    %v4420 = vmul.f32 %v4415, %v4419
    %4421 = vst [vmem:[#allocation11 + $0x7] sm:$0x1] %v4420
    %4422 = vst [vmem:[#allocation12] sm:$0x1] %v4177
    %4423 = vst [vmem:[#allocation14] sm:$0x1] %v4175
    %4424 = vst [vmem:[#allocation12 + $0x1] sm:$0x1] %v4420
    %4425 = vst [vmem:[#allocation14 + $0x1] sm:$0x1] %v4418
    // Predicated region
    $region42: #{tpu_custom_call.1} parent=1 // pred_check
      _
    $region43: #{tpu_custom_call.1} parent=1 // pred_check_branch
      %4427 = sbr.rel (0) target = $region45
    $region44: #{tpu_custom_call.1} parent=1 // pred_region
      %s4429 = ssub.s32 128, 128
      %4430 = vsyncadd [#allocation4], %s4429
      %s4432 = sshll.u32 [#allocation11], 4
      %s4433 = int_to_ptr.vmem [resolvable:$true] %s4432
      %4435 = dma.vmem_to_hbm [thread:$0]  %s4433, 128, %s5, [#allocation4]
    $region45: #{tpu_custom_call.1} parent=1 // pred_fallthru
      _
    // Predicated region
    $region46: #{tpu_custom_call.1} parent=1 // pred_check
      _
    $region47: #{tpu_custom_call.1} parent=1 // pred_check_branch
      %4437 = sbr.rel (0) target = $region49
    $region48: #{tpu_custom_call.1} parent=1 // pred_region
      %s4439 = ssub.s32 32, 32
      %4440 = vsyncadd [#allocation13], %s4439
      %s4442 = sshll.u32 [#allocation12], 4
      %s4443 = int_to_ptr.vmem [resolvable:$true] %s4442
      %4445 = dma.vmem_to_hbm [thread:$0]  %s4443, 32, %s6, [#allocation13]
    $region49: #{tpu_custom_call.1} parent=1 // pred_fallthru
      _
    // Predicated region
    $region50: #{tpu_custom_call.1} parent=1 // pred_check
      _
    $region51: #{tpu_custom_call.1} parent=1 // pred_check_branch
      %4447 = sbr.rel (0) target = $region53
    $region52: #{tpu_custom_call.1} parent=1 // pred_region
      %s4449 = ssub.s32 32, 32
      %4450 = vsyncadd [#allocation13], %s4449
      %s4452 = sshll.u32 [#allocation14], 4
      %s4453 = int_to_ptr.vmem [resolvable:$true] %s4452
      %4455 = dma.vmem_to_hbm [thread:$0]  %s4453, 32, %s7, [#allocation13]
    $region53: #{tpu_custom_call.1} parent=1 // pred_fallthru
      _
    // Predicated region
    $region54: #{tpu_custom_call.1} parent=1 // pred_check
      _
    $region55: #{tpu_custom_call.1} parent=1 // pred_check_branch
      %4457 = sbr.rel (0) target = $region57
    $region56: #{tpu_custom_call.1} parent=1 // pred_region
      %4458 = dma.done [#allocation4], 128
    $region57: #{tpu_custom_call.1} parent=1 // pred_fallthru
      _
    // Predicated region
    $region58: #{tpu_custom_call.1} parent=1 // pred_check
      _
    $region59: #{tpu_custom_call.1} parent=1 // pred_check_branch
      %4460 = sbr.rel (0) target = $region61
    $region60: #{tpu_custom_call.1} parent=1 // pred_region
      %4461 = dma.done [#allocation13], 32
    $region61: #{tpu_custom_call.1} parent=1 // pred_fallthru
      _
    // Predicated region
    $region62: #{tpu_custom_call.1} parent=1 // pred_check
      _
    $region63: #{tpu_custom_call.1} parent=1 // pred_check_branch
      %4463 = sbr.rel (0) target = $region65
    $region64: #{tpu_custom_call.1} parent=1 // pred_region
      %4464 = dma.done [#allocation13], 32
    $region65: #{tpu_custom_call.1} parent=1 // pred_fallthru
      _
    %4465 = vsyncpa [#allocation3], 1
    %4466 = vsyncpa [#allocation6], 1
    %4467 = vsyncpa [#allocation9], 1
    %4468 = vsyncpa [#allocation4], 1
    %4469 = vsyncpa [#allocation13], 1

</llo_original>
